<compile_context>
chip_gen: v5e
topology: v5e:2x2
jax: 0.10.0
libtpu: 0.0.40
codegen_flags: <defaults>
</compile_context>

<pallas_src>
import functools
import math

import jax
import jax.numpy as jnp
from jax.experimental import pallas as pl
from jax.experimental.pallas import tpu as pltpu


# ---------------------------------------------------------------------------
# helpers
# ---------------------------------------------------------------------------
def _round_up(x, m):
    return ((x + m - 1) // m) * m


def _choose_time_chunk(T, max_chunk=16):
    """Largest divisor of T that is <= max_chunk (chunked serial recurrence)."""
    for c in range(min(max_chunk, T), 0, -1):
        if T % c == 0:
            return c
    return T


def _pad_gates_lastdim(a, H, Hp):
    """(..., 3H) -> (..., 3Hp): zero-pad each of the three gate blocks [r,z,n] to Hp lanes."""
    pad = [(0, 0)] * (a.ndim - 1) + [(0, Hp - H)]
    return jnp.concatenate(
        [jnp.pad(a[..., g * H:(g + 1) * H], pad) for g in range(3)], axis=-1)


# ---------------------------------------------------------------------------
# Kernel 1: hoisted input projection for both directions, all timesteps.
#   gi = x2d @ [Wih_f | Wih_b]  (+ folded biases), bf16 MXU inputs, f32 accumulate,
#   result stored in bf16 (halves gi HBM traffic).
# ---------------------------------------------------------------------------
def input_proj_kernel(x_ref, w_ref, bf_ref, bb_ref, gif_ref, gib_ref):
    g = jnp.dot(x_ref[...], w_ref[...], preferred_element_type=jnp.float32)
    G = gif_ref.shape[-1]                      # 3*Hp (lane-aligned split point)
    gif_ref[...] = (g[:, :G] + bf_ref[...]).astype(gif_ref.dtype)
    gib_ref[...] = (g[:, G:] + bb_ref[...]).astype(gib_ref.dtype)


# ---------------------------------------------------------------------------
# Kernel 2: bidirectional GRU recurrence, chunked over time (grid=(T//Tt,), serial).
#   Each grid step runs an unrolled Tt-step loop; forward consumes gi_f chunk c,
#   backward consumes gi_b chunk nC-1-c (iterated in reverse inside the chunk).
#   h_f / h_b live in VMEM scratch across grid steps; fc+tanh fused at the last chunk.
# ---------------------------------------------------------------------------
def bigru_recurrence_kernel(gi_f_ref, gi_b_ref, whh_f_ref, whh_b_ref,
                            bhn_f_ref, bhn_b_ref, wfc_ref, bfc_ref,
                            out_f_ref, out_b_ref, hid_ref,
                            h_f_scr, h_b_scr):
    c = pl.program_id(0)
    nC = pl.num_programs(0)
    Tt = gi_f_ref.shape[0]
    Hp = h_f_scr.shape[-1]

    @pl.when(c == 0)
    def _init():
        h_f_scr[...] = jnp.zeros_like(h_f_scr)
        h_b_scr[...] = jnp.zeros_like(h_b_scr)

    whh_f = whh_f_ref[...]
    whh_b = whh_b_ref[...]
    bhn_f = bhn_f_ref[...]
    bhn_b = bhn_b_ref[...]

    def gru_step(gi_bf16, h_prev, whh, bhn):
        # PyTorch GRU cell, gate order [r, z, n]:
        #   r = sig(gi_r + Whr h) ; z = sig(gi_z + Whz h)
        #   n = tanh(gi_n + r * (Whn h + b_hn)) ; h' = (1-z)*n + z*h
        # (b_ih and b_hr/b_hz are already folded into gi by the projection kernel.)
        gi = gi_bf16.astype(jnp.float32)       # gate math in f32 (clean VPU/EUP on v5e)
        gh = jnp.dot(h_prev.astype(whh.dtype), whh,
                     preferred_element_type=jnp.float32)
        r = jax.nn.sigmoid(gi[:, 0 * Hp:1 * Hp] + gh[:, 0 * Hp:1 * Hp])
        z = jax.nn.sigmoid(gi[:, 1 * Hp:2 * Hp] + gh[:, 1 * Hp:2 * Hp])
        n = jnp.tanh(gi[:, 2 * Hp:3 * Hp] + r * (gh[:, 2 * Hp:3 * Hp] + bhn))
        return (1.0 - z) * n + z * h_prev

    h_f = h_f_scr[...]
    h_b = h_b_scr[...]
    # Static Python loop == fully unrolled trace (Tt is small): LLO scheduler interleaves
    # both directions' matmuls, gate math and the lane-dense per-step stores.
    for i in range(Tt):
        h_f = gru_step(gi_f_ref[i], h_f, whh_f, bhn_f)
        h_b = gru_step(gi_b_ref[Tt - 1 - i], h_b, whh_b, bhn_b)
        out_f_ref[i] = h_f                      # (Bp, Hp) full-sublane, lane-dense store
        out_b_ref[Tt - 1 - i] = h_b
    h_f_scr[...] = h_f
    h_b_scr[...] = h_b

    # hidden = tanh(fc(cat(h_fwd_final, h_bwd_final))) — both finals ready at the last chunk.
    @pl.when(c == nC - 1)
    def _finalize():
        h_cat = jnp.concatenate([h_f, h_b], axis=-1).astype(wfc_ref.dtype)
        hid = jnp.dot(h_cat, wfc_ref[...],
                      preferred_element_type=jnp.float32) + bfc_ref[...]
        hid_ref[...] = jnp.tanh(hid)


# ---------------------------------------------------------------------------
# One-time parameter preparation (hoisted out of the per-call path)
# ---------------------------------------------------------------------------
def prepare_encoder_params(params, batch_size):
    """Pad gates/rows to Hp=128 lanes, fold biases, cast MXU operands to bf16,
    pre-broadcast per-batch biases to the padded batch Bp. Run once."""
    H = params["whh_f"].shape[0]
    Hp = _round_up(H, 128)
    Bp = _round_up(max(batch_size, 1), 8)       # pad batch to full sublanes

    def prep_dir(wih, whh, bih, bhh):
        wih_p = _pad_gates_lastdim(wih, H, Hp).astype(jnp.bfloat16)        # (E, 3Hp)
        whh_p = jnp.pad(whh, ((0, Hp - H), (0, 0)))                        # (Hp, 3H)
        whh_p = _pad_gates_lastdim(whh_p, H, Hp).astype(jnp.bfloat16)      # (Hp, 3Hp)
        bih_p = _pad_gates_lastdim(bih, H, Hp)                             # (1, 3Hp)
        bhh_p = _pad_gates_lastdim(bhh, H, Hp)                             # (1, 3Hp)
        # Fold b_ih (all gates) + b_hh for r,z into the projection bias; b_hn must stay
        # inside the r*(...) term so it is passed separately (pre-broadcast to (Bp,Hp)).
        n_mask = jnp.concatenate(
            [jnp.ones((1, 2 * Hp), jnp.float32),
             jnp.zeros((1, Hp), jnp.float32)], axis=-1)
        b_proj = bih_p + bhh_p * n_mask
        b_hn = jnp.broadcast_to(bhh_p[:, 2 * Hp:], (Bp, Hp))
        return wih_p, whh_p, b_proj, b_hn

    wih_f_p, whh_f_p, bproj_f, bhn_f = prep_dir(
        params["wih_f"], params["whh_f"], params["bih_f"], params["bhh_f"])
    wih_b_p, whh_b_p, bproj_b, bhn_b = prep_dir(
        params["wih_b"], params["whh_b"], params["bih_b"], params["bhh_b"])

    wfc = params["wfc"]                                                    # (2H, H)
    wfc_p = jnp.zeros((2 * Hp, Hp), jnp.float32)
    wfc_p = wfc_p.at[:H, :H].set(wfc[:H]).at[Hp:Hp + H, :H].set(wfc[H:])
    bfc_p = jnp.broadcast_to(
        jnp.pad(params["bfc"], ((0, 0), (0, Hp - H))), (Bp, Hp))           # (Bp, Hp)

    return dict(
        emb=params["emb"].astype(jnp.bfloat16),                            # bf16 gather
        w6=jnp.concatenate([wih_f_p, wih_b_p], axis=-1),                   # (E, 6Hp) bf16
        whh_f=whh_f_p, whh_b=whh_b_p,
        bproj_f=bproj_f, bproj_b=bproj_b,
        bhn_f=bhn_f, bhn_b=bhn_b,
        wfc=wfc_p.astype(jnp.bfloat16), bfc=bfc_p,
    )


# ---------------------------------------------------------------------------
# Forward
# ---------------------------------------------------------------------------
@functools.partial(jax.jit, static_argnames=("hidden_dim",))
def encoder_forward(src, prepped, hidden_dim):
    H = hidden_dim
    B, T = src.shape
    E = prepped["emb"].shape[1]
    Bp, Hp = prepped["bhn_f"].shape
    TBp = T * Bp

    # Embedding gather (glue): bf16 table, emits time-major (T, Bp, E) directly.
    # TODO(synk): nn.Dropout is identity in eval mode; training-mode dropout not implemented.
    src_p = jnp.pad(src, ((0, Bp - B), (0, 0)))        # padded batch rows sliced off below
    x2d = jnp.take(prepped["emb"], src_p.T, axis=0).reshape(TBp, E)        # (T*Bp, E) bf16

    vmem_limit = 32 * 1024 * 1024   # fits v7x's 64 MiB/TC with headroom

    # ---- Stage 1: hoisted input projection (one big MXU matmul over all timesteps) ----
    tm = min(512, TBp)
    while TBp % tm != 0:            # keep every block full (TBp is a multiple of 8)
        tm -= 8
    grid_m = TBp // tm
    proj_cost = pl.CostEstimate(
        flops=2 * TBp * E * 6 * Hp,
        transcendentals=0,
        bytes_accessed=(TBp * E * 2 + E * 6 * Hp * 2 + 2 * 3 * Hp * 4
                        + 2 * TBp * 3 * Hp * 2))
    gi_f2d, gi_b2d = pl.pallas_call(
        input_proj_kernel,
        out_shape=(jax.ShapeDtypeStruct((TBp, 3 * Hp), jnp.bfloat16),
                   jax.ShapeDtypeStruct((TBp, 3 * Hp), jnp.bfloat16)),
        grid=(grid_m,),
        in_specs=[pl.BlockSpec((tm, E), lambda i: (i, 0)),
                  pl.BlockSpec((E, 6 * Hp), lambda i: (0, 0)),
                  pl.BlockSpec((1, 3 * Hp), lambda i: (0, 0)),
                  pl.BlockSpec((1, 3 * Hp), lambda i: (0, 0))],
        out_specs=(pl.BlockSpec((tm, 3 * Hp), lambda i: (i, 0)),
                   pl.BlockSpec((tm, 3 * Hp), lambda i: (i, 0))),
        compiler_params=pltpu.CompilerParams(
            dimension_semantics=("parallel",), vmem_limit_bytes=vmem_limit),
        cost_estimate=proj_cost,
    )(x2d, prepped["w6"], prepped["bproj_f"], prepped["bproj_b"])

    gi_f = gi_f2d.reshape(T, Bp, 3 * Hp)                                   # free reshapes
    gi_b = gi_b2d.reshape(T, Bp, 3 * Hp)

    # ---- Stage 2: serial bidirectional recurrence, chunked over time ----
    Tt = _choose_time_chunk(T)
    nC = T // Tt
    rec_cost = pl.CostEstimate(
        flops=2 * (2 * T * Bp * Hp * 3 * Hp) + 2 * Bp * 2 * Hp * Hp,
        transcendentals=2 * T * Bp * 3 * Hp + Bp * Hp,
        bytes_accessed=(2 * T * Bp * 3 * Hp * 2 + 2 * T * Bp * Hp * 4 + Bp * Hp * 4
                        + 2 * Hp * 3 * Hp * 2 + 2 * Hp * Hp * 2 + 3 * Bp * Hp * 4))
    out_f, out_b, hid_p = pl.pallas_call(
        bigru_recurrence_kernel,
        out_shape=(jax.ShapeDtypeStruct((T, Bp, Hp), jnp.float32),
                   jax.ShapeDtypeStruct((T, Bp, Hp), jnp.float32),
                   jax.ShapeDtypeStruct((Bp, Hp), jnp.float32)),
        grid=(nC,),
        in_specs=[pl.BlockSpec((Tt, Bp, 3 * Hp), lambda c: (c, 0, 0)),
                  pl.BlockSpec((Tt, Bp, 3 * Hp), lambda c: (nC - 1 - c, 0, 0)),
                  pl.BlockSpec((Hp, 3 * Hp), lambda c: (0, 0)),
                  pl.BlockSpec((Hp, 3 * Hp), lambda c: (0, 0)),
                  pl.BlockSpec((Bp, Hp), lambda c: (0, 0)),
                  pl.BlockSpec((Bp, Hp), lambda c: (0, 0)),
                  pl.BlockSpec((2 * Hp, Hp), lambda c: (0, 0)),
                  pl.BlockSpec((Bp, Hp), lambda c: (0, 0))],
        out_specs=(pl.BlockSpec((Tt, Bp, Hp), lambda c: (c, 0, 0)),
                   pl.BlockSpec((Tt, Bp, Hp), lambda c: (nC - 1 - c, 0, 0)),
                   pl.BlockSpec((Bp, Hp), lambda c: (0, 0))),
        scratch_shapes=[pltpu.VMEM((Bp, Hp), jnp.float32),
                        pltpu.VMEM((Bp, Hp), jnp.float32)],
        compiler_params=pltpu.CompilerParams(
            dimension_semantics=("arbitrary",), vmem_limit_bytes=vmem_limit),
        cost_estimate=rec_cost,
    )(gi_f, gi_b, prepped["whh_f"], prepped["whh_b"],
      prepped["bhn_f"], prepped["bhn_b"], prepped["wfc"], prepped["bfc"])
    # TODO(synk): on v7x the two directions could be split across the 2 TensorCores
    # (leading parallel grid axis / core_map) with fc moved out; kept single-core here.
    # TODO(synk): emitting batch-major (B,T,Hp) directly from the kernel needs an unaligned
    # sublane relayout per chunk; done instead as one fused slice+concat+transpose in XLA.

    # batch_first output: (B, T, 2H) with [:, :, :H]=forward, [:, :, H:]=backward
    # (also strips the Hp lane padding and the Bp batch padding).
    out = jnp.transpose(
        jnp.concatenate([out_f[:, :B, :H], out_b[:, :B, :H]], axis=-1), (1, 0, 2))
    hid = hid_p[:B, :H]
    return out, hid


# ---------------------------------------------------------------------------
# Pure-JAX reference (f32, PyTorch-equivalent math) for a tolerance check
# ---------------------------------------------------------------------------
def _reference_encoder(src, params):
    emb = jnp.take(params["emb"], src, axis=0)            # (B, T, E) f32
    B, T, _ = emb.shape
    H = params["whh_f"].shape[0]
    x_t = jnp.transpose(emb, (1, 0, 2))                   # (T, B, E)

    def gru_dir(wih, whh, bih, bhh, reverse):
        def step(h, x):
            gi = x @ wih + bih
            gh = h @ whh + bhh
            r = jax.nn.sigmoid(gi[:, :H] + gh[:, :H])
            z = jax.nn.sigmoid(gi[:, H:2 * H] + gh[:, H:2 * H])
            n = jnp.tanh(gi[:, 2 * H:] + r * gh[:, 2 * H:])
            h_new = (1.0 - z) * n + z * h
            return h_new, h_new
        xs = x_t[::-1] if reverse else x_t
        h_last, hs = jax.lax.scan(step, jnp.zeros((B, H), jnp.float32), xs)
        return (hs[::-1] if reverse else hs), h_last

    hs_f, hf = gru_dir(params["wih_f"], params["whh_f"],
                       params["bih_f"], params["bhh_f"], False)
    hs_b, hb = gru_dir(params["wih_b"], params["whh_b"],
                       params["bih_b"], params["bhh_b"], True)
    out = jnp.transpose(jnp.concatenate([hs_f, hs_b], axis=-1), (1, 0, 2))
    hid = jnp.tanh(jnp.concatenate([hf, hb], axis=-1) @ params["wfc"] + params["bfc"])
    return out, hid


# ---------------------------------------------------------------------------
# Params (logical shapes, PyTorch-equivalent init)
# ---------------------------------------------------------------------------
def init_params(key, vocab, emb_dim, hidden_dim):
    ks = jax.random.split(key, 11)
    s = 1.0 / math.sqrt(hidden_dim)

    def u(k, shape):
        return jax.random.uniform(k, shape, jnp.float32, -s, s)

    return dict(
        emb=jax.random.normal(ks[0], (vocab, emb_dim), jnp.float32),
        # GRU weights stored transposed vs. PyTorch ((3H,E) -> (E,3H)), gate order [r,z,n].
        wih_f=u(ks[1], (emb_dim, 3 * hidden_dim)),
        whh_f=u(ks[2], (hidden_dim, 3 * hidden_dim)),
        bih_f=u(ks[3], (1, 3 * hidden_dim)),
        bhh_f=u(ks[4], (1, 3 * hidden_dim)),
        wih_b=u(ks[5], (emb_dim, 3 * hidden_dim)),
        whh_b=u(ks[6], (hidden_dim, 3 * hidden_dim)),
        bih_b=u(ks[7], (1, 3 * hidden_dim)),
        bhh_b=u(ks[8], (1, 3 * hidden_dim)),
        # fc: Linear(2H -> H), stored as (2H, H)
        wfc=u(ks[9], (2 * hidden_dim, hidden_dim)),
        bfc=u(ks[10], (1, hidden_dim)),
    )


if __name__ == "__main__":
    B, T = 2, 8
    vocab, emb_dim, hidden_dim = 16, 32, 32

    key = jax.random.PRNGKey(0)
    k_params, k_src = jax.random.split(key)
    params = init_params(k_params, vocab, emb_dim, hidden_dim)
    src = jax.random.randint(k_src, (B, T), 0, vocab, dtype=jnp.int32)

    prepped = prepare_encoder_params(params, B)     # hoisted out of the per-call path
    out, hid = encoder_forward(src, prepped, hidden_dim)
    jax.block_until_ready((out, hid))

    assert out.shape == (B, T, 2 * hidden_dim)
    assert hid.shape == (B, hidden_dim)
    assert bool(jnp.all(jnp.isfinite(out))) and bool(jnp.all(jnp.isfinite(hid)))

    # Tolerance check vs. f32 reference (kernel uses bf16 weights/activations on the MXU).
    out_ref, hid_ref = _reference_encoder(src, params)
    assert float(jnp.max(jnp.abs(out - out_ref))) < 1e-1
    assert float(jnp.max(jnp.abs(hid - hid_ref))) < 1e-1

    print("KERNEL_OK")
</pallas_src>

<mosaic_0001>
module attributes {stable_mosaic.version = 11 : i64} {
  func.func @input_proj_kernel(%arg0: i32, %arg1: memref<64x32xbf16, #tpu.memory_space<vmem>>, %arg2: memref<32x768xbf16, #tpu.memory_space<vmem>>, %arg3: memref<1x384xf32, #tpu.memory_space<vmem>>, %arg4: memref<1x384xf32, #tpu.memory_space<vmem>>, %arg5: memref<64x384xbf16, #tpu.memory_space<vmem>>, %arg6: memref<64x384xbf16, #tpu.memory_space<vmem>>) attributes {dimension_semantics = [#tpu.dimension_semantics<parallel>], iteration_bounds = array<i64: 1>, scalar_prefetch = 0 : i64, scratch_operands = 0 : i64, tpu.core_type = #tpu.core_type<tc>, window_params = [{transform_indices = @transform_0, window_bounds = array<i64: 64, 32>}, {pipeline_mode = #tpu.pipeline_mode<synchronous>, transform_indices = @transform_1, window_bounds = array<i64: 32, 768>}, {pipeline_mode = #tpu.pipeline_mode<synchronous>, transform_indices = @transform_2, window_bounds = array<i64: 1, 384>}, {pipeline_mode = #tpu.pipeline_mode<synchronous>, transform_indices = @transform_3, window_bounds = array<i64: 1, 384>}, {transform_indices = @transform_4, window_bounds = array<i64: 64, 384>}, {transform_indices = @transform_5, window_bounds = array<i64: 64, 384>}]} {
    %c0 = arith.constant 0 : index
    %c0_0 = arith.constant 0 : index
    %0 = vector.load %arg1[%c0, %c0_0] : memref<64x32xbf16, #tpu.memory_space<vmem>>, vector<64x32xbf16>
    %c0_1 = arith.constant 0 : index
    %c0_2 = arith.constant 0 : index
    %1 = vector.load %arg2[%c0_1, %c0_2] : memref<32x768xbf16, #tpu.memory_space<vmem>>, vector<32x768xbf16>
    %cst = arith.constant dense<0.000000e+00> : vector<64x768xf32>
    %2 = tpu.matmul %0, %1, %cst {dimension_numbers = #tpu.dot_dimension_numbers<[1], [0], [0], [1], [0, 0, 1, 1], [], []>} : vector<64x32xbf16>, vector<32x768xbf16>, vector<64x768xf32> -> vector<64x768xf32>
    %3 = vector.extract_strided_slice %2 {offsets = [0, 0], sizes = [64, 384], strides = [1, 1]} : vector<64x768xf32> to vector<64x384xf32>
    %c0_3 = arith.constant 0 : index
    %c0_4 = arith.constant 0 : index
    %4 = vector.load %arg3[%c0_3, %c0_4] : memref<1x384xf32, #tpu.memory_space<vmem>>, vector<1x384xf32>
    %5 = vector.broadcast %4 : vector<1x384xf32> to vector<64x384xf32>
    %6 = arith.addf %3, %5 : vector<64x384xf32>
    %7 = arith.truncf %6 : vector<64x384xf32> to vector<64x384xbf16>
    %c0_5 = arith.constant 0 : index
    %c0_6 = arith.constant 0 : index
    %8 = vector.load %arg5[%c0_5, %c0_6] : memref<64x384xbf16, #tpu.memory_space<vmem>>, vector<64x384xbf16>
    tpu.vector_store %arg5[%c0_5, %c0_6], %7 {strides = array<i32>} : memref<64x384xbf16, #tpu.memory_space<vmem>>, vector<64x384xbf16>,
    %9 = vector.extract_strided_slice %2 {offsets = [0, 384], sizes = [64, 384], strides = [1, 1]} : vector<64x768xf32> to vector<64x384xf32>
    %c0_7 = arith.constant 0 : index
    %c0_8 = arith.constant 0 : index
    %10 = vector.load %arg4[%c0_7, %c0_8] : memref<1x384xf32, #tpu.memory_space<vmem>>, vector<1x384xf32>
    %11 = vector.broadcast %10 : vector<1x384xf32> to vector<64x384xf32>
    %12 = arith.addf %9, %11 : vector<64x384xf32>
    %13 = arith.truncf %12 : vector<64x384xf32> to vector<64x384xbf16>
    %c0_9 = arith.constant 0 : index
    %c0_10 = arith.constant 0 : index
    %14 = vector.load %arg6[%c0_9, %c0_10] : memref<64x384xbf16, #tpu.memory_space<vmem>>, vector<64x384xbf16>
    tpu.vector_store %arg6[%c0_9, %c0_10], %13 {strides = array<i32>} : memref<64x384xbf16, #tpu.memory_space<vmem>>, vector<64x384xbf16>,
    return
  }
  func.func @transform_0(%arg0: i32) -> (i32, i32) {
    %c0_i32 = arith.constant 0 : i32
    %c0_i32_0 = arith.constant 0 : i32
    return %arg0, %c0_i32 : i32, i32
  }
  func.func @transform_1(%arg0: i32) -> (i32, i32) {
    %c0_i32 = arith.constant 0 : i32
    %c0_i32_0 = arith.constant 0 : i32
    %c0_i32_1 = arith.constant 0 : i32
    return %c0_i32, %c0_i32_0 : i32, i32
  }
  func.func @transform_2(%arg0: i32) -> (i32, i32) {
    %c0_i32 = arith.constant 0 : i32
    %c0_i32_0 = arith.constant 0 : i32
    %c0_i32_1 = arith.constant 0 : i32
    return %c0_i32, %c0_i32_0 : i32, i32
  }
  func.func @transform_3(%arg0: i32) -> (i32, i32) {
    %c0_i32 = arith.constant 0 : i32
    %c0_i32_0 = arith.constant 0 : i32
    %c0_i32_1 = arith.constant 0 : i32
    return %c0_i32, %c0_i32_0 : i32, i32
  }
  func.func @transform_4(%arg0: i32) -> (i32, i32) {
    %c0_i32 = arith.constant 0 : i32
    %c0_i32_0 = arith.constant 0 : i32
    return %arg0, %c0_i32 : i32, i32
  }
  func.func @transform_5(%arg0: i32) -> (i32, i32) {
    %c0_i32 = arith.constant 0 : i32
    %c0_i32_0 = arith.constant 0 : i32
    return %arg0, %c0_i32 : i32, i32
  }
}

module attributes {stable_mosaic.version = 11 : i64} {
  func.func @bigru_recurrence_kernel(%arg0: i32, %arg1: memref<8x8x384xbf16, #tpu.memory_space<vmem>>, %arg2: memref<8x8x384xbf16, #tpu.memory_space<vmem>>, %arg3: memref<128x384xbf16, #tpu.memory_space<vmem>>, %arg4: memref<128x384xbf16, #tpu.memory_space<vmem>>, %arg5: memref<8x128xf32, #tpu.memory_space<vmem>>, %arg6: memref<8x128xf32, #tpu.memory_space<vmem>>, %arg7: memref<256x128xbf16, #tpu.memory_space<vmem>>, %arg8: memref<8x128xf32, #tpu.memory_space<vmem>>, %arg9: memref<8x8x128xf32, #tpu.memory_space<vmem>>, %arg10: memref<8x8x128xf32, #tpu.memory_space<vmem>>, %arg11: memref<8x128xf32, #tpu.memory_space<vmem>>, %arg12: memref<8x128xf32, #tpu.memory_space<vmem>>, %arg13: memref<8x128xf32, #tpu.memory_space<vmem>>) attributes {dimension_semantics = [#tpu.dimension_semantics<arbitrary>], iteration_bounds = array<i64: 1>, scalar_prefetch = 0 : i64, scratch_operands = 2 : i64, tpu.core_type = #tpu.core_type<tc>, window_params = [{transform_indices = @transform_0, window_bounds = array<i64: 8, 8, 384>}, {transform_indices = @transform_1, window_bounds = array<i64: 8, 8, 384>}, {pipeline_mode = #tpu.pipeline_mode<synchronous>, transform_indices = @transform_2, window_bounds = array<i64: 128, 384>}, {pipeline_mode = #tpu.pipeline_mode<synchronous>, transform_indices = @transform_3, window_bounds = array<i64: 128, 384>}, {pipeline_mode = #tpu.pipeline_mode<synchronous>, transform_indices = @transform_4, window_bounds = array<i64: 8, 128>}, {pipeline_mode = #tpu.pipeline_mode<synchronous>, transform_indices = @transform_5, window_bounds = array<i64: 8, 128>}, {pipeline_mode = #tpu.pipeline_mode<synchronous>, transform_indices = @transform_6, window_bounds = array<i64: 256, 128>}, {pipeline_mode = #tpu.pipeline_mode<synchronous>, transform_indices = @transform_7, window_bounds = array<i64: 8, 128>}, {transform_indices = @transform_8, window_bounds = array<i64: 8, 8, 128>}, {transform_indices = @transform_9, window_bounds = array<i64: 8, 8, 128>}, {pipeline_mode = #tpu.pipeline_mode<synchronous>, transform_indices = @transform_10, window_bounds = array<i64: 8, 128>}]} {
    %c0_i32 = arith.constant 0 : i32
    %0 = arith.cmpi eq, %arg0, %c0_i32 : i32
    %1 = arith.extui %0 : i1 to i32
    %c0_i32_0 = arith.constant 0 : i32
    %2 = arith.cmpi ne, %1, %c0_i32_0 : i32
    scf.if %2 {
      %cst_170 = arith.constant 0.000000e+00 : f32
      %574 = vector.broadcast %cst_170 : f32 to vector<8x128xf32>
      %c0_171 = arith.constant 0 : index
      %c0_172 = arith.constant 0 : index
      %575 = vector.load %arg12[%c0_171, %c0_172] : memref<8x128xf32, #tpu.memory_space<vmem>>, vector<8x128xf32>
      tpu.vector_store %arg12[%c0_171, %c0_172], %574 {strides = array<i32>} : memref<8x128xf32, #tpu.memory_space<vmem>>, vector<8x128xf32>,
      %cst_173 = arith.constant 0.000000e+00 : f32
      %576 = vector.broadcast %cst_173 : f32 to vector<8x128xf32>
      %c0_174 = arith.constant 0 : index
      %c0_175 = arith.constant 0 : index
      %577 = vector.load %arg13[%c0_174, %c0_175] : memref<8x128xf32, #tpu.memory_space<vmem>>, vector<8x128xf32>
      tpu.vector_store %arg13[%c0_174, %c0_175], %576 {strides = array<i32>} : memref<8x128xf32, #tpu.memory_space<vmem>>, vector<8x128xf32>,
    } else {
    }
    %c0 = arith.constant 0 : index
    %c0_1 = arith.constant 0 : index
    %3 = vector.load %arg3[%c0, %c0_1] : memref<128x384xbf16, #tpu.memory_space<vmem>>, vector<128x384xbf16>
    %c0_2 = arith.constant 0 : index
    %c0_3 = arith.constant 0 : index
    %4 = vector.load %arg4[%c0_2, %c0_3] : memref<128x384xbf16, #tpu.memory_space<vmem>>, vector<128x384xbf16>
    %c0_4 = arith.constant 0 : index
    %c0_5 = arith.constant 0 : index
    %5 = vector.load %arg5[%c0_4, %c0_5] : memref<8x128xf32, #tpu.memory_space<vmem>>, vector<8x128xf32>
    %c0_6 = arith.constant 0 : index
    %c0_7 = arith.constant 0 : index
    %6 = vector.load %arg6[%c0_6, %c0_7] : memref<8x128xf32, #tpu.memory_space<vmem>>, vector<8x128xf32>
    %c0_8 = arith.constant 0 : index
    %c0_9 = arith.constant 0 : index
    %7 = vector.load %arg12[%c0_8, %c0_9] : memref<8x128xf32, #tpu.memory_space<vmem>>, vector<8x128xf32>
    %c0_10 = arith.constant 0 : index
    %c0_11 = arith.constant 0 : index
    %8 = vector.load %arg13[%c0_10, %c0_11] : memref<8x128xf32, #tpu.memory_space<vmem>>, vector<8x128xf32>
    %c0_12 = arith.constant 0 : index
    %c0_13 = arith.constant 0 : index
    %c0_14 = arith.constant 0 : index
    %9 = vector.load %arg1[%c0_12, %c0_13, %c0_14] : memref<8x8x384xbf16, #tpu.memory_space<vmem>>, vector<1x8x384xbf16>
    %10 = vector.shape_cast %9 : vector<1x8x384xbf16> to vector<8x384xbf16>
    %11 = arith.extf %10 : vector<8x384xbf16> to vector<8x384xf32>
    %12 = arith.truncf %7 : vector<8x128xf32> to vector<8x128xbf16>
    %cst = arith.constant dense<0.000000e+00> : vector<8x384xf32>
    %13 = tpu.matmul %12, %3, %cst {dimension_numbers = #tpu.dot_dimension_numbers<[1], [0], [0], [1], [0, 0, 1, 1], [], []>} : vector<8x128xbf16>, vector<128x384xbf16>, vector<8x384xf32> -> vector<8x384xf32>
    %14 = vector.extract_strided_slice %11 {offsets = [0, 0], sizes = [8, 128], strides = [1, 1]} : vector<8x384xf32> to vector<8x128xf32>
    %15 = vector.extract_strided_slice %13 {offsets = [0, 0], sizes = [8, 128], strides = [1, 1]} : vector<8x384xf32> to vector<8x128xf32>
    %16 = arith.addf %14, %15 : vector<8x128xf32>
    %17 = arith.negf %16 : vector<8x128xf32>
    %18 = math.exp %17 : vector<8x128xf32>
    %cst_15 = arith.constant 1.000000e+00 : f32
    %19 = vector.broadcast %cst_15 : f32 to vector<8x128xf32>
    %20 = arith.addf %19, %18 : vector<8x128xf32>
    %21 = arith.divf %19, %20 : vector<8x128xf32>
    %22 = vector.extract_strided_slice %11 {offsets = [0, 128], sizes = [8, 128], strides = [1, 1]} : vector<8x384xf32> to vector<8x128xf32>
    %23 = vector.extract_strided_slice %13 {offsets = [0, 128], sizes = [8, 128], strides = [1, 1]} : vector<8x384xf32> to vector<8x128xf32>
    %24 = arith.addf %22, %23 : vector<8x128xf32>
    %25 = arith.negf %24 : vector<8x128xf32>
    %26 = math.exp %25 : vector<8x128xf32>
    %cst_16 = arith.constant 1.000000e+00 : f32
    %27 = vector.broadcast %cst_16 : f32 to vector<8x128xf32>
    %28 = arith.addf %27, %26 : vector<8x128xf32>
    %29 = arith.divf %27, %28 : vector<8x128xf32>
    %30 = vector.extract_strided_slice %11 {offsets = [0, 256], sizes = [8, 128], strides = [1, 1]} : vector<8x384xf32> to vector<8x128xf32>
    %31 = vector.extract_strided_slice %13 {offsets = [0, 256], sizes = [8, 128], strides = [1, 1]} : vector<8x384xf32> to vector<8x128xf32>
    %32 = arith.addf %31, %5 : vector<8x128xf32>
    %33 = arith.mulf %21, %32 : vector<8x128xf32>
    %34 = arith.addf %30, %33 : vector<8x128xf32>
    %35 = math.tanh %34 : vector<8x128xf32>
    %cst_17 = arith.constant 1.000000e+00 : f32
    %36 = vector.broadcast %cst_17 : f32 to vector<8x128xf32>
    %37 = arith.subf %36, %29 : vector<8x128xf32>
    %38 = arith.mulf %37, %35 : vector<8x128xf32>
    %39 = arith.mulf %29, %7 : vector<8x128xf32>
    %40 = arith.addf %38, %39 : vector<8x128xf32>
    %c7 = arith.constant 7 : index
    %c0_18 = arith.constant 0 : index
    %c0_19 = arith.constant 0 : index
    %41 = vector.load %arg2[%c7, %c0_18, %c0_19] : memref<8x8x384xbf16, #tpu.memory_space<vmem>>, vector<1x8x384xbf16>
    %42 = vector.shape_cast %41 : vector<1x8x384xbf16> to vector<8x384xbf16>
    %43 = arith.extf %42 : vector<8x384xbf16> to vector<8x384xf32>
    %44 = arith.truncf %8 : vector<8x128xf32> to vector<8x128xbf16>
    %cst_20 = arith.constant dense<0.000000e+00> : vector<8x384xf32>
    %45 = tpu.matmul %44, %4, %cst_20 {dimension_numbers = #tpu.dot_dimension_numbers<[1], [0], [0], [1], [0, 0, 1, 1], [], []>} : vector<8x128xbf16>, vector<128x384xbf16>, vector<8x384xf32> -> vector<8x384xf32>
    %46 = vector.extract_strided_slice %43 {offsets = [0, 0], sizes = [8, 128], strides = [1, 1]} : vector<8x384xf32> to vector<8x128xf32>
    %47 = vector.extract_strided_slice %45 {offsets = [0, 0], sizes = [8, 128], strides = [1, 1]} : vector<8x384xf32> to vector<8x128xf32>
    %48 = arith.addf %46, %47 : vector<8x128xf32>
    %49 = arith.negf %48 : vector<8x128xf32>
    %50 = math.exp %49 : vector<8x128xf32>
    %cst_21 = arith.constant 1.000000e+00 : f32
    %51 = vector.broadcast %cst_21 : f32 to vector<8x128xf32>
    %52 = arith.addf %51, %50 : vector<8x128xf32>
    %53 = arith.divf %51, %52 : vector<8x128xf32>
    %54 = vector.extract_strided_slice %43 {offsets = [0, 128], sizes = [8, 128], strides = [1, 1]} : vector<8x384xf32> to vector<8x128xf32>
    %55 = vector.extract_strided_slice %45 {offsets = [0, 128], sizes = [8, 128], strides = [1, 1]} : vector<8x384xf32> to vector<8x128xf32>
    %56 = arith.addf %54, %55 : vector<8x128xf32>
    %57 = arith.negf %56 : vector<8x128xf32>
    %58 = math.exp %57 : vector<8x128xf32>
    %cst_22 = arith.constant 1.000000e+00 : f32
    %59 = vector.broadcast %cst_22 : f32 to vector<8x128xf32>
    %60 = arith.addf %59, %58 : vector<8x128xf32>
    %61 = arith.divf %59, %60 : vector<8x128xf32>
    %62 = vector.extract_strided_slice %43 {offsets = [0, 256], sizes = [8, 128], strides = [1, 1]} : vector<8x384xf32> to vector<8x128xf32>
    %63 = vector.extract_strided_slice %45 {offsets = [0, 256], sizes = [8, 128], strides = [1, 1]} : vector<8x384xf32> to vector<8x128xf32>
    %64 = arith.addf %63, %6 : vector<8x128xf32>
    %65 = arith.mulf %53, %64 : vector<8x128xf32>
    %66 = arith.addf %62, %65 : vector<8x128xf32>
    %67 = math.tanh %66 : vector<8x128xf32>
    %cst_23 = arith.constant 1.000000e+00 : f32
    %68 = vector.broadcast %cst_23 : f32 to vector<8x128xf32>
    %69 = arith.subf %68, %61 : vector<8x128xf32>
    %70 = arith.mulf %69, %67 : vector<8x128xf32>
    %71 = arith.mulf %61, %8 : vector<8x128xf32>
    %72 = arith.addf %70, %71 : vector<8x128xf32>
    %c0_24 = arith.constant 0 : index
    %c0_25 = arith.constant 0 : index
    %c0_26 = arith.constant 0 : index
    %73 = vector.load %arg9[%c0_24, %c0_25, %c0_26] : memref<8x8x128xf32, #tpu.memory_space<vmem>>, vector<1x8x128xf32>
    %74 = vector.shape_cast %73 : vector<1x8x128xf32> to vector<8x128xf32>
    %75 = vector.shape_cast %40 : vector<8x128xf32> to vector<1x8x128xf32>
    tpu.vector_store %arg9[%c0_24, %c0_25, %c0_26], %75 {strides = array<i32>} : memref<8x8x128xf32, #tpu.memory_space<vmem>>, vector<1x8x128xf32>,
    %c7_27 = arith.constant 7 : index
    %c0_28 = arith.constant 0 : index
    %c0_29 = arith.constant 0 : index
    %76 = vector.load %arg10[%c7_27, %c0_28, %c0_29] : memref<8x8x128xf32, #tpu.memory_space<vmem>>, vector<1x8x128xf32>
    %77 = vector.shape_cast %76 : vector<1x8x128xf32> to vector<8x128xf32>
    %78 = vector.shape_cast %72 : vector<8x128xf32> to vector<1x8x128xf32>
    tpu.vector_store %arg10[%c7_27, %c0_28, %c0_29], %78 {strides = array<i32>} : memref<8x8x128xf32, #tpu.memory_space<vmem>>, vector<1x8x128xf32>,
    %c1 = arith.constant 1 : index
    %c0_30 = arith.constant 0 : index
    %c0_31 = arith.constant 0 : index
    %79 = vector.load %arg1[%c1, %c0_30, %c0_31] : memref<8x8x384xbf16, #tpu.memory_space<vmem>>, vector<1x8x384xbf16>
    %80 = vector.shape_cast %79 : vector<1x8x384xbf16> to vector<8x384xbf16>
    %81 = arith.extf %80 : vector<8x384xbf16> to vector<8x384xf32>
    %82 = arith.truncf %40 : vector<8x128xf32> to vector<8x128xbf16>
    %cst_32 = arith.constant dense<0.000000e+00> : vector<8x384xf32>
    %83 = tpu.matmul %82, %3, %cst_32 {dimension_numbers = #tpu.dot_dimension_numbers<[1], [0], [0], [1], [0, 0, 1, 1], [], []>} : vector<8x128xbf16>, vector<128x384xbf16>, vector<8x384xf32> -> vector<8x384xf32>
    %84 = vector.extract_strided_slice %81 {offsets = [0, 0], sizes = [8, 128], strides = [1, 1]} : vector<8x384xf32> to vector<8x128xf32>
    %85 = vector.extract_strided_slice %83 {offsets = [0, 0], sizes = [8, 128], strides = [1, 1]} : vector<8x384xf32> to vector<8x128xf32>
    %86 = arith.addf %84, %85 : vector<8x128xf32>
    %87 = arith.negf %86 : vector<8x128xf32>
    %88 = math.exp %87 : vector<8x128xf32>
    %cst_33 = arith.constant 1.000000e+00 : f32
    %89 = vector.broadcast %cst_33 : f32 to vector<8x128xf32>
    %90 = arith.addf %89, %88 : vector<8x128xf32>
    %91 = arith.divf %89, %90 : vector<8x128xf32>
    %92 = vector.extract_strided_slice %81 {offsets = [0, 128], sizes = [8, 128], strides = [1, 1]} : vector<8x384xf32> to vector<8x128xf32>
    %93 = vector.extract_strided_slice %83 {offsets = [0, 128], sizes = [8, 128], strides = [1, 1]} : vector<8x384xf32> to vector<8x128xf32>
    %94 = arith.addf %92, %93 : vector<8x128xf32>
    %95 = arith.negf %94 : vector<8x128xf32>
    %96 = math.exp %95 : vector<8x128xf32>
    %cst_34 = arith.constant 1.000000e+00 : f32
    %97 = vector.broadcast %cst_34 : f32 to vector<8x128xf32>
    %98 = arith.addf %97, %96 : vector<8x128xf32>
    %99 = arith.divf %97, %98 : vector<8x128xf32>
    %100 = vector.extract_strided_slice %81 {offsets = [0, 256], sizes = [8, 128], strides = [1, 1]} : vector<8x384xf32> to vector<8x128xf32>
    %101 = vector.extract_strided_slice %83 {offsets = [0, 256], sizes = [8, 128], strides = [1, 1]} : vector<8x384xf32> to vector<8x128xf32>
    %102 = arith.addf %101, %5 : vector<8x128xf32>
    %103 = arith.mulf %91, %102 : vector<8x128xf32>
    %104 = arith.addf %100, %103 : vector<8x128xf32>
    %105 = math.tanh %104 : vector<8x128xf32>
    %cst_35 = arith.constant 1.000000e+00 : f32
    %106 = vector.broadcast %cst_35 : f32 to vector<8x128xf32>
    %107 = arith.subf %106, %99 : vector<8x128xf32>
    %108 = arith.mulf %107, %105 : vector<8x128xf32>
    %109 = arith.mulf %99, %40 : vector<8x128xf32>
    %110 = arith.addf %108, %109 : vector<8x128xf32>
    %c6 = arith.constant 6 : index
    %c0_36 = arith.constant 0 : index
    %c0_37 = arith.constant 0 : index
    %111 = vector.load %arg2[%c6, %c0_36, %c0_37] : memref<8x8x384xbf16, #tpu.memory_space<vmem>>, vector<1x8x384xbf16>
    %112 = vector.shape_cast %111 : vector<1x8x384xbf16> to vector<8x384xbf16>
    %113 = arith.extf %112 : vector<8x384xbf16> to vector<8x384xf32>
    %114 = arith.truncf %72 : vector<8x128xf32> to vector<8x128xbf16>
    %cst_38 = arith.constant dense<0.000000e+00> : vector<8x384xf32>
    %115 = tpu.matmul %114, %4, %cst_38 {dimension_numbers = #tpu.dot_dimension_numbers<[1], [0], [0], [1], [0, 0, 1, 1], [], []>} : vector<8x128xbf16>, vector<128x384xbf16>, vector<8x384xf32> -> vector<8x384xf32>
    %116 = vector.extract_strided_slice %113 {offsets = [0, 0], sizes = [8, 128], strides = [1, 1]} : vector<8x384xf32> to vector<8x128xf32>
    %117 = vector.extract_strided_slice %115 {offsets = [0, 0], sizes = [8, 128], strides = [1, 1]} : vector<8x384xf32> to vector<8x128xf32>
    %118 = arith.addf %116, %117 : vector<8x128xf32>
    %119 = arith.negf %118 : vector<8x128xf32>
    %120 = math.exp %119 : vector<8x128xf32>
    %cst_39 = arith.constant 1.000000e+00 : f32
    %121 = vector.broadcast %cst_39 : f32 to vector<8x128xf32>
    %122 = arith.addf %121, %120 : vector<8x128xf32>
    %123 = arith.divf %121, %122 : vector<8x128xf32>
    %124 = vector.extract_strided_slice %113 {offsets = [0, 128], sizes = [8, 128], strides = [1, 1]} : vector<8x384xf32> to vector<8x128xf32>
    %125 = vector.extract_strided_slice %115 {offsets = [0, 128], sizes = [8, 128], strides = [1, 1]} : vector<8x384xf32> to vector<8x128xf32>
    %126 = arith.addf %124, %125 : vector<8x128xf32>
    %127 = arith.negf %126 : vector<8x128xf32>
    %128 = math.exp %127 : vector<8x128xf32>
    %cst_40 = arith.constant 1.000000e+00 : f32
    %129 = vector.broadcast %cst_40 : f32 to vector<8x128xf32>
    %130 = arith.addf %129, %128 : vector<8x128xf32>
    %131 = arith.divf %129, %130 : vector<8x128xf32>
    %132 = vector.extract_strided_slice %113 {offsets = [0, 256], sizes = [8, 128], strides = [1, 1]} : vector<8x384xf32> to vector<8x128xf32>
    %133 = vector.extract_strided_slice %115 {offsets = [0, 256], sizes = [8, 128], strides = [1, 1]} : vector<8x384xf32> to vector<8x128xf32>
    %134 = arith.addf %133, %6 : vector<8x128xf32>
    %135 = arith.mulf %123, %134 : vector<8x128xf32>
    %136 = arith.addf %132, %135 : vector<8x128xf32>
    %137 = math.tanh %136 : vector<8x128xf32>
    %cst_41 = arith.constant 1.000000e+00 : f32
    %138 = vector.broadcast %cst_41 : f32 to vector<8x128xf32>
    %139 = arith.subf %138, %131 : vector<8x128xf32>
    %140 = arith.mulf %139, %137 : vector<8x128xf32>
    %141 = arith.mulf %131, %72 : vector<8x128xf32>
    %142 = arith.addf %140, %141 : vector<8x128xf32>
    %c1_42 = arith.constant 1 : index
    %c0_43 = arith.constant 0 : index
    %c0_44 = arith.constant 0 : index
    %143 = vector.load %arg9[%c1_42, %c0_43, %c0_44] : memref<8x8x128xf32, #tpu.memory_space<vmem>>, vector<1x8x128xf32>
    %144 = vector.shape_cast %143 : vector<1x8x128xf32> to vector<8x128xf32>
    %145 = vector.shape_cast %110 : vector<8x128xf32> to vector<1x8x128xf32>
    tpu.vector_store %arg9[%c1_42, %c0_43, %c0_44], %145 {strides = array<i32>} : memref<8x8x128xf32, #tpu.memory_space<vmem>>, vector<1x8x128xf32>,
    %c6_45 = arith.constant 6 : index
    %c0_46 = arith.constant 0 : index
    %c0_47 = arith.constant 0 : index
    %146 = vector.load %arg10[%c6_45, %c0_46, %c0_47] : memref<8x8x128xf32, #tpu.memory_space<vmem>>, vector<1x8x128xf32>
    %147 = vector.shape_cast %146 : vector<1x8x128xf32> to vector<8x128xf32>
    %148 = vector.shape_cast %142 : vector<8x128xf32> to vector<1x8x128xf32>
    tpu.vector_store %arg10[%c6_45, %c0_46, %c0_47], %148 {strides = array<i32>} : memref<8x8x128xf32, #tpu.memory_space<vmem>>, vector<1x8x128xf32>,
    %c2 = arith.constant 2 : index
    %c0_48 = arith.constant 0 : index
    %c0_49 = arith.constant 0 : index
    %149 = vector.load %arg1[%c2, %c0_48, %c0_49] : memref<8x8x384xbf16, #tpu.memory_space<vmem>>, vector<1x8x384xbf16>
    %150 = vector.shape_cast %149 : vector<1x8x384xbf16> to vector<8x384xbf16>
    %151 = arith.extf %150 : vector<8x384xbf16> to vector<8x384xf32>
    %152 = arith.truncf %110 : vector<8x128xf32> to vector<8x128xbf16>
    %cst_50 = arith.constant dense<0.000000e+00> : vector<8x384xf32>
    %153 = tpu.matmul %152, %3, %cst_50 {dimension_numbers = #tpu.dot_dimension_numbers<[1], [0], [0], [1], [0, 0, 1, 1], [], []>} : vector<8x128xbf16>, vector<128x384xbf16>, vector<8x384xf32> -> vector<8x384xf32>
    %154 = vector.extract_strided_slice %151 {offsets = [0, 0], sizes = [8, 128], strides = [1, 1]} : vector<8x384xf32> to vector<8x128xf32>
    %155 = vector.extract_strided_slice %153 {offsets = [0, 0], sizes = [8, 128], strides = [1, 1]} : vector<8x384xf32> to vector<8x128xf32>
    %156 = arith.addf %154, %155 : vector<8x128xf32>
    %157 = arith.negf %156 : vector<8x128xf32>
    %158 = math.exp %157 : vector<8x128xf32>
    %cst_51 = arith.constant 1.000000e+00 : f32
    %159 = vector.broadcast %cst_51 : f32 to vector<8x128xf32>
    %160 = arith.addf %159, %158 : vector<8x128xf32>
    %161 = arith.divf %159, %160 : vector<8x128xf32>
    %162 = vector.extract_strided_slice %151 {offsets = [0, 128], sizes = [8, 128], strides = [1, 1]} : vector<8x384xf32> to vector<8x128xf32>
    %163 = vector.extract_strided_slice %153 {offsets = [0, 128], sizes = [8, 128], strides = [1, 1]} : vector<8x384xf32> to vector<8x128xf32>
    %164 = arith.addf %162, %163 : vector<8x128xf32>
    %165 = arith.negf %164 : vector<8x128xf32>
    %166 = math.exp %165 : vector<8x128xf32>
    %cst_52 = arith.constant 1.000000e+00 : f32
    %167 = vector.broadcast %cst_52 : f32 to vector<8x128xf32>
    %168 = arith.addf %167, %166 : vector<8x128xf32>
    %169 = arith.divf %167, %168 : vector<8x128xf32>
    %170 = vector.extract_strided_slice %151 {offsets = [0, 256], sizes = [8, 128], strides = [1, 1]} : vector<8x384xf32> to vector<8x128xf32>
    %171 = vector.extract_strided_slice %153 {offsets = [0, 256], sizes = [8, 128], strides = [1, 1]} : vector<8x384xf32> to vector<8x128xf32>
    %172 = arith.addf %171, %5 : vector<8x128xf32>
    %173 = arith.mulf %161, %172 : vector<8x128xf32>
    %174 = arith.addf %170, %173 : vector<8x128xf32>
    %175 = math.tanh %174 : vector<8x128xf32>
    %cst_53 = arith.constant 1.000000e+00 : f32
    %176 = vector.broadcast %cst_53 : f32 to vector<8x128xf32>
    %177 = arith.subf %176, %169 : vector<8x128xf32>
    %178 = arith.mulf %177, %175 : vector<8x128xf32>
    %179 = arith.mulf %169, %110 : vector<8x128xf32>
    %180 = arith.addf %178, %179 : vector<8x128xf32>
    %c5 = arith.constant 5 : index
    %c0_54 = arith.constant 0 : index
    %c0_55 = arith.constant 0 : index
    %181 = vector.load %arg2[%c5, %c0_54, %c0_55] : memref<8x8x384xbf16, #tpu.memory_space<vmem>>, vector<1x8x384xbf16>
    %182 = vector.shape_cast %181 : vector<1x8x384xbf16> to vector<8x384xbf16>
    %183 = arith.extf %182 : vector<8x384xbf16> to vector<8x384xf32>
    %184 = arith.truncf %142 : vector<8x128xf32> to vector<8x128xbf16>
    %cst_56 = arith.constant dense<0.000000e+00> : vector<8x384xf32>
    %185 = tpu.matmul %184, %4, %cst_56 {dimension_numbers = #tpu.dot_dimension_numbers<[1], [0], [0], [1], [0, 0, 1, 1], [], []>} : vector<8x128xbf16>, vector<128x384xbf16>, vector<8x384xf32> -> vector<8x384xf32>
    %186 = vector.extract_strided_slice %183 {offsets = [0, 0], sizes = [8, 128], strides = [1, 1]} : vector<8x384xf32> to vector<8x128xf32>
    %187 = vector.extract_strided_slice %185 {offsets = [0, 0], sizes = [8, 128], strides = [1, 1]} : vector<8x384xf32> to vector<8x128xf32>
    %188 = arith.addf %186, %187 : vector<8x128xf32>
    %189 = arith.negf %188 : vector<8x128xf32>
    %190 = math.exp %189 : vector<8x128xf32>
    %cst_57 = arith.constant 1.000000e+00 : f32
    %191 = vector.broadcast %cst_57 : f32 to vector<8x128xf32>
    %192 = arith.addf %191, %190 : vector<8x128xf32>
    %193 = arith.divf %191, %192 : vector<8x128xf32>
    %194 = vector.extract_strided_slice %183 {offsets = [0, 128], sizes = [8, 128], strides = [1, 1]} : vector<8x384xf32> to vector<8x128xf32>
    %195 = vector.extract_strided_slice %185 {offsets = [0, 128], sizes = [8, 128], strides = [1, 1]} : vector<8x384xf32> to vector<8x128xf32>
    %196 = arith.addf %194, %195 : vector<8x128xf32>
    %197 = arith.negf %196 : vector<8x128xf32>
    %198 = math.exp %197 : vector<8x128xf32>
    %cst_58 = arith.constant 1.000000e+00 : f32
    %199 = vector.broadcast %cst_58 : f32 to vector<8x128xf32>
    %200 = arith.addf %199, %198 : vector<8x128xf32>
    %201 = arith.divf %199, %200 : vector<8x128xf32>
    %202 = vector.extract_strided_slice %183 {offsets = [0, 256], sizes = [8, 128], strides = [1, 1]} : vector<8x384xf32> to vector<8x128xf32>
    %203 = vector.extract_strided_slice %185 {offsets = [0, 256], sizes = [8, 128], strides = [1, 1]} : vector<8x384xf32> to vector<8x128xf32>
    %204 = arith.addf %203, %6 : vector<8x128xf32>
    %205 = arith.mulf %193, %204 : vector<8x128xf32>
    %206 = arith.addf %202, %205 : vector<8x128xf32>
    %207 = math.tanh %206 : vector<8x128xf32>
    %cst_59 = arith.constant 1.000000e+00 : f32
    %208 = vector.broadcast %cst_59 : f32 to vector<8x128xf32>
    %209 = arith.subf %208, %201 : vector<8x128xf32>
    %210 = arith.mulf %209, %207 : vector<8x128xf32>
    %211 = arith.mulf %201, %142 : vector<8x128xf32>
    %212 = arith.addf %210, %211 : vector<8x128xf32>
    %c2_60 = arith.constant 2 : index
    %c0_61 = arith.constant 0 : index
    %c0_62 = arith.constant 0 : index
    %213 = vector.load %arg9[%c2_60, %c0_61, %c0_62] : memref<8x8x128xf32, #tpu.memory_space<vmem>>, vector<1x8x128xf32>
    %214 = vector.shape_cast %213 : vector<1x8x128xf32> to vector<8x128xf32>
    %215 = vector.shape_cast %180 : vector<8x128xf32> to vector<1x8x128xf32>
    tpu.vector_store %arg9[%c2_60, %c0_61, %c0_62], %215 {strides = array<i32>} : memref<8x8x128xf32, #tpu.memory_space<vmem>>, vector<1x8x128xf32>,
    %c5_63 = arith.constant 5 : index
    %c0_64 = arith.constant 0 : index
    %c0_65 = arith.constant 0 : index
    %216 = vector.load %arg10[%c5_63, %c0_64, %c0_65] : memref<8x8x128xf32, #tpu.memory_space<vmem>>, vector<1x8x128xf32>
    %217 = vector.shape_cast %216 : vector<1x8x128xf32> to vector<8x128xf32>
    %218 = vector.shape_cast %212 : vector<8x128xf32> to vector<1x8x128xf32>
    tpu.vector_store %arg10[%c5_63, %c0_64, %c0_65], %218 {strides = array<i32>} : memref<8x8x128xf32, #tpu.memory_space<vmem>>, vector<1x8x128xf32>,
    %c3 = arith.constant 3 : index
    %c0_66 = arith.constant 0 : index
    %c0_67 = arith.constant 0 : index
    %219 = vector.load %arg1[%c3, %c0_66, %c0_67] : memref<8x8x384xbf16, #tpu.memory_space<vmem>>, vector<1x8x384xbf16>
    %220 = vector.shape_cast %219 : vector<1x8x384xbf16> to vector<8x384xbf16>
    %221 = arith.extf %220 : vector<8x384xbf16> to vector<8x384xf32>
    %222 = arith.truncf %180 : vector<8x128xf32> to vector<8x128xbf16>
    %cst_68 = arith.constant dense<0.000000e+00> : vector<8x384xf32>
    %223 = tpu.matmul %222, %3, %cst_68 {dimension_numbers = #tpu.dot_dimension_numbers<[1], [0], [0], [1], [0, 0, 1, 1], [], []>} : vector<8x128xbf16>, vector<128x384xbf16>, vector<8x384xf32> -> vector<8x384xf32>
    %224 = vector.extract_strided_slice %221 {offsets = [0, 0], sizes = [8, 128], strides = [1, 1]} : vector<8x384xf32> to vector<8x128xf32>
    %225 = vector.extract_strided_slice %223 {offsets = [0, 0], sizes = [8, 128], strides = [1, 1]} : vector<8x384xf32> to vector<8x128xf32>
    %226 = arith.addf %224, %225 : vector<8x128xf32>
    %227 = arith.negf %226 : vector<8x128xf32>
    %228 = math.exp %227 : vector<8x128xf32>
    %cst_69 = arith.constant 1.000000e+00 : f32
    %229 = vector.broadcast %cst_69 : f32 to vector<8x128xf32>
    %230 = arith.addf %229, %228 : vector<8x128xf32>
    %231 = arith.divf %229, %230 : vector<8x128xf32>
    %232 = vector.extract_strided_slice %221 {offsets = [0, 128], sizes = [8, 128], strides = [1, 1]} : vector<8x384xf32> to vector<8x128xf32>
    %233 = vector.extract_strided_slice %223 {offsets = [0, 128], sizes = [8, 128], strides = [1, 1]} : vector<8x384xf32> to vector<8x128xf32>
    %234 = arith.addf %232, %233 : vector<8x128xf32>
    %235 = arith.negf %234 : vector<8x128xf32>
    %236 = math.exp %235 : vector<8x128xf32>
    %cst_70 = arith.constant 1.000000e+00 : f32
    %237 = vector.broadcast %cst_70 : f32 to vector<8x128xf32>
    %238 = arith.addf %237, %236 : vector<8x128xf32>
    %239 = arith.divf %237, %238 : vector<8x128xf32>
    %240 = vector.extract_strided_slice %221 {offsets = [0, 256], sizes = [8, 128], strides = [1, 1]} : vector<8x384xf32> to vector<8x128xf32>
    %241 = vector.extract_strided_slice %223 {offsets = [0, 256], sizes = [8, 128], strides = [1, 1]} : vector<8x384xf32> to vector<8x128xf32>
    %242 = arith.addf %241, %5 : vector<8x128xf32>
    %243 = arith.mulf %231, %242 : vector<8x128xf32>
    %244 = arith.addf %240, %243 : vector<8x128xf32>
    %245 = math.tanh %244 : vector<8x128xf32>
    %cst_71 = arith.constant 1.000000e+00 : f32
    %246 = vector.broadcast %cst_71 : f32 to vector<8x128xf32>
    %247 = arith.subf %246, %239 : vector<8x128xf32>
    %248 = arith.mulf %247, %245 : vector<8x128xf32>
    %249 = arith.mulf %239, %180 : vector<8x128xf32>
    %250 = arith.addf %248, %249 : vector<8x128xf32>
    %c4 = arith.constant 4 : index
    %c0_72 = arith.constant 0 : index
    %c0_73 = arith.constant 0 : index
    %251 = vector.load %arg2[%c4, %c0_72, %c0_73] : memref<8x8x384xbf16, #tpu.memory_space<vmem>>, vector<1x8x384xbf16>
    %252 = vector.shape_cast %251 : vector<1x8x384xbf16> to vector<8x384xbf16>
    %253 = arith.extf %252 : vector<8x384xbf16> to vector<8x384xf32>
    %254 = arith.truncf %212 : vector<8x128xf32> to vector<8x128xbf16>
    %cst_74 = arith.constant dense<0.000000e+00> : vector<8x384xf32>
    %255 = tpu.matmul %254, %4, %cst_74 {dimension_numbers = #tpu.dot_dimension_numbers<[1], [0], [0], [1], [0, 0, 1, 1], [], []>} : vector<8x128xbf16>, vector<128x384xbf16>, vector<8x384xf32> -> vector<8x384xf32>
    %256 = vector.extract_strided_slice %253 {offsets = [0, 0], sizes = [8, 128], strides = [1, 1]} : vector<8x384xf32> to vector<8x128xf32>
    %257 = vector.extract_strided_slice %255 {offsets = [0, 0], sizes = [8, 128], strides = [1, 1]} : vector<8x384xf32> to vector<8x128xf32>
    %258 = arith.addf %256, %257 : vector<8x128xf32>
    %259 = arith.negf %258 : vector<8x128xf32>
    %260 = math.exp %259 : vector<8x128xf32>
    %cst_75 = arith.constant 1.000000e+00 : f32
    %261 = vector.broadcast %cst_75 : f32 to vector<8x128xf32>
    %262 = arith.addf %261, %260 : vector<8x128xf32>
    %263 = arith.divf %261, %262 : vector<8x128xf32>
    %264 = vector.extract_strided_slice %253 {offsets = [0, 128], sizes = [8, 128], strides = [1, 1]} : vector<8x384xf32> to vector<8x128xf32>
    %265 = vector.extract_strided_slice %255 {offsets = [0, 128], sizes = [8, 128], strides = [1, 1]} : vector<8x384xf32> to vector<8x128xf32>
    %266 = arith.addf %264, %265 : vector<8x128xf32>
    %267 = arith.negf %266 : vector<8x128xf32>
    %268 = math.exp %267 : vector<8x128xf32>
    %cst_76 = arith.constant 1.000000e+00 : f32
    %269 = vector.broadcast %cst_76 : f32 to vector<8x128xf32>
    %270 = arith.addf %269, %268 : vector<8x128xf32>
    %271 = arith.divf %269, %270 : vector<8x128xf32>
    %272 = vector.extract_strided_slice %253 {offsets = [0, 256], sizes = [8, 128], strides = [1, 1]} : vector<8x384xf32> to vector<8x128xf32>
    %273 = vector.extract_strided_slice %255 {offsets = [0, 256], sizes = [8, 128], strides = [1, 1]} : vector<8x384xf32> to vector<8x128xf32>
    %274 = arith.addf %273, %6 : vector<8x128xf32>
    %275 = arith.mulf %263, %274 : vector<8x128xf32>
    %276 = arith.addf %272, %275 : vector<8x128xf32>
    %277 = math.tanh %276 : vector<8x128xf32>
    %cst_77 = arith.constant 1.000000e+00 : f32
    %278 = vector.broadcast %cst_77 : f32 to vector<8x128xf32>
    %279 = arith.subf %278, %271 : vector<8x128xf32>
    %280 = arith.mulf %279, %277 : vector<8x128xf32>
    %281 = arith.mulf %271, %212 : vector<8x128xf32>
    %282 = arith.addf %280, %281 : vector<8x128xf32>
    %c3_78 = arith.constant 3 : index
    %c0_79 = arith.constant 0 : index
    %c0_80 = arith.constant 0 : index
    %283 = vector.load %arg9[%c3_78, %c0_79, %c0_80] : memref<8x8x128xf32, #tpu.memory_space<vmem>>, vector<1x8x128xf32>
    %284 = vector.shape_cast %283 : vector<1x8x128xf32> to vector<8x128xf32>
    %285 = vector.shape_cast %250 : vector<8x128xf32> to vector<1x8x128xf32>
    tpu.vector_store %arg9[%c3_78, %c0_79, %c0_80], %285 {strides = array<i32>} : memref<8x8x128xf32, #tpu.memory_space<vmem>>, vector<1x8x128xf32>,
    %c4_81 = arith.constant 4 : index
    %c0_82 = arith.constant 0 : index
    %c0_83 = arith.constant 0 : index
    %286 = vector.load %arg10[%c4_81, %c0_82, %c0_83] : memref<8x8x128xf32, #tpu.memory_space<vmem>>, vector<1x8x128xf32>
    %287 = vector.shape_cast %286 : vector<1x8x128xf32> to vector<8x128xf32>
    %288 = vector.shape_cast %282 : vector<8x128xf32> to vector<1x8x128xf32>
    tpu.vector_store %arg10[%c4_81, %c0_82, %c0_83], %288 {strides = array<i32>} : memref<8x8x128xf32, #tpu.memory_space<vmem>>, vector<1x8x128xf32>,
    %c4_84 = arith.constant 4 : index
    %c0_85 = arith.constant 0 : index
    %c0_86 = arith.constant 0 : index
    %289 = vector.load %arg1[%c4_84, %c0_85, %c0_86] : memref<8x8x384xbf16, #tpu.memory_space<vmem>>, vector<1x8x384xbf16>
    %290 = vector.shape_cast %289 : vector<1x8x384xbf16> to vector<8x384xbf16>
    %291 = arith.extf %290 : vector<8x384xbf16> to vector<8x384xf32>
    %292 = arith.truncf %250 : vector<8x128xf32> to vector<8x128xbf16>
    %cst_87 = arith.constant dense<0.000000e+00> : vector<8x384xf32>
    %293 = tpu.matmul %292, %3, %cst_87 {dimension_numbers = #tpu.dot_dimension_numbers<[1], [0], [0], [1], [0, 0, 1, 1], [], []>} : vector<8x128xbf16>, vector<128x384xbf16>, vector<8x384xf32> -> vector<8x384xf32>
    %294 = vector.extract_strided_slice %291 {offsets = [0, 0], sizes = [8, 128], strides = [1, 1]} : vector<8x384xf32> to vector<8x128xf32>
    %295 = vector.extract_strided_slice %293 {offsets = [0, 0], sizes = [8, 128], strides = [1, 1]} : vector<8x384xf32> to vector<8x128xf32>
    %296 = arith.addf %294, %295 : vector<8x128xf32>
    %297 = arith.negf %296 : vector<8x128xf32>
    %298 = math.exp %297 : vector<8x128xf32>
    %cst_88 = arith.constant 1.000000e+00 : f32
    %299 = vector.broadcast %cst_88 : f32 to vector<8x128xf32>
    %300 = arith.addf %299, %298 : vector<8x128xf32>
    %301 = arith.divf %299, %300 : vector<8x128xf32>
    %302 = vector.extract_strided_slice %291 {offsets = [0, 128], sizes = [8, 128], strides = [1, 1]} : vector<8x384xf32> to vector<8x128xf32>
    %303 = vector.extract_strided_slice %293 {offsets = [0, 128], sizes = [8, 128], strides = [1, 1]} : vector<8x384xf32> to vector<8x128xf32>
    %304 = arith.addf %302, %303 : vector<8x128xf32>
    %305 = arith.negf %304 : vector<8x128xf32>
    %306 = math.exp %305 : vector<8x128xf32>
    %cst_89 = arith.constant 1.000000e+00 : f32
    %307 = vector.broadcast %cst_89 : f32 to vector<8x128xf32>
    %308 = arith.addf %307, %306 : vector<8x128xf32>
    %309 = arith.divf %307, %308 : vector<8x128xf32>
    %310 = vector.extract_strided_slice %291 {offsets = [0, 256], sizes = [8, 128], strides = [1, 1]} : vector<8x384xf32> to vector<8x128xf32>
    %311 = vector.extract_strided_slice %293 {offsets = [0, 256], sizes = [8, 128], strides = [1, 1]} : vector<8x384xf32> to vector<8x128xf32>
    %312 = arith.addf %311, %5 : vector<8x128xf32>
    %313 = arith.mulf %301, %312 : vector<8x128xf32>
    %314 = arith.addf %310, %313 : vector<8x128xf32>
    %315 = math.tanh %314 : vector<8x128xf32>
    %cst_90 = arith.constant 1.000000e+00 : f32
    %316 = vector.broadcast %cst_90 : f32 to vector<8x128xf32>
    %317 = arith.subf %316, %309 : vector<8x128xf32>
    %318 = arith.mulf %317, %315 : vector<8x128xf32>
    %319 = arith.mulf %309, %250 : vector<8x128xf32>
    %320 = arith.addf %318, %319 : vector<8x128xf32>
    %c3_91 = arith.constant 3 : index
    %c0_92 = arith.constant 0 : index
    %c0_93 = arith.constant 0 : index
    %321 = vector.load %arg2[%c3_91, %c0_92, %c0_93] : memref<8x8x384xbf16, #tpu.memory_space<vmem>>, vector<1x8x384xbf16>
    %322 = vector.shape_cast %321 : vector<1x8x384xbf16> to vector<8x384xbf16>
    %323 = arith.extf %322 : vector<8x384xbf16> to vector<8x384xf32>
    %324 = arith.truncf %282 : vector<8x128xf32> to vector<8x128xbf16>
    %cst_94 = arith.constant dense<0.000000e+00> : vector<8x384xf32>
    %325 = tpu.matmul %324, %4, %cst_94 {dimension_numbers = #tpu.dot_dimension_numbers<[1], [0], [0], [1], [0, 0, 1, 1], [], []>} : vector<8x128xbf16>, vector<128x384xbf16>, vector<8x384xf32> -> vector<8x384xf32>
    %326 = vector.extract_strided_slice %323 {offsets = [0, 0], sizes = [8, 128], strides = [1, 1]} : vector<8x384xf32> to vector<8x128xf32>
    %327 = vector.extract_strided_slice %325 {offsets = [0, 0], sizes = [8, 128], strides = [1, 1]} : vector<8x384xf32> to vector<8x128xf32>
    %328 = arith.addf %326, %327 : vector<8x128xf32>
    %329 = arith.negf %328 : vector<8x128xf32>
    %330 = math.exp %329 : vector<8x128xf32>
    %cst_95 = arith.constant 1.000000e+00 : f32
    %331 = vector.broadcast %cst_95 : f32 to vector<8x128xf32>
    %332 = arith.addf %331, %330 : vector<8x128xf32>
    %333 = arith.divf %331, %332 : vector<8x128xf32>
    %334 = vector.extract_strided_slice %323 {offsets = [0, 128], sizes = [8, 128], strides = [1, 1]} : vector<8x384xf32> to vector<8x128xf32>
    %335 = vector.extract_strided_slice %325 {offsets = [0, 128], sizes = [8, 128], strides = [1, 1]} : vector<8x384xf32> to vector<8x128xf32>
    %336 = arith.addf %334, %335 : vector<8x128xf32>
    %337 = arith.negf %336 : vector<8x128xf32>
    %338 = math.exp %337 : vector<8x128xf32>
    %cst_96 = arith.constant 1.000000e+00 : f32
    %339 = vector.broadcast %cst_96 : f32 to vector<8x128xf32>
    %340 = arith.addf %339, %338 : vector<8x128xf32>
    %341 = arith.divf %339, %340 : vector<8x128xf32>
    %342 = vector.extract_strided_slice %323 {offsets = [0, 256], sizes = [8, 128], strides = [1, 1]} : vector<8x384xf32> to vector<8x128xf32>
    %343 = vector.extract_strided_slice %325 {offsets = [0, 256], sizes = [8, 128], strides = [1, 1]} : vector<8x384xf32> to vector<8x128xf32>
    %344 = arith.addf %343, %6 : vector<8x128xf32>
    %345 = arith.mulf %333, %344 : vector<8x128xf32>
    %346 = arith.addf %342, %345 : vector<8x128xf32>
    %347 = math.tanh %346 : vector<8x128xf32>
    %cst_97 = arith.constant 1.000000e+00 : f32
    %348 = vector.broadcast %cst_97 : f32 to vector<8x128xf32>
    %349 = arith.subf %348, %341 : vector<8x128xf32>
    %350 = arith.mulf %349, %347 : vector<8x128xf32>
    %351 = arith.mulf %341, %282 : vector<8x128xf32>
    %352 = arith.addf %350, %351 : vector<8x128xf32>
    %c4_98 = arith.constant 4 : index
    %c0_99 = arith.constant 0 : index
    %c0_100 = arith.constant 0 : index
    %353 = vector.load %arg9[%c4_98, %c0_99, %c0_100] : memref<8x8x128xf32, #tpu.memory_space<vmem>>, vector<1x8x128xf32>
    %354 = vector.shape_cast %353 : vector<1x8x128xf32> to vector<8x128xf32>
    %355 = vector.shape_cast %320 : vector<8x128xf32> to vector<1x8x128xf32>
    tpu.vector_store %arg9[%c4_98, %c0_99, %c0_100], %355 {strides = array<i32>} : memref<8x8x128xf32, #tpu.memory_space<vmem>>, vector<1x8x128xf32>,
    %c3_101 = arith.constant 3 : index
    %c0_102 = arith.constant 0 : index
    %c0_103 = arith.constant 0 : index
    %356 = vector.load %arg10[%c3_101, %c0_102, %c0_103] : memref<8x8x128xf32, #tpu.memory_space<vmem>>, vector<1x8x128xf32>
    %357 = vector.shape_cast %356 : vector<1x8x128xf32> to vector<8x128xf32>
    %358 = vector.shape_cast %352 : vector<8x128xf32> to vector<1x8x128xf32>
    tpu.vector_store %arg10[%c3_101, %c0_102, %c0_103], %358 {strides = array<i32>} : memref<8x8x128xf32, #tpu.memory_space<vmem>>, vector<1x8x128xf32>,
    %c5_104 = arith.constant 5 : index
    %c0_105 = arith.constant 0 : index
    %c0_106 = arith.constant 0 : index
    %359 = vector.load %arg1[%c5_104, %c0_105, %c0_106] : memref<8x8x384xbf16, #tpu.memory_space<vmem>>, vector<1x8x384xbf16>
    %360 = vector.shape_cast %359 : vector<1x8x384xbf16> to vector<8x384xbf16>
    %361 = arith.extf %360 : vector<8x384xbf16> to vector<8x384xf32>
    %362 = arith.truncf %320 : vector<8x128xf32> to vector<8x128xbf16>
    %cst_107 = arith.constant dense<0.000000e+00> : vector<8x384xf32>
    %363 = tpu.matmul %362, %3, %cst_107 {dimension_numbers = #tpu.dot_dimension_numbers<[1], [0], [0], [1], [0, 0, 1, 1], [], []>} : vector<8x128xbf16>, vector<128x384xbf16>, vector<8x384xf32> -> vector<8x384xf32>
    %364 = vector.extract_strided_slice %361 {offsets = [0, 0], sizes = [8, 128], strides = [1, 1]} : vector<8x384xf32> to vector<8x128xf32>
    %365 = vector.extract_strided_slice %363 {offsets = [0, 0], sizes = [8, 128], strides = [1, 1]} : vector<8x384xf32> to vector<8x128xf32>
    %366 = arith.addf %364, %365 : vector<8x128xf32>
    %367 = arith.negf %366 : vector<8x128xf32>
    %368 = math.exp %367 : vector<8x128xf32>
    %cst_108 = arith.constant 1.000000e+00 : f32
    %369 = vector.broadcast %cst_108 : f32 to vector<8x128xf32>
    %370 = arith.addf %369, %368 : vector<8x128xf32>
    %371 = arith.divf %369, %370 : vector<8x128xf32>
    %372 = vector.extract_strided_slice %361 {offsets = [0, 128], sizes = [8, 128], strides = [1, 1]} : vector<8x384xf32> to vector<8x128xf32>
    %373 = vector.extract_strided_slice %363 {offsets = [0, 128], sizes = [8, 128], strides = [1, 1]} : vector<8x384xf32> to vector<8x128xf32>
    %374 = arith.addf %372, %373 : vector<8x128xf32>
    %375 = arith.negf %374 : vector<8x128xf32>
    %376 = math.exp %375 : vector<8x128xf32>
    %cst_109 = arith.constant 1.000000e+00 : f32
    %377 = vector.broadcast %cst_109 : f32 to vector<8x128xf32>
    %378 = arith.addf %377, %376 : vector<8x128xf32>
    %379 = arith.divf %377, %378 : vector<8x128xf32>
    %380 = vector.extract_strided_slice %361 {offsets = [0, 256], sizes = [8, 128], strides = [1, 1]} : vector<8x384xf32> to vector<8x128xf32>
    %381 = vector.extract_strided_slice %363 {offsets = [0, 256], sizes = [8, 128], strides = [1, 1]} : vector<8x384xf32> to vector<8x128xf32>
    %382 = arith.addf %381, %5 : vector<8x128xf32>
    %383 = arith.mulf %371, %382 : vector<8x128xf32>
    %384 = arith.addf %380, %383 : vector<8x128xf32>
    %385 = math.tanh %384 : vector<8x128xf32>
    %cst_110 = arith.constant 1.000000e+00 : f32
    %386 = vector.broadcast %cst_110 : f32 to vector<8x128xf32>
    %387 = arith.subf %386, %379 : vector<8x128xf32>
    %388 = arith.mulf %387, %385 : vector<8x128xf32>
    %389 = arith.mulf %379, %320 : vector<8x128xf32>
    %390 = arith.addf %388, %389 : vector<8x128xf32>
    %c2_111 = arith.constant 2 : index
    %c0_112 = arith.constant 0 : index
    %c0_113 = arith.constant 0 : index
    %391 = vector.load %arg2[%c2_111, %c0_112, %c0_113] : memref<8x8x384xbf16, #tpu.memory_space<vmem>>, vector<1x8x384xbf16>
    %392 = vector.shape_cast %391 : vector<1x8x384xbf16> to vector<8x384xbf16>
    %393 = arith.extf %392 : vector<8x384xbf16> to vector<8x384xf32>
    %394 = arith.truncf %352 : vector<8x128xf32> to vector<8x128xbf16>
    %cst_114 = arith.constant dense<0.000000e+00> : vector<8x384xf32>
    %395 = tpu.matmul %394, %4, %cst_114 {dimension_numbers = #tpu.dot_dimension_numbers<[1], [0], [0], [1], [0, 0, 1, 1], [], []>} : vector<8x128xbf16>, vector<128x384xbf16>, vector<8x384xf32> -> vector<8x384xf32>
    %396 = vector.extract_strided_slice %393 {offsets = [0, 0], sizes = [8, 128], strides = [1, 1]} : vector<8x384xf32> to vector<8x128xf32>
    %397 = vector.extract_strided_slice %395 {offsets = [0, 0], sizes = [8, 128], strides = [1, 1]} : vector<8x384xf32> to vector<8x128xf32>
    %398 = arith.addf %396, %397 : vector<8x128xf32>
    %399 = arith.negf %398 : vector<8x128xf32>
    %400 = math.exp %399 : vector<8x128xf32>
    %cst_115 = arith.constant 1.000000e+00 : f32
    %401 = vector.broadcast %cst_115 : f32 to vector<8x128xf32>
    %402 = arith.addf %401, %400 : vector<8x128xf32>
    %403 = arith.divf %401, %402 : vector<8x128xf32>
    %404 = vector.extract_strided_slice %393 {offsets = [0, 128], sizes = [8, 128], strides = [1, 1]} : vector<8x384xf32> to vector<8x128xf32>
    %405 = vector.extract_strided_slice %395 {offsets = [0, 128], sizes = [8, 128], strides = [1, 1]} : vector<8x384xf32> to vector<8x128xf32>
    %406 = arith.addf %404, %405 : vector<8x128xf32>
    %407 = arith.negf %406 : vector<8x128xf32>
    %408 = math.exp %407 : vector<8x128xf32>
    %cst_116 = arith.constant 1.000000e+00 : f32
    %409 = vector.broadcast %cst_116 : f32 to vector<8x128xf32>
    %410 = arith.addf %409, %408 : vector<8x128xf32>
    %411 = arith.divf %409, %410 : vector<8x128xf32>
    %412 = vector.extract_strided_slice %393 {offsets = [0, 256], sizes = [8, 128], strides = [1, 1]} : vector<8x384xf32> to vector<8x128xf32>
    %413 = vector.extract_strided_slice %395 {offsets = [0, 256], sizes = [8, 128], strides = [1, 1]} : vector<8x384xf32> to vector<8x128xf32>
    %414 = arith.addf %413, %6 : vector<8x128xf32>
    %415 = arith.mulf %403, %414 : vector<8x128xf32>
    %416 = arith.addf %412, %415 : vector<8x128xf32>
    %417 = math.tanh %416 : vector<8x128xf32>
    %cst_117 = arith.constant 1.000000e+00 : f32
    %418 = vector.broadcast %cst_117 : f32 to vector<8x128xf32>
    %419 = arith.subf %418, %411 : vector<8x128xf32>
    %420 = arith.mulf %419, %417 : vector<8x128xf32>
    %421 = arith.mulf %411, %352 : vector<8x128xf32>
    %422 = arith.addf %420, %421 : vector<8x128xf32>
    %c5_118 = arith.constant 5 : index
    %c0_119 = arith.constant 0 : index
    %c0_120 = arith.constant 0 : index
    %423 = vector.load %arg9[%c5_118, %c0_119, %c0_120] : memref<8x8x128xf32, #tpu.memory_space<vmem>>, vector<1x8x128xf32>
    %424 = vector.shape_cast %423 : vector<1x8x128xf32> to vector<8x128xf32>
    %425 = vector.shape_cast %390 : vector<8x128xf32> to vector<1x8x128xf32>
    tpu.vector_store %arg9[%c5_118, %c0_119, %c0_120], %425 {strides = array<i32>} : memref<8x8x128xf32, #tpu.memory_space<vmem>>, vector<1x8x128xf32>,
    %c2_121 = arith.constant 2 : index
    %c0_122 = arith.constant 0 : index
    %c0_123 = arith.constant 0 : index
    %426 = vector.load %arg10[%c2_121, %c0_122, %c0_123] : memref<8x8x128xf32, #tpu.memory_space<vmem>>, vector<1x8x128xf32>
    %427 = vector.shape_cast %426 : vector<1x8x128xf32> to vector<8x128xf32>
    %428 = vector.shape_cast %422 : vector<8x128xf32> to vector<1x8x128xf32>
    tpu.vector_store %arg10[%c2_121, %c0_122, %c0_123], %428 {strides = array<i32>} : memref<8x8x128xf32, #tpu.memory_space<vmem>>, vector<1x8x128xf32>,
    %c6_124 = arith.constant 6 : index
    %c0_125 = arith.constant 0 : index
    %c0_126 = arith.constant 0 : index
    %429 = vector.load %arg1[%c6_124, %c0_125, %c0_126] : memref<8x8x384xbf16, #tpu.memory_space<vmem>>, vector<1x8x384xbf16>
    %430 = vector.shape_cast %429 : vector<1x8x384xbf16> to vector<8x384xbf16>
    %431 = arith.extf %430 : vector<8x384xbf16> to vector<8x384xf32>
    %432 = arith.truncf %390 : vector<8x128xf32> to vector<8x128xbf16>
    %cst_127 = arith.constant dense<0.000000e+00> : vector<8x384xf32>
    %433 = tpu.matmul %432, %3, %cst_127 {dimension_numbers = #tpu.dot_dimension_numbers<[1], [0], [0], [1], [0, 0, 1, 1], [], []>} : vector<8x128xbf16>, vector<128x384xbf16>, vector<8x384xf32> -> vector<8x384xf32>
    %434 = vector.extract_strided_slice %431 {offsets = [0, 0], sizes = [8, 128], strides = [1, 1]} : vector<8x384xf32> to vector<8x128xf32>
    %435 = vector.extract_strided_slice %433 {offsets = [0, 0], sizes = [8, 128], strides = [1, 1]} : vector<8x384xf32> to vector<8x128xf32>
    %436 = arith.addf %434, %435 : vector<8x128xf32>
    %437 = arith.negf %436 : vector<8x128xf32>
    %438 = math.exp %437 : vector<8x128xf32>
    %cst_128 = arith.constant 1.000000e+00 : f32
    %439 = vector.broadcast %cst_128 : f32 to vector<8x128xf32>
    %440 = arith.addf %439, %438 : vector<8x128xf32>
    %441 = arith.divf %439, %440 : vector<8x128xf32>
    %442 = vector.extract_strided_slice %431 {offsets = [0, 128], sizes = [8, 128], strides = [1, 1]} : vector<8x384xf32> to vector<8x128xf32>
    %443 = vector.extract_strided_slice %433 {offsets = [0, 128], sizes = [8, 128], strides = [1, 1]} : vector<8x384xf32> to vector<8x128xf32>
    %444 = arith.addf %442, %443 : vector<8x128xf32>
    %445 = arith.negf %444 : vector<8x128xf32>
    %446 = math.exp %445 : vector<8x128xf32>
    %cst_129 = arith.constant 1.000000e+00 : f32
    %447 = vector.broadcast %cst_129 : f32 to vector<8x128xf32>
    %448 = arith.addf %447, %446 : vector<8x128xf32>
    %449 = arith.divf %447, %448 : vector<8x128xf32>
    %450 = vector.extract_strided_slice %431 {offsets = [0, 256], sizes = [8, 128], strides = [1, 1]} : vector<8x384xf32> to vector<8x128xf32>
    %451 = vector.extract_strided_slice %433 {offsets = [0, 256], sizes = [8, 128], strides = [1, 1]} : vector<8x384xf32> to vector<8x128xf32>
    %452 = arith.addf %451, %5 : vector<8x128xf32>
    %453 = arith.mulf %441, %452 : vector<8x128xf32>
    %454 = arith.addf %450, %453 : vector<8x128xf32>
    %455 = math.tanh %454 : vector<8x128xf32>
    %cst_130 = arith.constant 1.000000e+00 : f32
    %456 = vector.broadcast %cst_130 : f32 to vector<8x128xf32>
    %457 = arith.subf %456, %449 : vector<8x128xf32>
    %458 = arith.mulf %457, %455 : vector<8x128xf32>
    %459 = arith.mulf %449, %390 : vector<8x128xf32>
    %460 = arith.addf %458, %459 : vector<8x128xf32>
    %c1_131 = arith.constant 1 : index
    %c0_132 = arith.constant 0 : index
    %c0_133 = arith.constant 0 : index
    %461 = vector.load %arg2[%c1_131, %c0_132, %c0_133] : memref<8x8x384xbf16, #tpu.memory_space<vmem>>, vector<1x8x384xbf16>
    %462 = vector.shape_cast %461 : vector<1x8x384xbf16> to vector<8x384xbf16>
    %463 = arith.extf %462 : vector<8x384xbf16> to vector<8x384xf32>
    %464 = arith.truncf %422 : vector<8x128xf32> to vector<8x128xbf16>
    %cst_134 = arith.constant dense<0.000000e+00> : vector<8x384xf32>
    %465 = tpu.matmul %464, %4, %cst_134 {dimension_numbers = #tpu.dot_dimension_numbers<[1], [0], [0], [1], [0, 0, 1, 1], [], []>} : vector<8x128xbf16>, vector<128x384xbf16>, vector<8x384xf32> -> vector<8x384xf32>
    %466 = vector.extract_strided_slice %463 {offsets = [0, 0], sizes = [8, 128], strides = [1, 1]} : vector<8x384xf32> to vector<8x128xf32>
    %467 = vector.extract_strided_slice %465 {offsets = [0, 0], sizes = [8, 128], strides = [1, 1]} : vector<8x384xf32> to vector<8x128xf32>
    %468 = arith.addf %466, %467 : vector<8x128xf32>
    %469 = arith.negf %468 : vector<8x128xf32>
    %470 = math.exp %469 : vector<8x128xf32>
    %cst_135 = arith.constant 1.000000e+00 : f32
    %471 = vector.broadcast %cst_135 : f32 to vector<8x128xf32>
    %472 = arith.addf %471, %470 : vector<8x128xf32>
    %473 = arith.divf %471, %472 : vector<8x128xf32>
    %474 = vector.extract_strided_slice %463 {offsets = [0, 128], sizes = [8, 128], strides = [1, 1]} : vector<8x384xf32> to vector<8x128xf32>
    %475 = vector.extract_strided_slice %465 {offsets = [0, 128], sizes = [8, 128], strides = [1, 1]} : vector<8x384xf32> to vector<8x128xf32>
    %476 = arith.addf %474, %475 : vector<8x128xf32>
    %477 = arith.negf %476 : vector<8x128xf32>
    %478 = math.exp %477 : vector<8x128xf32>
    %cst_136 = arith.constant 1.000000e+00 : f32
    %479 = vector.broadcast %cst_136 : f32 to vector<8x128xf32>
    %480 = arith.addf %479, %478 : vector<8x128xf32>
    %481 = arith.divf %479, %480 : vector<8x128xf32>
    %482 = vector.extract_strided_slice %463 {offsets = [0, 256], sizes = [8, 128], strides = [1, 1]} : vector<8x384xf32> to vector<8x128xf32>
    %483 = vector.extract_strided_slice %465 {offsets = [0, 256], sizes = [8, 128], strides = [1, 1]} : vector<8x384xf32> to vector<8x128xf32>
    %484 = arith.addf %483, %6 : vector<8x128xf32>
    %485 = arith.mulf %473, %484 : vector<8x128xf32>
    %486 = arith.addf %482, %485 : vector<8x128xf32>
    %487 = math.tanh %486 : vector<8x128xf32>
    %cst_137 = arith.constant 1.000000e+00 : f32
    %488 = vector.broadcast %cst_137 : f32 to vector<8x128xf32>
    %489 = arith.subf %488, %481 : vector<8x128xf32>
    %490 = arith.mulf %489, %487 : vector<8x128xf32>
    %491 = arith.mulf %481, %422 : vector<8x128xf32>
    %492 = arith.addf %490, %491 : vector<8x128xf32>
    %c6_138 = arith.constant 6 : index
    %c0_139 = arith.constant 0 : index
    %c0_140 = arith.constant 0 : index
    %493 = vector.load %arg9[%c6_138, %c0_139, %c0_140] : memref<8x8x128xf32, #tpu.memory_space<vmem>>, vector<1x8x128xf32>
    %494 = vector.shape_cast %493 : vector<1x8x128xf32> to vector<8x128xf32>
    %495 = vector.shape_cast %460 : vector<8x128xf32> to vector<1x8x128xf32>
    tpu.vector_store %arg9[%c6_138, %c0_139, %c0_140], %495 {strides = array<i32>} : memref<8x8x128xf32, #tpu.memory_space<vmem>>, vector<1x8x128xf32>,
    %c1_141 = arith.constant 1 : index
    %c0_142 = arith.constant 0 : index
    %c0_143 = arith.constant 0 : index
    %496 = vector.load %arg10[%c1_141, %c0_142, %c0_143] : memref<8x8x128xf32, #tpu.memory_space<vmem>>, vector<1x8x128xf32>
    %497 = vector.shape_cast %496 : vector<1x8x128xf32> to vector<8x128xf32>
    %498 = vector.shape_cast %492 : vector<8x128xf32> to vector<1x8x128xf32>
    tpu.vector_store %arg10[%c1_141, %c0_142, %c0_143], %498 {strides = array<i32>} : memref<8x8x128xf32, #tpu.memory_space<vmem>>, vector<1x8x128xf32>,
    %c7_144 = arith.constant 7 : index
    %c0_145 = arith.constant 0 : index
    %c0_146 = arith.constant 0 : index
    %499 = vector.load %arg1[%c7_144, %c0_145, %c0_146] : memref<8x8x384xbf16, #tpu.memory_space<vmem>>, vector<1x8x384xbf16>
    %500 = vector.shape_cast %499 : vector<1x8x384xbf16> to vector<8x384xbf16>
    %501 = arith.extf %500 : vector<8x384xbf16> to vector<8x384xf32>
    %502 = arith.truncf %460 : vector<8x128xf32> to vector<8x128xbf16>
    %cst_147 = arith.constant dense<0.000000e+00> : vector<8x384xf32>
    %503 = tpu.matmul %502, %3, %cst_147 {dimension_numbers = #tpu.dot_dimension_numbers<[1], [0], [0], [1], [0, 0, 1, 1], [], []>} : vector<8x128xbf16>, vector<128x384xbf16>, vector<8x384xf32> -> vector<8x384xf32>
    %504 = vector.extract_strided_slice %501 {offsets = [0, 0], sizes = [8, 128], strides = [1, 1]} : vector<8x384xf32> to vector<8x128xf32>
    %505 = vector.extract_strided_slice %503 {offsets = [0, 0], sizes = [8, 128], strides = [1, 1]} : vector<8x384xf32> to vector<8x128xf32>
    %506 = arith.addf %504, %505 : vector<8x128xf32>
    %507 = arith.negf %506 : vector<8x128xf32>
    %508 = math.exp %507 : vector<8x128xf32>
    %cst_148 = arith.constant 1.000000e+00 : f32
    %509 = vector.broadcast %cst_148 : f32 to vector<8x128xf32>
    %510 = arith.addf %509, %508 : vector<8x128xf32>
    %511 = arith.divf %509, %510 : vector<8x128xf32>
    %512 = vector.extract_strided_slice %501 {offsets = [0, 128], sizes = [8, 128], strides = [1, 1]} : vector<8x384xf32> to vector<8x128xf32>
    %513 = vector.extract_strided_slice %503 {offsets = [0, 128], sizes = [8, 128], strides = [1, 1]} : vector<8x384xf32> to vector<8x128xf32>
    %514 = arith.addf %512, %513 : vector<8x128xf32>
    %515 = arith.negf %514 : vector<8x128xf32>
    %516 = math.exp %515 : vector<8x128xf32>
    %cst_149 = arith.constant 1.000000e+00 : f32
    %517 = vector.broadcast %cst_149 : f32 to vector<8x128xf32>
    %518 = arith.addf %517, %516 : vector<8x128xf32>
    %519 = arith.divf %517, %518 : vector<8x128xf32>
    %520 = vector.extract_strided_slice %501 {offsets = [0, 256], sizes = [8, 128], strides = [1, 1]} : vector<8x384xf32> to vector<8x128xf32>
    %521 = vector.extract_strided_slice %503 {offsets = [0, 256], sizes = [8, 128], strides = [1, 1]} : vector<8x384xf32> to vector<8x128xf32>
    %522 = arith.addf %521, %5 : vector<8x128xf32>
    %523 = arith.mulf %511, %522 : vector<8x128xf32>
    %524 = arith.addf %520, %523 : vector<8x128xf32>
    %525 = math.tanh %524 : vector<8x128xf32>
    %cst_150 = arith.constant 1.000000e+00 : f32
    %526 = vector.broadcast %cst_150 : f32 to vector<8x128xf32>
    %527 = arith.subf %526, %519 : vector<8x128xf32>
    %528 = arith.mulf %527, %525 : vector<8x128xf32>
    %529 = arith.mulf %519, %460 : vector<8x128xf32>
    %530 = arith.addf %528, %529 : vector<8x128xf32>
    %c0_151 = arith.constant 0 : index
    %c0_152 = arith.constant 0 : index
    %c0_153 = arith.constant 0 : index
    %531 = vector.load %arg2[%c0_151, %c0_152, %c0_153] : memref<8x8x384xbf16, #tpu.memory_space<vmem>>, vector<1x8x384xbf16>
    %532 = vector.shape_cast %531 : vector<1x8x384xbf16> to vector<8x384xbf16>
    %533 = arith.extf %532 : vector<8x384xbf16> to vector<8x384xf32>
    %534 = arith.truncf %492 : vector<8x128xf32> to vector<8x128xbf16>
    %cst_154 = arith.constant dense<0.000000e+00> : vector<8x384xf32>
    %535 = tpu.matmul %534, %4, %cst_154 {dimension_numbers = #tpu.dot_dimension_numbers<[1], [0], [0], [1], [0, 0, 1, 1], [], []>} : vector<8x128xbf16>, vector<128x384xbf16>, vector<8x384xf32> -> vector<8x384xf32>
    %536 = vector.extract_strided_slice %533 {offsets = [0, 0], sizes = [8, 128], strides = [1, 1]} : vector<8x384xf32> to vector<8x128xf32>
    %537 = vector.extract_strided_slice %535 {offsets = [0, 0], sizes = [8, 128], strides = [1, 1]} : vector<8x384xf32> to vector<8x128xf32>
    %538 = arith.addf %536, %537 : vector<8x128xf32>
    %539 = arith.negf %538 : vector<8x128xf32>
    %540 = math.exp %539 : vector<8x128xf32>
    %cst_155 = arith.constant 1.000000e+00 : f32
    %541 = vector.broadcast %cst_155 : f32 to vector<8x128xf32>
    %542 = arith.addf %541, %540 : vector<8x128xf32>
    %543 = arith.divf %541, %542 : vector<8x128xf32>
    %544 = vector.extract_strided_slice %533 {offsets = [0, 128], sizes = [8, 128], strides = [1, 1]} : vector<8x384xf32> to vector<8x128xf32>
    %545 = vector.extract_strided_slice %535 {offsets = [0, 128], sizes = [8, 128], strides = [1, 1]} : vector<8x384xf32> to vector<8x128xf32>
    %546 = arith.addf %544, %545 : vector<8x128xf32>
    %547 = arith.negf %546 : vector<8x128xf32>
    %548 = math.exp %547 : vector<8x128xf32>
    %cst_156 = arith.constant 1.000000e+00 : f32
    %549 = vector.broadcast %cst_156 : f32 to vector<8x128xf32>
    %550 = arith.addf %549, %548 : vector<8x128xf32>
    %551 = arith.divf %549, %550 : vector<8x128xf32>
    %552 = vector.extract_strided_slice %533 {offsets = [0, 256], sizes = [8, 128], strides = [1, 1]} : vector<8x384xf32> to vector<8x128xf32>
    %553 = vector.extract_strided_slice %535 {offsets = [0, 256], sizes = [8, 128], strides = [1, 1]} : vector<8x384xf32> to vector<8x128xf32>
    %554 = arith.addf %553, %6 : vector<8x128xf32>
    %555 = arith.mulf %543, %554 : vector<8x128xf32>
    %556 = arith.addf %552, %555 : vector<8x128xf32>
    %557 = math.tanh %556 : vector<8x128xf32>
    %cst_157 = arith.constant 1.000000e+00 : f32
    %558 = vector.broadcast %cst_157 : f32 to vector<8x128xf32>
    %559 = arith.subf %558, %551 : vector<8x128xf32>
    %560 = arith.mulf %559, %557 : vector<8x128xf32>
    %561 = arith.mulf %551, %492 : vector<8x128xf32>
    %562 = arith.addf %560, %561 : vector<8x128xf32>
    %c7_158 = arith.constant 7 : index
    %c0_159 = arith.constant 0 : index
    %c0_160 = arith.constant 0 : index
    %563 = vector.load %arg9[%c7_158, %c0_159, %c0_160] : memref<8x8x128xf32, #tpu.memory_space<vmem>>, vector<1x8x128xf32>
    %564 = vector.shape_cast %563 : vector<1x8x128xf32> to vector<8x128xf32>
    %565 = vector.shape_cast %530 : vector<8x128xf32> to vector<1x8x128xf32>
    tpu.vector_store %arg9[%c7_158, %c0_159, %c0_160], %565 {strides = array<i32>} : memref<8x8x128xf32, #tpu.memory_space<vmem>>, vector<1x8x128xf32>,
    %c0_161 = arith.constant 0 : index
    %c0_162 = arith.constant 0 : index
    %c0_163 = arith.constant 0 : index
    %566 = vector.load %arg10[%c0_161, %c0_162, %c0_163] : memref<8x8x128xf32, #tpu.memory_space<vmem>>, vector<1x8x128xf32>
    %567 = vector.shape_cast %566 : vector<1x8x128xf32> to vector<8x128xf32>
    %568 = vector.shape_cast %562 : vector<8x128xf32> to vector<1x8x128xf32>
    tpu.vector_store %arg10[%c0_161, %c0_162, %c0_163], %568 {strides = array<i32>} : memref<8x8x128xf32, #tpu.memory_space<vmem>>, vector<1x8x128xf32>,
    %c0_164 = arith.constant 0 : index
    %c0_165 = arith.constant 0 : index
    %569 = vector.load %arg12[%c0_164, %c0_165] : memref<8x128xf32, #tpu.memory_space<vmem>>, vector<8x128xf32>
    tpu.vector_store %arg12[%c0_164, %c0_165], %530 {strides = array<i32>} : memref<8x128xf32, #tpu.memory_space<vmem>>, vector<8x128xf32>,
    %c0_166 = arith.constant 0 : index
    %c0_167 = arith.constant 0 : index
    %570 = vector.load %arg13[%c0_166, %c0_167] : memref<8x128xf32, #tpu.memory_space<vmem>>, vector<8x128xf32>
    tpu.vector_store %arg13[%c0_166, %c0_167], %562 {strides = array<i32>} : memref<8x128xf32, #tpu.memory_space<vmem>>, vector<8x128xf32>,
    %c0_i32_168 = arith.constant 0 : i32
    %571 = arith.cmpi eq, %arg0, %c0_i32_168 : i32
    %572 = arith.extui %571 : i1 to i32
    %c0_i32_169 = arith.constant 0 : i32
    %573 = arith.cmpi ne, %572, %c0_i32_169 : i32
    scf.if %573 {
      %574 = tpu.concatenate %530, %562 in 1 : vector<8x128xf32>, vector<8x128xf32> -> vector<8x256xf32>
      %575 = arith.truncf %574 : vector<8x256xf32> to vector<8x256xbf16>
      %c0_170 = arith.constant 0 : index
      %c0_171 = arith.constant 0 : index
      %576 = vector.load %arg7[%c0_170, %c0_171] : memref<256x128xbf16, #tpu.memory_space<vmem>>, vector<256x128xbf16>
      %cst_172 = arith.constant dense<0.000000e+00> : vector<8x128xf32>
      %577 = tpu.matmul %575, %576, %cst_172 {dimension_numbers = #tpu.dot_dimension_numbers<[1], [0], [0], [1], [0, 0, 1, 1], [], []>} : vector<8x256xbf16>, vector<256x128xbf16>, vector<8x128xf32> -> vector<8x128xf32>
      %c0_173 = arith.constant 0 : index
      %c0_174 = arith.constant 0 : index
      %578 = vector.load %arg8[%c0_173, %c0_174] : memref<8x128xf32, #tpu.memory_space<vmem>>, vector<8x128xf32>
      %579 = arith.addf %577, %578 : vector<8x128xf32>
      %580 = math.tanh %579 : vector<8x128xf32>
      %c0_175 = arith.constant 0 : index
      %c0_176 = arith.constant 0 : index
      %581 = vector.load %arg11[%c0_175, %c0_176] : memref<8x128xf32, #tpu.memory_space<vmem>>, vector<8x128xf32>
      tpu.vector_store %arg11[%c0_175, %c0_176], %580 {strides = array<i32>} : memref<8x128xf32, #tpu.memory_space<vmem>>, vector<8x128xf32>,
    } else {
    }
    return
  }
  func.func @transform_0(%arg0: i32) -> (i32, i32, i32) {
    %c0_i32 = arith.constant 0 : i32
    %c0_i32_0 = arith.constant 0 : i32
    %c0_i32_1 = arith.constant 0 : i32
    return %arg0, %c0_i32, %c0_i32_0 : i32, i32, i32
  }
  func.func @transform_1(%arg0: i32) -> (i32, i32, i32) {
    %c0_i32 = arith.constant 0 : i32
    %0 = arith.subi %c0_i32, %arg0 : i32
    %c0_i32_0 = arith.constant 0 : i32
    %c0_i32_1 = arith.constant 0 : i32
    %c0_i32_2 = arith.constant 0 : i32
    return %0, %c0_i32_0, %c0_i32_1 : i32, i32, i32
  }
  func.func @transform_2(%arg0: i32) -> (i32, i32) {
    %c0_i32 = arith.constant 0 : i32
    %c0_i32_0 = arith.constant 0 : i32
    %c0_i32_1 = arith.constant 0 : i32
    return %c0_i32, %c0_i32_0 : i32, i32
  }
  func.func @transform_3(%arg0: i32) -> (i32, i32) {
    %c0_i32 = arith.constant 0 : i32
    %c0_i32_0 = arith.constant 0 : i32
    %c0_i32_1 = arith.constant 0 : i32
    return %c0_i32, %c0_i32_0 : i32, i32
  }
  func.func @transform_4(%arg0: i32) -> (i32, i32) {
    %c0_i32 = arith.constant 0 : i32
    %c0_i32_0 = arith.constant 0 : i32
    %c0_i32_1 = arith.constant 0 : i32
    return %c0_i32, %c0_i32_0 : i32, i32
  }
  func.func @transform_5(%arg0: i32) -> (i32, i32) {
    %c0_i32 = arith.constant 0 : i32
    %c0_i32_0 = arith.constant 0 : i32
    %c0_i32_1 = arith.constant 0 : i32
    return %c0_i32, %c0_i32_0 : i32, i32
  }
  func.func @transform_6(%arg0: i32) -> (i32, i32) {
    %c0_i32 = arith.constant 0 : i32
    %c0_i32_0 = arith.constant 0 : i32
    %c0_i32_1 = arith.constant 0 : i32
    return %c0_i32, %c0_i32_0 : i32, i32
  }
  func.func @transform_7(%arg0: i32) -> (i32, i32) {
    %c0_i32 = arith.constant 0 : i32
    %c0_i32_0 = arith.constant 0 : i32
    %c0_i32_1 = arith.constant 0 : i32
    return %c0_i32, %c0_i32_0 : i32, i32
  }
  func.func @transform_8(%arg0: i32) -> (i32, i32, i32) {
    %c0_i32 = arith.constant 0 : i32
    %c0_i32_0 = arith.constant 0 : i32
    %c0_i32_1 = arith.constant 0 : i32
    return %arg0, %c0_i32, %c0_i32_0 : i32, i32, i32
  }
  func.func @transform_9(%arg0: i32) -> (i32, i32, i32) {
    %c0_i32 = arith.constant 0 : i32
    %0 = arith.subi %c0_i32, %arg0 : i32
    %c0_i32_0 = arith.constant 0 : i32
    %c0_i32_1 = arith.constant 0 : i32
    %c0_i32_2 = arith.constant 0 : i32
    return %0, %c0_i32_0, %c0_i32_1 : i32, i32, i32
  }
  func.func @transform_10(%arg0: i32) -> (i32, i32) {
    %c0_i32 = arith.constant 0 : i32
    %c0_i32_0 = arith.constant 0 : i32
    %c0_i32_1 = arith.constant 0 : i32
    return %c0_i32, %c0_i32_0 : i32, i32
  }
}

</mosaic_0001>

<llo_original>
// kernel: encoder_forward.2
$region0: #{encoder_forward.2}
  #allocation0 [shape = 'u32[]', space=smem, size = 0x4, offset = 0x4, fixed_abs, tag = 'smem constant byte address 0x4 - core index']
  #allocation1 [shape = 'u32[72,128]{1,0:T(1,128)}', space=vmem, size = 0x9000, scoped, tag = 'internal scratch']
  %s0 = inlined_call_operand.vmem [shape: bf16[64,32], index: 0, kind: input, shape index: {}]
  %s1 = inlined_call_operand.vmem [shape: bf16[32,768], index: 1, kind: input, shape index: {}]
  %s2 = inlined_call_operand.vmem [shape: f32[1,384], index: 2, kind: input, shape index: {}]
  %s3 = inlined_call_operand.vmem [shape: f32[1,384], index: 3, kind: input, shape index: {}]
  %s4 = inlined_call_operand.vmem [shape: bf16[64,384], index: 4, kind: output, shape index: {0}]
  %s5 = inlined_call_operand.vmem [shape: bf16[64,384], index: 5, kind: output, shape index: {1}]
  %6 = xla_tuple %s4, %s5
  %s7 = sld [smem:[#allocation0]]
  $region34: #{encoder_forward.2} parent=0
    _
  %s9 = ssub.s32 1, %s7
  %s10 = scalar_select 0, %s9, %s7
  // Predicated region
  $region2: #{encoder_forward.2} parent=0 // pred_check
    _
  $region3: #{encoder_forward.2} parent=0 // pred_check_branch
    %12 = sbr.rel (0) target = $region5
  $region4: #{encoder_forward.2} parent=0 // pred_region
    _
  $region5: #{encoder_forward.2} parent=0 // pred_fallthru
    _
  // Predicated region
  $region6: #{encoder_forward.2} parent=0 // pred_check
    _
  $region7: #{encoder_forward.2} parent=0 // pred_check_branch
    %14 = sbr.rel (0) target = $region9
  $region8: #{encoder_forward.2} parent=0 // pred_region
    _
  $region9: #{encoder_forward.2} parent=0 // pred_fallthru
    _
  // Predicated region
  $region10: #{encoder_forward.2} parent=0 // pred_check
    _
  $region11: #{encoder_forward.2} parent=0 // pred_check_branch
    %16 = sbr.rel (0) target = $region13
  $region12: #{encoder_forward.2} parent=0 // pred_region
    _
  $region13: #{encoder_forward.2} parent=0 // pred_fallthru
    _
  // Predicated region
  $region14: #{encoder_forward.2} parent=0 // pred_check
    _
  $region15: #{encoder_forward.2} parent=0 // pred_check_branch
    %18 = sbr.rel (0) target = $region17
  $region16: #{encoder_forward.2} parent=0 // pred_region
    _
  $region17: #{encoder_forward.2} parent=0 // pred_fallthru
    _
  %v20 = vld [vmem:[%s0] sm:$0xf]
  %v21 = vld [vmem:[%s0 + $0x4] sm:$0xf]
  %v22 = vld [vmem:[%s0 + $0x8] sm:$0xf]
  %v23 = vld [vmem:[%s0 + $0xc] sm:$0xf]
  %v24 = vld [vmem:[%s0 + $0x10] sm:$0xf]
  %v25 = vld [vmem:[%s0 + $0x14] sm:$0xf]
  %v26 = vld [vmem:[%s0 + $0x18] sm:$0xf]
  %v27 = vld [vmem:[%s0 + $0x1c] sm:$0xf]
  %v28 = vld [vmem:[%s1] sm:$0xff]
  %v29 = vld [vmem:[%s1 + $0x8] sm:$0xff]
  %v30 = vld [vmem:[%s1 + $0x10] sm:$0xff]
  %v31 = vld [vmem:[%s1 + $0x18] sm:$0xff]
  %v32 = vld [vmem:[%s1 + $0x20] sm:$0xff]
  %v33 = vld [vmem:[%s1 + $0x28] sm:$0xff]
  %v34 = vld [vmem:[%s1 + $0x30] sm:$0xff]
  %v35 = vld [vmem:[%s1 + $0x38] sm:$0xff]
  %v36 = vld [vmem:[%s1 + $0x40] sm:$0xff]
  %v37 = vld [vmem:[%s1 + $0x48] sm:$0xff]
  %v38 = vld [vmem:[%s1 + $0x50] sm:$0xff]
  %v39 = vld [vmem:[%s1 + $0x58] sm:$0xff]
  %v48 = vunpack.c.l.b16 %v20
  %v49 = vunpack.c.l.b16 %v21
  %v50 = vunpack.c.l.b16 %v22
  %v51 = vunpack.c.l.b16 %v23
  %v52 = vunpack.c.l.b16 %v24
  %v53 = vunpack.c.l.b16 %v25
  %v54 = vunpack.c.l.b16 %v26
  %v55 = vunpack.c.l.b16 %v27
  %v56 = vpack.c.b16 %v49, %v48
  %v57 = vpack.c.b16 %v51, %v50
  %v58 = vpack.c.b16 %v53, %v52
  %v59 = vpack.c.b16 %v55, %v54
  %v72 = vunpack.c.l.b16 %v28
  %v73 = vunpack.c.h.b16 %v28
  %v74 = vunpack.c.l.b16 %v29
  %v75 = vunpack.c.h.b16 %v29
  %v76 = vunpack.c.l.b16 %v30
  %v77 = vunpack.c.h.b16 %v30
  %v78 = vunpack.c.l.b16 %v31
  %v79 = vunpack.c.h.b16 %v31
  %v80 = vunpack.c.l.b16 %v32
  %v81 = vunpack.c.h.b16 %v32
  %v82 = vunpack.c.l.b16 %v33
  %v83 = vunpack.c.h.b16 %v33
  %v84 = vunpack.c.l.b16 %v34
  %v85 = vunpack.c.h.b16 %v34
  %v86 = vunpack.c.l.b16 %v35
  %v87 = vunpack.c.h.b16 %v35
  %v88 = vunpack.c.l.b16 %v36
  %v89 = vunpack.c.h.b16 %v36
  %v90 = vunpack.c.l.b16 %v37
  %v91 = vunpack.c.h.b16 %v37
  %v92 = vunpack.c.l.b16 %v38
  %v93 = vunpack.c.h.b16 %v38
  %v94 = vunpack.c.l.b16 %v39
  %v95 = vunpack.c.h.b16 %v39
  %v96 = vpack.c.b16 %v78, %v72
  %v97 = vpack.c.b16 %v79, %v73
  %v98 = vpack.c.b16 %v80, %v74
  %v99 = vpack.c.b16 %v81, %v75
  %v100 = vpack.c.b16 %v82, %v76
  %v101 = vpack.c.b16 %v83, %v77
  %v102 = vpack.c.b16 %v90, %v84
  %v103 = vpack.c.b16 %v91, %v85
  %v104 = vpack.c.b16 %v92, %v86
  %v105 = vpack.c.b16 %v93, %v87
  %v106 = vpack.c.b16 %v94, %v88
  %v107 = vpack.c.b16 %v95, %v89
  %vm120 = vcmask 261120
  %v122 = vsel %vm120, %v56, 0
  %v125 = vsel %vm120, %v57, 0
  %v128 = vsel %vm120, %v58, 0
  %v131 = vsel %vm120, %v59, 0
  %133 = vmatpush.bf16.msra.mxu0 0
  %134 = vmatpush.bf16.msra.mxu0 0
  %135 = vmatpush.bf16.msra.mxu0 0
  %136 = vmatpush.bf16.msra.mxu0 0
  %137 = vmatpush.bf16.msra.mxu0 0
  %138 = vmatpush.bf16.msra.mxu0 0
  %139 = vmatpush.bf16.msra.mxu0 %v102
  %140 = vmatpush.bf16.msra.mxu0 %v96
  %141 = vmatmul.bf16.gmra.mxu0 %v122
  %v142 = vpop.f32.mrf.mxu0
  %v143 = vadd.f32 0.0, %v142
  %v144 = vpop.f32.mrf.mxu0
  %v145 = vadd.f32 0.0, %v144
  %146 = vmatmul.bf16.gmra.mxu0 %v125
  %v147 = vpop.f32.mrf.mxu0
  %v148 = vadd.f32 0.0, %v147
  %v149 = vpop.f32.mrf.mxu0
  %v150 = vadd.f32 0.0, %v149
  %151 = vmatmul.bf16.gmra.mxu0 %v128
  %v152 = vpop.f32.mrf.mxu0
  %v153 = vadd.f32 0.0, %v152
  %v154 = vpop.f32.mrf.mxu0
  %v155 = vadd.f32 0.0, %v154
  %156 = vmatmul.bf16.gmra.mxu0 %v131
  %v157 = vpop.f32.mrf.mxu0
  %v158 = vadd.f32 0.0, %v157
  %v159 = vpop.f32.mrf.mxu0
  %v160 = vadd.f32 0.0, %v159
  %161 = vdwg.mxu0
  %162 = vmatpush.bf16.msra.mxu0 0
  %163 = vmatpush.bf16.msra.mxu0 0
  %164 = vmatpush.bf16.msra.mxu0 0
  %165 = vmatpush.bf16.msra.mxu0 0
  %166 = vmatpush.bf16.msra.mxu0 0
  %167 = vmatpush.bf16.msra.mxu0 0
  %168 = vmatpush.bf16.msra.mxu0 %v103
  %169 = vmatpush.bf16.msra.mxu0 %v97
  %170 = vmatmul.bf16.gmra.mxu0 %v122
  %v171 = vpop.f32.mrf.mxu0
  %v172 = vadd.f32 0.0, %v171
  %v173 = vpop.f32.mrf.mxu0
  %v174 = vadd.f32 0.0, %v173
  %175 = vmatmul.bf16.gmra.mxu0 %v125
  %v176 = vpop.f32.mrf.mxu0
  %v177 = vadd.f32 0.0, %v176
  %v178 = vpop.f32.mrf.mxu0
  %v179 = vadd.f32 0.0, %v178
  %180 = vmatmul.bf16.gmra.mxu0 %v128
  %v181 = vpop.f32.mrf.mxu0
  %v182 = vadd.f32 0.0, %v181
  %v183 = vpop.f32.mrf.mxu0
  %v184 = vadd.f32 0.0, %v183
  %185 = vmatmul.bf16.gmra.mxu0 %v131
  %v186 = vpop.f32.mrf.mxu0
  %v187 = vadd.f32 0.0, %v186
  %v188 = vpop.f32.mrf.mxu0
  %v189 = vadd.f32 0.0, %v188
  %190 = vdwg.mxu0
  %191 = vmatpush.bf16.msra.mxu0 0
  %192 = vmatpush.bf16.msra.mxu0 0
  %193 = vmatpush.bf16.msra.mxu0 0
  %194 = vmatpush.bf16.msra.mxu0 0
  %195 = vmatpush.bf16.msra.mxu0 0
  %196 = vmatpush.bf16.msra.mxu0 0
  %197 = vmatpush.bf16.msra.mxu0 %v104
  %198 = vmatpush.bf16.msra.mxu0 %v98
  %199 = vmatmul.bf16.gmra.mxu0 %v122
  %v200 = vpop.f32.mrf.mxu0
  %v201 = vadd.f32 0.0, %v200
  %v202 = vpop.f32.mrf.mxu0
  %v203 = vadd.f32 0.0, %v202
  %204 = vmatmul.bf16.gmra.mxu0 %v125
  %v205 = vpop.f32.mrf.mxu0
  %v206 = vadd.f32 0.0, %v205
  %v207 = vpop.f32.mrf.mxu0
  %v208 = vadd.f32 0.0, %v207
  %209 = vmatmul.bf16.gmra.mxu0 %v128
  %v210 = vpop.f32.mrf.mxu0
  %v211 = vadd.f32 0.0, %v210
  %v212 = vpop.f32.mrf.mxu0
  %v213 = vadd.f32 0.0, %v212
  %214 = vmatmul.bf16.gmra.mxu0 %v131
  %v215 = vpop.f32.mrf.mxu0
  %v216 = vadd.f32 0.0, %v215
  %v217 = vpop.f32.mrf.mxu0
  %v218 = vadd.f32 0.0, %v217
  %219 = vdwg.mxu0
  %220 = vmatpush.bf16.msra.mxu0 0
  %221 = vmatpush.bf16.msra.mxu0 0
  %222 = vmatpush.bf16.msra.mxu0 0
  %223 = vmatpush.bf16.msra.mxu0 0
  %224 = vmatpush.bf16.msra.mxu0 0
  %225 = vmatpush.bf16.msra.mxu0 0
  %226 = vmatpush.bf16.msra.mxu0 %v105
  %227 = vmatpush.bf16.msra.mxu0 %v99
  %228 = vmatmul.bf16.gmra.mxu0 %v122
  %v229 = vpop.f32.mrf.mxu0
  %v230 = vadd.f32 0.0, %v229
  %v231 = vpop.f32.mrf.mxu0
  %v232 = vadd.f32 0.0, %v231
  %233 = vmatmul.bf16.gmra.mxu0 %v125
  %v234 = vpop.f32.mrf.mxu0
  %v235 = vadd.f32 0.0, %v234
  %v236 = vpop.f32.mrf.mxu0
  %v237 = vadd.f32 0.0, %v236
  %238 = vmatmul.bf16.gmra.mxu0 %v128
  %v239 = vpop.f32.mrf.mxu0
  %v240 = vadd.f32 0.0, %v239
  %v241 = vpop.f32.mrf.mxu0
  %v242 = vadd.f32 0.0, %v241
  %243 = vmatmul.bf16.gmra.mxu0 %v131
  %v244 = vpop.f32.mrf.mxu0
  %v245 = vadd.f32 0.0, %v244
  %v246 = vpop.f32.mrf.mxu0
  %v247 = vadd.f32 0.0, %v246
  %248 = vdwg.mxu0
  %249 = vmatpush.bf16.msra.mxu0 0
  %250 = vmatpush.bf16.msra.mxu0 0
  %251 = vmatpush.bf16.msra.mxu0 0
  %252 = vmatpush.bf16.msra.mxu0 0
  %253 = vmatpush.bf16.msra.mxu0 0
  %254 = vmatpush.bf16.msra.mxu0 0
  %255 = vmatpush.bf16.msra.mxu0 %v106
  %256 = vmatpush.bf16.msra.mxu0 %v100
  %257 = vmatmul.bf16.gmra.mxu0 %v122
  %v258 = vpop.f32.mrf.mxu0
  %v259 = vadd.f32 0.0, %v258
  %v260 = vpop.f32.mrf.mxu0
  %v261 = vadd.f32 0.0, %v260
  %262 = vmatmul.bf16.gmra.mxu0 %v125
  %v263 = vpop.f32.mrf.mxu0
  %v264 = vadd.f32 0.0, %v263
  %v265 = vpop.f32.mrf.mxu0
  %v266 = vadd.f32 0.0, %v265
  %267 = vmatmul.bf16.gmra.mxu0 %v128
  %v268 = vpop.f32.mrf.mxu0
  %v269 = vadd.f32 0.0, %v268
  %v270 = vpop.f32.mrf.mxu0
  %v271 = vadd.f32 0.0, %v270
  %272 = vmatmul.bf16.gmra.mxu0 %v131
  %v273 = vpop.f32.mrf.mxu0
  %v274 = vadd.f32 0.0, %v273
  %v275 = vpop.f32.mrf.mxu0
  %v276 = vadd.f32 0.0, %v275
  %277 = vdwg.mxu0
  %278 = vmatpush.bf16.msra.mxu0 0
  %279 = vmatpush.bf16.msra.mxu0 0
  %280 = vmatpush.bf16.msra.mxu0 0
  %281 = vmatpush.bf16.msra.mxu0 0
  %282 = vmatpush.bf16.msra.mxu0 0
  %283 = vmatpush.bf16.msra.mxu0 0
  %284 = vmatpush.bf16.msra.mxu0 %v107
  %285 = vmatpush.bf16.msra.mxu0 %v101
  %286 = vmatmul.bf16.gmra.mxu0 %v122
  %v287 = vpop.f32.mrf.mxu0
  %v288 = vadd.f32 0.0, %v287
  %v289 = vpop.f32.mrf.mxu0
  %v290 = vadd.f32 0.0, %v289
  %291 = vmatmul.bf16.gmra.mxu0 %v125
  %v292 = vpop.f32.mrf.mxu0
  %v293 = vadd.f32 0.0, %v292
  %v294 = vpop.f32.mrf.mxu0
  %v295 = vadd.f32 0.0, %v294
  %296 = vmatmul.bf16.gmra.mxu0 %v128
  %v297 = vpop.f32.mrf.mxu0
  %v298 = vadd.f32 0.0, %v297
  %v299 = vpop.f32.mrf.mxu0
  %v300 = vadd.f32 0.0, %v299
  %301 = vmatmul.bf16.gmra.mxu0 %v131
  %v302 = vpop.f32.mrf.mxu0
  %v303 = vadd.f32 0.0, %v302
  %v304 = vpop.f32.mrf.mxu0
  %v305 = vadd.f32 0.0, %v304
  %306 = vdwg.mxu0
  %v307 = vld [vmem:[%s2] sm:$0x7]
  %v309 = vperm.slane %v307, 0
  %v310 = vperm.slane %v307, 1
  %v311 = vperm.slane %v307, 2
  %v315 = vadd.f32 %v143, %v309
  %v316 = vadd.f32 %v172, %v310
  %v317 = vadd.f32 %v201, %v311
  %v318 = vadd.f32 %v145, %v309
  %v319 = vadd.f32 %v174, %v310
  %v320 = vadd.f32 %v203, %v311
  %v321 = vadd.f32 %v148, %v309
  %v322 = vadd.f32 %v177, %v310
  %v323 = vadd.f32 %v206, %v311
  %v324 = vadd.f32 %v150, %v309
  %v325 = vadd.f32 %v179, %v310
  %v326 = vadd.f32 %v208, %v311
  %v327 = vadd.f32 %v153, %v309
  %v328 = vadd.f32 %v182, %v310
  %v329 = vadd.f32 %v211, %v311
  %v330 = vadd.f32 %v155, %v309
  %v331 = vadd.f32 %v184, %v310
  %v332 = vadd.f32 %v213, %v311
  %v333 = vadd.f32 %v158, %v309
  %v334 = vadd.f32 %v187, %v310
  %v335 = vadd.f32 %v216, %v311
  %v336 = vadd.f32 %v160, %v309
  %v337 = vadd.f32 %v189, %v310
  %v338 = vadd.f32 %v218, %v311
  %v339 = vpack.c.bf16 %v316, %v315
  %v340 = vpack.c.bf16 %v317, %v317
  %v341 = vpack.c.bf16 %v319, %v318
  %v342 = vpack.c.bf16 %v320, %v320
  %v343 = vpack.c.bf16 %v322, %v321
  %v344 = vpack.c.bf16 %v323, %v323
  %v345 = vpack.c.bf16 %v325, %v324
  %v346 = vpack.c.bf16 %v326, %v326
  %v347 = vpack.c.bf16 %v328, %v327
  %v348 = vpack.c.bf16 %v329, %v329
  %v349 = vpack.c.bf16 %v331, %v330
  %v350 = vpack.c.bf16 %v332, %v332
  %v351 = vpack.c.bf16 %v334, %v333
  %v352 = vpack.c.bf16 %v335, %v335
  %v353 = vpack.c.bf16 %v337, %v336
  %v354 = vpack.c.bf16 %v338, %v338
  %355 = vst [vmem:[%s4] sm:$0xff] %v339
  %356 = vst [vmem:[%s4 + $0x8] sm:$0xf] %v340
  %357 = vst [vmem:[%s4 + $0xc] sm:$0xff] %v341
  %358 = vst [vmem:[%s4 + $0x14] sm:$0xf] %v342
  %359 = vst [vmem:[%s4 + $0x18] sm:$0xff] %v343
  %360 = vst [vmem:[%s4 + $0x20] sm:$0xf] %v344
  %361 = vst [vmem:[%s4 + $0x24] sm:$0xff] %v345
  %362 = vst [vmem:[%s4 + $0x2c] sm:$0xf] %v346
  %363 = vst [vmem:[%s4 + $0x30] sm:$0xff] %v347
  %364 = vst [vmem:[%s4 + $0x38] sm:$0xf] %v348
  %365 = vst [vmem:[%s4 + $0x3c] sm:$0xff] %v349
  %366 = vst [vmem:[%s4 + $0x44] sm:$0xf] %v350
  %367 = vst [vmem:[%s4 + $0x48] sm:$0xff] %v351
  %368 = vst [vmem:[%s4 + $0x50] sm:$0xf] %v352
  %369 = vst [vmem:[%s4 + $0x54] sm:$0xff] %v353
  %370 = vst [vmem:[%s4 + $0x5c] sm:$0xf] %v354
  %v371 = vld [vmem:[%s3] sm:$0x7]
  %v373 = vperm.slane %v371, 0
  %v374 = vperm.slane %v371, 1
  %v375 = vperm.slane %v371, 2
  %v379 = vadd.f32 %v230, %v373
  %v380 = vadd.f32 %v259, %v374
  %v381 = vadd.f32 %v288, %v375
  %v382 = vadd.f32 %v232, %v373
  %v383 = vadd.f32 %v261, %v374
  %v384 = vadd.f32 %v290, %v375
  %v385 = vadd.f32 %v235, %v373
  %v386 = vadd.f32 %v264, %v374
  %v387 = vadd.f32 %v293, %v375
  %v388 = vadd.f32 %v237, %v373
  %v389 = vadd.f32 %v266, %v374
  %v390 = vadd.f32 %v295, %v375
  %v391 = vadd.f32 %v240, %v373
  %v392 = vadd.f32 %v269, %v374
  %v393 = vadd.f32 %v298, %v375
  %v394 = vadd.f32 %v242, %v373
  %v395 = vadd.f32 %v271, %v374
  %v396 = vadd.f32 %v300, %v375
  %v397 = vadd.f32 %v245, %v373
  %v398 = vadd.f32 %v274, %v374
  %v399 = vadd.f32 %v303, %v375
  %v400 = vadd.f32 %v247, %v373
  %v401 = vadd.f32 %v276, %v374
  %v402 = vadd.f32 %v305, %v375
  %v403 = vpack.c.bf16 %v380, %v379
  %v404 = vpack.c.bf16 %v381, %v381
  %v405 = vpack.c.bf16 %v383, %v382
  %v406 = vpack.c.bf16 %v384, %v384
  %v407 = vpack.c.bf16 %v386, %v385
  %v408 = vpack.c.bf16 %v387, %v387
  %v409 = vpack.c.bf16 %v389, %v388
  %v410 = vpack.c.bf16 %v390, %v390
  %v411 = vpack.c.bf16 %v392, %v391
  %v412 = vpack.c.bf16 %v393, %v393
  %v413 = vpack.c.bf16 %v395, %v394
  %v414 = vpack.c.bf16 %v396, %v396
  %v415 = vpack.c.bf16 %v398, %v397
  %v416 = vpack.c.bf16 %v399, %v399
  %v417 = vpack.c.bf16 %v401, %v400
  %v418 = vpack.c.bf16 %v402, %v402
  %419 = vst [vmem:[%s5] sm:$0xff] %v403
  %420 = vst [vmem:[%s5 + $0x8] sm:$0xf] %v404
  %421 = vst [vmem:[%s5 + $0xc] sm:$0xff] %v405
  %422 = vst [vmem:[%s5 + $0x14] sm:$0xf] %v406
  %423 = vst [vmem:[%s5 + $0x18] sm:$0xff] %v407
  %424 = vst [vmem:[%s5 + $0x20] sm:$0xf] %v408
  %425 = vst [vmem:[%s5 + $0x24] sm:$0xff] %v409
  %426 = vst [vmem:[%s5 + $0x2c] sm:$0xf] %v410
  %427 = vst [vmem:[%s5 + $0x30] sm:$0xff] %v411
  %428 = vst [vmem:[%s5 + $0x38] sm:$0xf] %v412
  %429 = vst [vmem:[%s5 + $0x3c] sm:$0xff] %v413
  %430 = vst [vmem:[%s5 + $0x44] sm:$0xf] %v414
  %431 = vst [vmem:[%s5 + $0x48] sm:$0xff] %v415
  %432 = vst [vmem:[%s5 + $0x50] sm:$0xf] %v416
  %433 = vst [vmem:[%s5 + $0x54] sm:$0xff] %v417
  %434 = vst [vmem:[%s5 + $0x5c] sm:$0xf] %v418
  // Predicated region
  $region18: #{encoder_forward.2} parent=0 // pred_check
    _
  $region19: #{encoder_forward.2} parent=0 // pred_check_branch
    %436 = sbr.rel (0) target = $region21
  $region20: #{encoder_forward.2} parent=0 // pred_region
    _
  $region21: #{encoder_forward.2} parent=0 // pred_fallthru
    _
  // Predicated region
  $region22: #{encoder_forward.2} parent=0 // pred_check
    _
  $region23: #{encoder_forward.2} parent=0 // pred_check_branch
    %438 = sbr.rel (0) target = $region25
  $region24: #{encoder_forward.2} parent=0 // pred_region
    _
  $region25: #{encoder_forward.2} parent=0 // pred_fallthru
    _
  // Predicated region
  $region26: #{encoder_forward.2} parent=0 // pred_check
    _
  $region27: #{encoder_forward.2} parent=0 // pred_check_branch
    %440 = sbr.rel (0) target = $region29
  $region28: #{encoder_forward.2} parent=0 // pred_region
    _
  $region29: #{encoder_forward.2} parent=0 // pred_fallthru
    _
  // Predicated region
  $region30: #{encoder_forward.2} parent=0 // pred_check
    _
  $region31: #{encoder_forward.2} parent=0 // pred_check_branch
    %442 = sbr.rel (0) target = $region33
  $region32: #{encoder_forward.2} parent=0 // pred_region
    _
  $region33: #{encoder_forward.2} parent=0 // pred_fallthru
    _

// kernel: encoder_forward.3
$region0: #{encoder_forward.3}
  #allocation0 [shape = 'u32[]', space=smem, size = 0x4, offset = 0x4, fixed_abs, tag = 'smem constant byte address 0x4 - core index']
  #allocation1 [shape = 'u32[72,128]{1,0:T(1,128)}', space=vmem, size = 0x9000, scoped, tag = 'internal scratch']
  #allocation2 [shape = 'f32[8,128]{1,0:T(8,128)}', space=vmem, size = 0x1000, scoped, tag = 'scratch operand']
  #allocation3 [shape = 'f32[8,128]{1,0:T(8,128)}', space=vmem, size = 0x1000, scoped, tag = 'scratch operand']
  %s0 = inlined_call_operand.vmem [shape: bf16[8,8,384], index: 0, kind: input, shape index: {}]
  %s1 = inlined_call_operand.vmem [shape: bf16[8,8,384], index: 1, kind: input, shape index: {}]
  %s2 = inlined_call_operand.vmem [shape: bf16[128,384], index: 2, kind: input, shape index: {}]
  %s3 = inlined_call_operand.vmem [shape: bf16[128,384], index: 3, kind: input, shape index: {}]
  %s4 = inlined_call_operand.vmem [shape: f32[8,128], index: 4, kind: input, shape index: {}]
  %s5 = inlined_call_operand.vmem [shape: f32[8,128], index: 5, kind: input, shape index: {}]
  %s6 = inlined_call_operand.vmem [shape: bf16[256,128], index: 6, kind: input, shape index: {}]
  %s7 = inlined_call_operand.vmem [shape: f32[8,128], index: 7, kind: input, shape index: {}]
  %s8 = inlined_call_operand.vmem [shape: f32[8,8,128], index: 8, kind: output, shape index: {0}]
  %s9 = inlined_call_operand.vmem [shape: f32[8,8,128], index: 9, kind: output, shape index: {1}]
  %s10 = inlined_call_operand.vmem [shape: f32[8,128], index: 10, kind: output, shape index: {2}]
  %11 = xla_tuple %s8, %s9, %s10
  %s12 = sld [smem:[#allocation0]]
  $region66: #{encoder_forward.3} parent=0
    _
  %s14 = ssub.s32 1, %s12
  %s15 = scalar_select 0, %s14, %s12
  // Predicated region
  $region2: #{encoder_forward.3} parent=0 // pred_check
    _
  $region3: #{encoder_forward.3} parent=0 // pred_check_branch
    %17 = sbr.rel (0) target = $region5
  $region4: #{encoder_forward.3} parent=0 // pred_region
    _
  $region5: #{encoder_forward.3} parent=0 // pred_fallthru
    _
  // Predicated region
  $region6: #{encoder_forward.3} parent=0 // pred_check
    _
  $region7: #{encoder_forward.3} parent=0 // pred_check_branch
    %19 = sbr.rel (0) target = $region9
  $region8: #{encoder_forward.3} parent=0 // pred_region
    %s20 = ssub.s32 0, 0
    %s21 = smul.u32 8, %s20
    %p22 = scmp.lt.s32.totalorder %s21, 7
    %s23 = scalar_select %p22, %s21, 7
    %s24 = smul.addr %s23, 3
    %s25 = smul.addr %s24, 4
    %s26 = scalar_lea.vmem %s1, %s25
    %s27 = ssub.s32 0, 0
    %s28 = smul.u32 8, %s27
  $region9: #{encoder_forward.3} parent=0 // pred_fallthru
    _
  // Predicated region
  $region10: #{encoder_forward.3} parent=0 // pred_check
    _
  $region11: #{encoder_forward.3} parent=0 // pred_check_branch
    %30 = sbr.rel (0) target = $region13
  $region12: #{encoder_forward.3} parent=0 // pred_region
    _
  $region13: #{encoder_forward.3} parent=0 // pred_fallthru
    _
  // Predicated region
  $region14: #{encoder_forward.3} parent=0 // pred_check
    _
  $region15: #{encoder_forward.3} parent=0 // pred_check_branch
    %32 = sbr.rel (0) target = $region17
  $region16: #{encoder_forward.3} parent=0 // pred_region
    _
  $region17: #{encoder_forward.3} parent=0 // pred_fallthru
    _
  // Predicated region
  $region18: #{encoder_forward.3} parent=0 // pred_check
    _
  $region19: #{encoder_forward.3} parent=0 // pred_check_branch
    %34 = sbr.rel (0) target = $region21
  $region20: #{encoder_forward.3} parent=0 // pred_region
    _
  $region21: #{encoder_forward.3} parent=0 // pred_fallthru
    _
  // Predicated region
  $region22: #{encoder_forward.3} parent=0 // pred_check
    _
  $region23: #{encoder_forward.3} parent=0 // pred_check_branch
    %36 = sbr.rel (0) target = $region25
  $region24: #{encoder_forward.3} parent=0 // pred_region
    _
  $region25: #{encoder_forward.3} parent=0 // pred_fallthru
    _
  // Predicated region
  $region26: #{encoder_forward.3} parent=0 // pred_check
    _
  $region27: #{encoder_forward.3} parent=0 // pred_check_branch
    %38 = sbr.rel (0) target = $region29
  $region28: #{encoder_forward.3} parent=0 // pred_region
    _
  $region29: #{encoder_forward.3} parent=0 // pred_fallthru
    _
  // Predicated region
  $region30: #{encoder_forward.3} parent=0 // pred_check
    _
  $region31: #{encoder_forward.3} parent=0 // pred_check_branch
    %40 = sbr.rel (0) target = $region33
  $region32: #{encoder_forward.3} parent=0 // pred_region
    _
  $region33: #{encoder_forward.3} parent=0 // pred_fallthru
    _
  %s41 = ssub.s32 0, 0
  %s42 = smul.u32 8, %s41
  %p43 = scmp.lt.s32.totalorder %s42, 7
  %s44 = scalar_select %p43, %s42, 7
  %s45 = smul.addr %s44, 3
  %s46 = smul.addr %s45, 4
  %s47 = scalar_lea.vmem %s1, %s46
  %s48 = ssub.s32 0, 0
  %s49 = smul.u32 8, %s48
  %p50 = scmp.lt.s32.totalorder %s49, 7
  %s51 = scalar_select %p50, %s49, 7
  %s52 = smul.addr %s51, 8
  %s53 = scalar_lea.vmem %s9, %s52
  %s54 = ssub.s32 0, 0
  %s55 = smul.u32 8, %s54
  %p56 = scmp.lt.s32.totalorder %s55, 7
  %s57 = scalar_select %p56, %s55, 7
  %s58 = smul.addr %s57, 3
  %s59 = smul.addr %s58, 4
  %s60 = scalar_lea.vmem %s1, %s59
  %s61 = ssub.s32 0, 0
  %s62 = smul.u32 8, %s61
  %s63 = ssub.s32 0, 0
  %s64 = smul.u32 8, %s63
  %p65 = scmp.lt.s32.totalorder %s64, 7
  %s66 = scalar_select %p65, %s64, 7
  %s67 = smul.addr %s66, 8
  %s68 = scalar_lea.vmem %s9, %s67
  %s69 = ssub.s32 0, 0
  %s70 = smul.u32 8, %s69
  %p71 = scmp.eq.s32.totalorder 0, 0
  // Predicated region
  $region34: #{encoder_forward.3} parent=0 // pred_check
    %p72 = pneg %p71
  $region35: #{encoder_forward.3} parent=0 // pred_check_branch
    %74 = sbr.rel (%p72) target = $region37
  $region36: #{encoder_forward.3} parent=0 // pred_region
    %75 = vst [vmem:[#allocation2] sm:$0xff] 0.0
    %76 = vst [vmem:[#allocation3] sm:$0xff] 0.0
  $region37: #{encoder_forward.3} parent=0 // pred_fallthru
    _
  %v77 = vld [vmem:[%s2] sm:$0xff]
  %v78 = vld [vmem:[%s2 + $0x8] sm:$0xf]
  %v79 = vld [vmem:[%s2 + $0xc] sm:$0xff]
  %v80 = vld [vmem:[%s2 + $0x14] sm:$0xf]
  %v81 = vld [vmem:[%s2 + $0x18] sm:$0xff]
  %v82 = vld [vmem:[%s2 + $0x20] sm:$0xf]
  %v83 = vld [vmem:[%s2 + $0x24] sm:$0xff]
  %v84 = vld [vmem:[%s2 + $0x2c] sm:$0xf]
  %v85 = vld [vmem:[%s2 + $0x30] sm:$0xff]
  %v86 = vld [vmem:[%s2 + $0x38] sm:$0xf]
  %v87 = vld [vmem:[%s2 + $0x3c] sm:$0xff]
  %v88 = vld [vmem:[%s2 + $0x44] sm:$0xf]
  %v89 = vld [vmem:[%s2 + $0x48] sm:$0xff]
  %v90 = vld [vmem:[%s2 + $0x50] sm:$0xf]
  %v91 = vld [vmem:[%s2 + $0x54] sm:$0xff]
  %v92 = vld [vmem:[%s2 + $0x5c] sm:$0xf]
  %v93 = vld [vmem:[%s2 + $0x60] sm:$0xff]
  %v94 = vld [vmem:[%s2 + $0x68] sm:$0xf]
  %v95 = vld [vmem:[%s2 + $0x6c] sm:$0xff]
  %v96 = vld [vmem:[%s2 + $0x74] sm:$0xf]
  %v97 = vld [vmem:[%s2 + $0x78] sm:$0xff]
  %v98 = vld [vmem:[%s2 + $0x80] sm:$0xf]
  %v99 = vld [vmem:[%s2 + $0x84] sm:$0xff]
  %v100 = vld [vmem:[%s2 + $0x8c] sm:$0xf]
  %v101 = vld [vmem:[%s2 + $0x90] sm:$0xff]
  %v102 = vld [vmem:[%s2 + $0x98] sm:$0xf]
  %v103 = vld [vmem:[%s2 + $0x9c] sm:$0xff]
  %v104 = vld [vmem:[%s2 + $0xa4] sm:$0xf]
  %v105 = vld [vmem:[%s2 + $0xa8] sm:$0xff]
  %v106 = vld [vmem:[%s2 + $0xb0] sm:$0xf]
  %v107 = vld [vmem:[%s2 + $0xb4] sm:$0xff]
  %v108 = vld [vmem:[%s2 + $0xbc] sm:$0xf]
  %v109 = vld [vmem:[%s3] sm:$0xff]
  %v110 = vld [vmem:[%s3 + $0x8] sm:$0xf]
  %v111 = vld [vmem:[%s3 + $0xc] sm:$0xff]
  %v112 = vld [vmem:[%s3 + $0x14] sm:$0xf]
  %v113 = vld [vmem:[%s3 + $0x18] sm:$0xff]
  %v114 = vld [vmem:[%s3 + $0x20] sm:$0xf]
  %v115 = vld [vmem:[%s3 + $0x24] sm:$0xff]
  %v116 = vld [vmem:[%s3 + $0x2c] sm:$0xf]
  %v117 = vld [vmem:[%s3 + $0x30] sm:$0xff]
  %v118 = vld [vmem:[%s3 + $0x38] sm:$0xf]
  %v119 = vld [vmem:[%s3 + $0x3c] sm:$0xff]
  %v120 = vld [vmem:[%s3 + $0x44] sm:$0xf]
  %v121 = vld [vmem:[%s3 + $0x48] sm:$0xff]
  %v122 = vld [vmem:[%s3 + $0x50] sm:$0xf]
  %v123 = vld [vmem:[%s3 + $0x54] sm:$0xff]
  %v124 = vld [vmem:[%s3 + $0x5c] sm:$0xf]
  %v125 = vld [vmem:[%s3 + $0x60] sm:$0xff]
  %v126 = vld [vmem:[%s3 + $0x68] sm:$0xf]
  %v127 = vld [vmem:[%s3 + $0x6c] sm:$0xff]
  %v128 = vld [vmem:[%s3 + $0x74] sm:$0xf]
  %v129 = vld [vmem:[%s3 + $0x78] sm:$0xff]
  %v130 = vld [vmem:[%s3 + $0x80] sm:$0xf]
  %v131 = vld [vmem:[%s3 + $0x84] sm:$0xff]
  %v132 = vld [vmem:[%s3 + $0x8c] sm:$0xf]
  %v133 = vld [vmem:[%s3 + $0x90] sm:$0xff]
  %v134 = vld [vmem:[%s3 + $0x98] sm:$0xf]
  %v135 = vld [vmem:[%s3 + $0x9c] sm:$0xff]
  %v136 = vld [vmem:[%s3 + $0xa4] sm:$0xf]
  %v137 = vld [vmem:[%s3 + $0xa8] sm:$0xff]
  %v138 = vld [vmem:[%s3 + $0xb0] sm:$0xf]
  %v139 = vld [vmem:[%s3 + $0xb4] sm:$0xff]
  %v140 = vld [vmem:[%s3 + $0xbc] sm:$0xf]
  %v141 = vld [vmem:[%s4] sm:$0xff]
  %v142 = vld [vmem:[%s5] sm:$0xff]
  %v143 = vld [vmem:[#allocation2] sm:$0xff]
  %v144 = vld [vmem:[#allocation3] sm:$0xff]
  %v145 = vld [vmem:[%s0] sm:$0xff]
  %v146 = vld [vmem:[%s0 + $0x8] sm:$0xf]
  %v147 = vunpack.c.l.bf16 %v145
  %v148 = vunpack.c.h.bf16 %v145
  %v149 = vunpack.c.l.bf16 %v146
  %v150 = vpack.c.bf16 %v143, %v143
  %v183 = vunpack.c.l.b16 %v77
  %v184 = vunpack.c.h.b16 %v77
  %v185 = vunpack.c.l.b16 %v78
  %v186 = vunpack.c.l.b16 %v79
  %v187 = vunpack.c.h.b16 %v79
  %v188 = vunpack.c.l.b16 %v80
  %v189 = vunpack.c.l.b16 %v81
  %v190 = vunpack.c.h.b16 %v81
  %v191 = vunpack.c.l.b16 %v82
  %v192 = vunpack.c.l.b16 %v83
  %v193 = vunpack.c.h.b16 %v83
  %v194 = vunpack.c.l.b16 %v84
  %v195 = vunpack.c.l.b16 %v85
  %v196 = vunpack.c.h.b16 %v85
  %v197 = vunpack.c.l.b16 %v86
  %v198 = vunpack.c.l.b16 %v87
  %v199 = vunpack.c.h.b16 %v87
  %v200 = vunpack.c.l.b16 %v88
  %v201 = vunpack.c.l.b16 %v89
  %v202 = vunpack.c.h.b16 %v89
  %v203 = vunpack.c.l.b16 %v90
  %v204 = vunpack.c.l.b16 %v91
  %v205 = vunpack.c.h.b16 %v91
  %v206 = vunpack.c.l.b16 %v92
  %v207 = vunpack.c.l.b16 %v93
  %v208 = vunpack.c.h.b16 %v93
  %v209 = vunpack.c.l.b16 %v94
  %v210 = vunpack.c.l.b16 %v95
  %v211 = vunpack.c.h.b16 %v95
  %v212 = vunpack.c.l.b16 %v96
  %v213 = vunpack.c.l.b16 %v97
  %v214 = vunpack.c.h.b16 %v97
  %v215 = vunpack.c.l.b16 %v98
  %v216 = vunpack.c.l.b16 %v99
  %v217 = vunpack.c.h.b16 %v99
  %v218 = vunpack.c.l.b16 %v100
  %v219 = vunpack.c.l.b16 %v101
  %v220 = vunpack.c.h.b16 %v101
  %v221 = vunpack.c.l.b16 %v102
  %v222 = vunpack.c.l.b16 %v103
  %v223 = vunpack.c.h.b16 %v103
  %v224 = vunpack.c.l.b16 %v104
  %v225 = vunpack.c.l.b16 %v105
  %v226 = vunpack.c.h.b16 %v105
  %v227 = vunpack.c.l.b16 %v106
  %v228 = vunpack.c.l.b16 %v107
  %v229 = vunpack.c.h.b16 %v107
  %v230 = vunpack.c.l.b16 %v108
  %v231 = vpack.c.b16 %v186, %v183
  %v232 = vpack.c.b16 %v187, %v184
  %v233 = vpack.c.b16 %v188, %v185
  %v234 = vpack.c.b16 %v192, %v189
  %v235 = vpack.c.b16 %v193, %v190
  %v236 = vpack.c.b16 %v194, %v191
  %v237 = vpack.c.b16 %v198, %v195
  %v238 = vpack.c.b16 %v199, %v196
  %v239 = vpack.c.b16 %v200, %v197
  %v240 = vpack.c.b16 %v204, %v201
  %v241 = vpack.c.b16 %v205, %v202
  %v242 = vpack.c.b16 %v206, %v203
  %v243 = vpack.c.b16 %v210, %v207
  %v244 = vpack.c.b16 %v211, %v208
  %v245 = vpack.c.b16 %v212, %v209
  %v246 = vpack.c.b16 %v216, %v213
  %v247 = vpack.c.b16 %v217, %v214
  %v248 = vpack.c.b16 %v218, %v215
  %v249 = vpack.c.b16 %v222, %v219
  %v250 = vpack.c.b16 %v223, %v220
  %v251 = vpack.c.b16 %v224, %v221
  %v252 = vpack.c.b16 %v228, %v225
  %v253 = vpack.c.b16 %v229, %v226
  %v254 = vpack.c.b16 %v230, %v227
  %279 = vmatpush.bf16.msra.mxu0 %v252
  %280 = vmatpush.bf16.msra.mxu0 %v249
  %281 = vmatpush.bf16.msra.mxu0 %v246
  %282 = vmatpush.bf16.msra.mxu0 %v243
  %283 = vmatpush.bf16.msra.mxu0 %v240
  %284 = vmatpush.bf16.msra.mxu0 %v237
  %285 = vmatpush.bf16.msra.mxu0 %v234
  %286 = vmatpush.bf16.msra.mxu0 %v231
  %287 = vmatmul.bf16.gmra.mxu0 %v150
  %v288 = vpop.f32.mrf.mxu0
  %v289 = vadd.f32 0.0, %v288
  %v290 = vpop.f32.mrf.mxu0
  %291 = vdwg.mxu0
  %292 = vmatpush.bf16.msra.mxu0 %v253
  %293 = vmatpush.bf16.msra.mxu0 %v250
  %294 = vmatpush.bf16.msra.mxu0 %v247
  %295 = vmatpush.bf16.msra.mxu0 %v244
  %296 = vmatpush.bf16.msra.mxu0 %v241
  %297 = vmatpush.bf16.msra.mxu0 %v238
  %298 = vmatpush.bf16.msra.mxu0 %v235
  %299 = vmatpush.bf16.msra.mxu0 %v232
  %300 = vmatmul.bf16.gmra.mxu0 %v150
  %v301 = vpop.f32.mrf.mxu0
  %v302 = vadd.f32 0.0, %v301
  %v303 = vpop.f32.mrf.mxu0
  %304 = vdwg.mxu0
  %305 = vmatpush.bf16.msra.mxu0 %v254
  %306 = vmatpush.bf16.msra.mxu0 %v251
  %307 = vmatpush.bf16.msra.mxu0 %v248
  %308 = vmatpush.bf16.msra.mxu0 %v245
  %309 = vmatpush.bf16.msra.mxu0 %v242
  %310 = vmatpush.bf16.msra.mxu0 %v239
  %311 = vmatpush.bf16.msra.mxu0 %v236
  %312 = vmatpush.bf16.msra.mxu0 %v233
  %313 = vmatmul.bf16.gmra.mxu0 %v150
  %v314 = vpop.f32.mrf.mxu0
  %v315 = vadd.f32 0.0, %v314
  %v316 = vpop.f32.mrf.mxu0
  %317 = vdwg.mxu0
  %v318 = vadd.f32 %v147, %v289
  %v319 = vxor.u32 %v318, 2147483648
  %v320 = vmul.f32 %v319, 1.442695
  %v321 = vpow.pop %v320
  %v322 = vadd.f32 %v321, 1.0
  %v323 = vrcp.pop %v322
  %v324 = vmul.f32 %v322, %v323
  %v325 = vsub.f32 1.0, %v324
  %v326 = vmul.f32 %v323, %v325
  %v327 = vadd.f32 %v323, %v326
  %vm328 = vweird.f32 %v322
  %vm329 = vweird.f32 %v323
  %vm330 = vmor %vm328, %vm329
  %v331 = vsel %vm330, %v323, %v327
  %v332 = vand.u32 2147483647, %v322
  %vm333 = vcmp.eq.f32.partialorder %v332, 8.507059e+37
  %v334 = vand.u32 %v322, 2147483648
  %v335 = vor.u32 1.1754944e-38, %v334
  %v336 = vsel %vm333, %v335, %v331
  %v337 = vmul.f32 1.0, %v336
  %v338 = vadd.f32 %v148, %v302
  %v339 = vxor.u32 %v338, 2147483648
  %v340 = vmul.f32 %v339, 1.442695
  %v341 = vpow.pop %v340
  %v342 = vadd.f32 %v341, 1.0
  %v343 = vrcp.pop %v342
  %v344 = vmul.f32 %v342, %v343
  %v345 = vsub.f32 1.0, %v344
  %v346 = vmul.f32 %v343, %v345
  %v347 = vadd.f32 %v343, %v346
  %vm348 = vweird.f32 %v342
  %vm349 = vweird.f32 %v343
  %vm350 = vmor %vm348, %vm349
  %v351 = vsel %vm350, %v343, %v347
  %v352 = vand.u32 2147483647, %v342
  %vm353 = vcmp.eq.f32.partialorder %v352, 8.507059e+37
  %v354 = vand.u32 %v342, 2147483648
  %v355 = vor.u32 1.1754944e-38, %v354
  %v356 = vsel %vm353, %v355, %v351
  %v357 = vmul.f32 1.0, %v356
  %v358 = vadd.f32 %v315, %v141
  %v359 = vmul.f32 %v337, %v358
  %v360 = vadd.f32 %v149, %v359
  %v361 = vtanh.pop %v360
  %v362 = vsub.f32 1.0, %v357
  %v363 = vmul.f32 %v362, %v361
  %v364 = vmul.f32 %v357, %v143
  %v365 = vadd.f32 %v363, %v364
  %s366 = scalar_lea.vmem %s60, 84
  %v367 = vld [vmem:[%s366] sm:$0xff]
  %v368 = vld [vmem:[%s366 + $0x8] sm:$0xf]
  %v369 = vunpack.c.l.bf16 %v367
  %v370 = vunpack.c.h.bf16 %v367
  %v371 = vunpack.c.l.bf16 %v368
  %v372 = vpack.c.bf16 %v144, %v144
  %v405 = vunpack.c.l.b16 %v109
  %v406 = vunpack.c.h.b16 %v109
  %v407 = vunpack.c.l.b16 %v110
  %v408 = vunpack.c.l.b16 %v111
  %v409 = vunpack.c.h.b16 %v111
  %v410 = vunpack.c.l.b16 %v112
  %v411 = vunpack.c.l.b16 %v113
  %v412 = vunpack.c.h.b16 %v113
  %v413 = vunpack.c.l.b16 %v114
  %v414 = vunpack.c.l.b16 %v115
  %v415 = vunpack.c.h.b16 %v115
  %v416 = vunpack.c.l.b16 %v116
  %v417 = vunpack.c.l.b16 %v117
  %v418 = vunpack.c.h.b16 %v117
  %v419 = vunpack.c.l.b16 %v118
  %v420 = vunpack.c.l.b16 %v119
  %v421 = vunpack.c.h.b16 %v119
  %v422 = vunpack.c.l.b16 %v120
  %v423 = vunpack.c.l.b16 %v121
  %v424 = vunpack.c.h.b16 %v121
  %v425 = vunpack.c.l.b16 %v122
  %v426 = vunpack.c.l.b16 %v123
  %v427 = vunpack.c.h.b16 %v123
  %v428 = vunpack.c.l.b16 %v124
  %v429 = vunpack.c.l.b16 %v125
  %v430 = vunpack.c.h.b16 %v125
  %v431 = vunpack.c.l.b16 %v126
  %v432 = vunpack.c.l.b16 %v127
  %v433 = vunpack.c.h.b16 %v127
  %v434 = vunpack.c.l.b16 %v128
  %v435 = vunpack.c.l.b16 %v129
  %v436 = vunpack.c.h.b16 %v129
  %v437 = vunpack.c.l.b16 %v130
  %v438 = vunpack.c.l.b16 %v131
  %v439 = vunpack.c.h.b16 %v131
  %v440 = vunpack.c.l.b16 %v132
  %v441 = vunpack.c.l.b16 %v133
  %v442 = vunpack.c.h.b16 %v133
  %v443 = vunpack.c.l.b16 %v134
  %v444 = vunpack.c.l.b16 %v135
  %v445 = vunpack.c.h.b16 %v135
  %v446 = vunpack.c.l.b16 %v136
  %v447 = vunpack.c.l.b16 %v137
  %v448 = vunpack.c.h.b16 %v137
  %v449 = vunpack.c.l.b16 %v138
  %v450 = vunpack.c.l.b16 %v139
  %v451 = vunpack.c.h.b16 %v139
  %v452 = vunpack.c.l.b16 %v140
  %v453 = vpack.c.b16 %v408, %v405
  %v454 = vpack.c.b16 %v409, %v406
  %v455 = vpack.c.b16 %v410, %v407
  %v456 = vpack.c.b16 %v414, %v411
  %v457 = vpack.c.b16 %v415, %v412
  %v458 = vpack.c.b16 %v416, %v413
  %v459 = vpack.c.b16 %v420, %v417
  %v460 = vpack.c.b16 %v421, %v418
  %v461 = vpack.c.b16 %v422, %v419
  %v462 = vpack.c.b16 %v426, %v423
  %v463 = vpack.c.b16 %v427, %v424
  %v464 = vpack.c.b16 %v428, %v425
  %v465 = vpack.c.b16 %v432, %v429
  %v466 = vpack.c.b16 %v433, %v430
  %v467 = vpack.c.b16 %v434, %v431
  %v468 = vpack.c.b16 %v438, %v435
  %v469 = vpack.c.b16 %v439, %v436
  %v470 = vpack.c.b16 %v440, %v437
  %v471 = vpack.c.b16 %v444, %v441
  %v472 = vpack.c.b16 %v445, %v442
  %v473 = vpack.c.b16 %v446, %v443
  %v474 = vpack.c.b16 %v450, %v447
  %v475 = vpack.c.b16 %v451, %v448
  %v476 = vpack.c.b16 %v452, %v449
  %501 = vmatpush.bf16.msra.mxu0 %v474
  %502 = vmatpush.bf16.msra.mxu0 %v471
  %503 = vmatpush.bf16.msra.mxu0 %v468
  %504 = vmatpush.bf16.msra.mxu0 %v465
  %505 = vmatpush.bf16.msra.mxu0 %v462
  %506 = vmatpush.bf16.msra.mxu0 %v459
  %507 = vmatpush.bf16.msra.mxu0 %v456
  %508 = vmatpush.bf16.msra.mxu0 %v453
  %509 = vmatmul.bf16.gmra.mxu0 %v372
  %v510 = vpop.f32.mrf.mxu0
  %v511 = vadd.f32 0.0, %v510
  %v512 = vpop.f32.mrf.mxu0
  %513 = vdwg.mxu0
  %514 = vmatpush.bf16.msra.mxu0 %v475
  %515 = vmatpush.bf16.msra.mxu0 %v472
  %516 = vmatpush.bf16.msra.mxu0 %v469
  %517 = vmatpush.bf16.msra.mxu0 %v466
  %518 = vmatpush.bf16.msra.mxu0 %v463
  %519 = vmatpush.bf16.msra.mxu0 %v460
  %520 = vmatpush.bf16.msra.mxu0 %v457
  %521 = vmatpush.bf16.msra.mxu0 %v454
  %522 = vmatmul.bf16.gmra.mxu0 %v372
  %v523 = vpop.f32.mrf.mxu0
  %v524 = vadd.f32 0.0, %v523
  %v525 = vpop.f32.mrf.mxu0
  %526 = vdwg.mxu0
  %527 = vmatpush.bf16.msra.mxu0 %v476
  %528 = vmatpush.bf16.msra.mxu0 %v473
  %529 = vmatpush.bf16.msra.mxu0 %v470
  %530 = vmatpush.bf16.msra.mxu0 %v467
  %531 = vmatpush.bf16.msra.mxu0 %v464
  %532 = vmatpush.bf16.msra.mxu0 %v461
  %533 = vmatpush.bf16.msra.mxu0 %v458
  %534 = vmatpush.bf16.msra.mxu0 %v455
  %535 = vmatmul.bf16.gmra.mxu0 %v372
  %v536 = vpop.f32.mrf.mxu0
  %v537 = vadd.f32 0.0, %v536
  %v538 = vpop.f32.mrf.mxu0
  %539 = vdwg.mxu0
  %v540 = vadd.f32 %v369, %v511
  %v541 = vxor.u32 %v540, 2147483648
  %v542 = vmul.f32 %v541, 1.442695
  %v543 = vpow.pop %v542
  %v544 = vadd.f32 %v543, 1.0
  %v545 = vrcp.pop %v544
  %v546 = vmul.f32 %v544, %v545
  %v547 = vsub.f32 1.0, %v546
  %v548 = vmul.f32 %v545, %v547
  %v549 = vadd.f32 %v545, %v548
  %vm550 = vweird.f32 %v544
  %vm551 = vweird.f32 %v545
  %vm552 = vmor %vm550, %vm551
  %v553 = vsel %vm552, %v545, %v549
  %v554 = vand.u32 2147483647, %v544
  %vm555 = vcmp.eq.f32.partialorder %v554, 8.507059e+37
  %v556 = vand.u32 %v544, 2147483648
  %v557 = vor.u32 1.1754944e-38, %v556
  %v558 = vsel %vm555, %v557, %v553
  %v559 = vmul.f32 1.0, %v558
  %v560 = vadd.f32 %v370, %v524
  %v561 = vxor.u32 %v560, 2147483648
  %v562 = vmul.f32 %v561, 1.442695
  %v563 = vpow.pop %v562
  %v564 = vadd.f32 %v563, 1.0
  %v565 = vrcp.pop %v564
  %v566 = vmul.f32 %v564, %v565
  %v567 = vsub.f32 1.0, %v566
  %v568 = vmul.f32 %v565, %v567
  %v569 = vadd.f32 %v565, %v568
  %vm570 = vweird.f32 %v564
  %vm571 = vweird.f32 %v565
  %vm572 = vmor %vm570, %vm571
  %v573 = vsel %vm572, %v565, %v569
  %v574 = vand.u32 2147483647, %v564
  %vm575 = vcmp.eq.f32.partialorder %v574, 8.507059e+37
  %v576 = vand.u32 %v564, 2147483648
  %v577 = vor.u32 1.1754944e-38, %v576
  %v578 = vsel %vm575, %v577, %v573
  %v579 = vmul.f32 1.0, %v578
  %v580 = vadd.f32 %v537, %v142
  %v581 = vmul.f32 %v559, %v580
  %v582 = vadd.f32 %v371, %v581
  %v583 = vtanh.pop %v582
  %v584 = vsub.f32 1.0, %v579
  %v585 = vmul.f32 %v584, %v583
  %v586 = vmul.f32 %v579, %v144
  %v587 = vadd.f32 %v585, %v586
  %588 = vst [vmem:[%s8] sm:$0xff] %v365
  %s589 = scalar_lea.vmem %s68, 56
  %590 = vst [vmem:[%s589] sm:$0xff] %v587
  %s591 = scalar_lea.vmem %s0, 12
  %v592 = vld [vmem:[%s591] sm:$0xff]
  %v593 = vld [vmem:[%s591 + $0x8] sm:$0xf]
  %v594 = vunpack.c.l.bf16 %v592
  %v595 = vunpack.c.h.bf16 %v592
  %v596 = vunpack.c.l.bf16 %v593
  %v597 = vpack.c.bf16 %v365, %v365
  %598 = vmatpush.bf16.msra.mxu0 %v252
  %599 = vmatpush.bf16.msra.mxu0 %v249
  %600 = vmatpush.bf16.msra.mxu0 %v246
  %601 = vmatpush.bf16.msra.mxu0 %v243
  %602 = vmatpush.bf16.msra.mxu0 %v240
  %603 = vmatpush.bf16.msra.mxu0 %v237
  %604 = vmatpush.bf16.msra.mxu0 %v234
  %605 = vmatpush.bf16.msra.mxu0 %v231
  %606 = vmatmul.bf16.gmra.mxu0 %v597
  %v607 = vpop.f32.mrf.mxu0
  %v608 = vadd.f32 0.0, %v607
  %v609 = vpop.f32.mrf.mxu0
  %610 = vdwg.mxu0
  %611 = vmatpush.bf16.msra.mxu0 %v253
  %612 = vmatpush.bf16.msra.mxu0 %v250
  %613 = vmatpush.bf16.msra.mxu0 %v247
  %614 = vmatpush.bf16.msra.mxu0 %v244
  %615 = vmatpush.bf16.msra.mxu0 %v241
  %616 = vmatpush.bf16.msra.mxu0 %v238
  %617 = vmatpush.bf16.msra.mxu0 %v235
  %618 = vmatpush.bf16.msra.mxu0 %v232
  %619 = vmatmul.bf16.gmra.mxu0 %v597
  %v620 = vpop.f32.mrf.mxu0
  %v621 = vadd.f32 0.0, %v620
  %v622 = vpop.f32.mrf.mxu0
  %623 = vdwg.mxu0
  %624 = vmatpush.bf16.msra.mxu0 %v254
  %625 = vmatpush.bf16.msra.mxu0 %v251
  %626 = vmatpush.bf16.msra.mxu0 %v248
  %627 = vmatpush.bf16.msra.mxu0 %v245
  %628 = vmatpush.bf16.msra.mxu0 %v242
  %629 = vmatpush.bf16.msra.mxu0 %v239
  %630 = vmatpush.bf16.msra.mxu0 %v236
  %631 = vmatpush.bf16.msra.mxu0 %v233
  %632 = vmatmul.bf16.gmra.mxu0 %v597
  %v633 = vpop.f32.mrf.mxu0
  %v634 = vadd.f32 0.0, %v633
  %v635 = vpop.f32.mrf.mxu0
  %636 = vdwg.mxu0
  %v637 = vadd.f32 %v594, %v608
  %v638 = vxor.u32 %v637, 2147483648
  %v639 = vmul.f32 %v638, 1.442695
  %v640 = vpow.pop %v639
  %v641 = vadd.f32 %v640, 1.0
  %v642 = vrcp.pop %v641
  %v643 = vmul.f32 %v641, %v642
  %v644 = vsub.f32 1.0, %v643
  %v645 = vmul.f32 %v642, %v644
  %v646 = vadd.f32 %v642, %v645
  %vm647 = vweird.f32 %v641
  %vm648 = vweird.f32 %v642
  %vm649 = vmor %vm647, %vm648
  %v650 = vsel %vm649, %v642, %v646
  %v651 = vand.u32 2147483647, %v641
  %vm652 = vcmp.eq.f32.partialorder %v651, 8.507059e+37
  %v653 = vand.u32 %v641, 2147483648
  %v654 = vor.u32 1.1754944e-38, %v653
  %v655 = vsel %vm652, %v654, %v650
  %v656 = vmul.f32 1.0, %v655
  %v657 = vadd.f32 %v595, %v621
  %v658 = vxor.u32 %v657, 2147483648
  %v659 = vmul.f32 %v658, 1.442695
  %v660 = vpow.pop %v659
  %v661 = vadd.f32 %v660, 1.0
  %v662 = vrcp.pop %v661
  %v663 = vmul.f32 %v661, %v662
  %v664 = vsub.f32 1.0, %v663
  %v665 = vmul.f32 %v662, %v664
  %v666 = vadd.f32 %v662, %v665
  %vm667 = vweird.f32 %v661
  %vm668 = vweird.f32 %v662
  %vm669 = vmor %vm667, %vm668
  %v670 = vsel %vm669, %v662, %v666
  %v671 = vand.u32 2147483647, %v661
  %vm672 = vcmp.eq.f32.partialorder %v671, 8.507059e+37
  %v673 = vand.u32 %v661, 2147483648
  %v674 = vor.u32 1.1754944e-38, %v673
  %v675 = vsel %vm672, %v674, %v670
  %v676 = vmul.f32 1.0, %v675
  %v677 = vadd.f32 %v634, %v141
  %v678 = vmul.f32 %v656, %v677
  %v679 = vadd.f32 %v596, %v678
  %v680 = vtanh.pop %v679
  %v681 = vsub.f32 1.0, %v676
  %v682 = vmul.f32 %v681, %v680
  %v683 = vmul.f32 %v676, %v365
  %v684 = vadd.f32 %v682, %v683
  %s685 = scalar_lea.vmem %s60, 72
  %v686 = vld [vmem:[%s685] sm:$0xff]
  %v687 = vld [vmem:[%s685 + $0x8] sm:$0xf]
  %v688 = vunpack.c.l.bf16 %v686
  %v689 = vunpack.c.h.bf16 %v686
  %v690 = vunpack.c.l.bf16 %v687
  %v691 = vpack.c.bf16 %v587, %v587
  %692 = vmatpush.bf16.msra.mxu0 %v474
  %693 = vmatpush.bf16.msra.mxu0 %v471
  %694 = vmatpush.bf16.msra.mxu0 %v468
  %695 = vmatpush.bf16.msra.mxu0 %v465
  %696 = vmatpush.bf16.msra.mxu0 %v462
  %697 = vmatpush.bf16.msra.mxu0 %v459
  %698 = vmatpush.bf16.msra.mxu0 %v456
  %699 = vmatpush.bf16.msra.mxu0 %v453
  %700 = vmatmul.bf16.gmra.mxu0 %v691
  %v701 = vpop.f32.mrf.mxu0
  %v702 = vadd.f32 0.0, %v701
  %v703 = vpop.f32.mrf.mxu0
  %704 = vdwg.mxu0
  %705 = vmatpush.bf16.msra.mxu0 %v475
  %706 = vmatpush.bf16.msra.mxu0 %v472
  %707 = vmatpush.bf16.msra.mxu0 %v469
  %708 = vmatpush.bf16.msra.mxu0 %v466
  %709 = vmatpush.bf16.msra.mxu0 %v463
  %710 = vmatpush.bf16.msra.mxu0 %v460
  %711 = vmatpush.bf16.msra.mxu0 %v457
  %712 = vmatpush.bf16.msra.mxu0 %v454
  %713 = vmatmul.bf16.gmra.mxu0 %v691
  %v714 = vpop.f32.mrf.mxu0
  %v715 = vadd.f32 0.0, %v714
  %v716 = vpop.f32.mrf.mxu0
  %717 = vdwg.mxu0
  %718 = vmatpush.bf16.msra.mxu0 %v476
  %719 = vmatpush.bf16.msra.mxu0 %v473
  %720 = vmatpush.bf16.msra.mxu0 %v470
  %721 = vmatpush.bf16.msra.mxu0 %v467
  %722 = vmatpush.bf16.msra.mxu0 %v464
  %723 = vmatpush.bf16.msra.mxu0 %v461
  %724 = vmatpush.bf16.msra.mxu0 %v458
  %725 = vmatpush.bf16.msra.mxu0 %v455
  %726 = vmatmul.bf16.gmra.mxu0 %v691
  %v727 = vpop.f32.mrf.mxu0
  %v728 = vadd.f32 0.0, %v727
  %v729 = vpop.f32.mrf.mxu0
  %730 = vdwg.mxu0
  %v731 = vadd.f32 %v688, %v702
  %v732 = vxor.u32 %v731, 2147483648
  %v733 = vmul.f32 %v732, 1.442695
  %v734 = vpow.pop %v733
  %v735 = vadd.f32 %v734, 1.0
  %v736 = vrcp.pop %v735
  %v737 = vmul.f32 %v735, %v736
  %v738 = vsub.f32 1.0, %v737
  %v739 = vmul.f32 %v736, %v738
  %v740 = vadd.f32 %v736, %v739
  %vm741 = vweird.f32 %v735
  %vm742 = vweird.f32 %v736
  %vm743 = vmor %vm741, %vm742
  %v744 = vsel %vm743, %v736, %v740
  %v745 = vand.u32 2147483647, %v735
  %vm746 = vcmp.eq.f32.partialorder %v745, 8.507059e+37
  %v747 = vand.u32 %v735, 2147483648
  %v748 = vor.u32 1.1754944e-38, %v747
  %v749 = vsel %vm746, %v748, %v744
  %v750 = vmul.f32 1.0, %v749
  %v751 = vadd.f32 %v689, %v715
  %v752 = vxor.u32 %v751, 2147483648
  %v753 = vmul.f32 %v752, 1.442695
  %v754 = vpow.pop %v753
  %v755 = vadd.f32 %v754, 1.0
  %v756 = vrcp.pop %v755
  %v757 = vmul.f32 %v755, %v756
  %v758 = vsub.f32 1.0, %v757
  %v759 = vmul.f32 %v756, %v758
  %v760 = vadd.f32 %v756, %v759
  %vm761 = vweird.f32 %v755
  %vm762 = vweird.f32 %v756
  %vm763 = vmor %vm761, %vm762
  %v764 = vsel %vm763, %v756, %v760
  %v765 = vand.u32 2147483647, %v755
  %vm766 = vcmp.eq.f32.partialorder %v765, 8.507059e+37
  %v767 = vand.u32 %v755, 2147483648
  %v768 = vor.u32 1.1754944e-38, %v767
  %v769 = vsel %vm766, %v768, %v764
  %v770 = vmul.f32 1.0, %v769
  %v771 = vadd.f32 %v728, %v142
  %v772 = vmul.f32 %v750, %v771
  %v773 = vadd.f32 %v690, %v772
  %v774 = vtanh.pop %v773
  %v775 = vsub.f32 1.0, %v770
  %v776 = vmul.f32 %v775, %v774
  %v777 = vmul.f32 %v770, %v587
  %v778 = vadd.f32 %v776, %v777
  %s779 = scalar_lea.vmem %s8, 8
  %780 = vst [vmem:[%s779] sm:$0xff] %v684
  %s781 = scalar_lea.vmem %s68, 48
  %782 = vst [vmem:[%s781] sm:$0xff] %v778
  %s783 = scalar_lea.vmem %s0, 24
  %v784 = vld [vmem:[%s783] sm:$0xff]
  %v785 = vld [vmem:[%s783 + $0x8] sm:$0xf]
  %v786 = vunpack.c.l.bf16 %v784
  %v787 = vunpack.c.h.bf16 %v784
  %v788 = vunpack.c.l.bf16 %v785
  %v789 = vpack.c.bf16 %v684, %v684
  %790 = vmatpush.bf16.msra.mxu0 %v252
  %791 = vmatpush.bf16.msra.mxu0 %v249
  %792 = vmatpush.bf16.msra.mxu0 %v246
  %793 = vmatpush.bf16.msra.mxu0 %v243
  %794 = vmatpush.bf16.msra.mxu0 %v240
  %795 = vmatpush.bf16.msra.mxu0 %v237
  %796 = vmatpush.bf16.msra.mxu0 %v234
  %797 = vmatpush.bf16.msra.mxu0 %v231
  %798 = vmatmul.bf16.gmra.mxu0 %v789
  %v799 = vpop.f32.mrf.mxu0
  %v800 = vadd.f32 0.0, %v799
  %v801 = vpop.f32.mrf.mxu0
  %802 = vdwg.mxu0
  %803 = vmatpush.bf16.msra.mxu0 %v253
  %804 = vmatpush.bf16.msra.mxu0 %v250
  %805 = vmatpush.bf16.msra.mxu0 %v247
  %806 = vmatpush.bf16.msra.mxu0 %v244
  %807 = vmatpush.bf16.msra.mxu0 %v241
  %808 = vmatpush.bf16.msra.mxu0 %v238
  %809 = vmatpush.bf16.msra.mxu0 %v235
  %810 = vmatpush.bf16.msra.mxu0 %v232
  %811 = vmatmul.bf16.gmra.mxu0 %v789
  %v812 = vpop.f32.mrf.mxu0
  %v813 = vadd.f32 0.0, %v812
  %v814 = vpop.f32.mrf.mxu0
  %815 = vdwg.mxu0
  %816 = vmatpush.bf16.msra.mxu0 %v254
  %817 = vmatpush.bf16.msra.mxu0 %v251
  %818 = vmatpush.bf16.msra.mxu0 %v248
  %819 = vmatpush.bf16.msra.mxu0 %v245
  %820 = vmatpush.bf16.msra.mxu0 %v242
  %821 = vmatpush.bf16.msra.mxu0 %v239
  %822 = vmatpush.bf16.msra.mxu0 %v236
  %823 = vmatpush.bf16.msra.mxu0 %v233
  %824 = vmatmul.bf16.gmra.mxu0 %v789
  %v825 = vpop.f32.mrf.mxu0
  %v826 = vadd.f32 0.0, %v825
  %v827 = vpop.f32.mrf.mxu0
  %828 = vdwg.mxu0
  %v829 = vadd.f32 %v786, %v800
  %v830 = vxor.u32 %v829, 2147483648
  %v831 = vmul.f32 %v830, 1.442695
  %v832 = vpow.pop %v831
  %v833 = vadd.f32 %v832, 1.0
  %v834 = vrcp.pop %v833
  %v835 = vmul.f32 %v833, %v834
  %v836 = vsub.f32 1.0, %v835
  %v837 = vmul.f32 %v834, %v836
  %v838 = vadd.f32 %v834, %v837
  %vm839 = vweird.f32 %v833
  %vm840 = vweird.f32 %v834
  %vm841 = vmor %vm839, %vm840
  %v842 = vsel %vm841, %v834, %v838
  %v843 = vand.u32 2147483647, %v833
  %vm844 = vcmp.eq.f32.partialorder %v843, 8.507059e+37
  %v845 = vand.u32 %v833, 2147483648
  %v846 = vor.u32 1.1754944e-38, %v845
  %v847 = vsel %vm844, %v846, %v842
  %v848 = vmul.f32 1.0, %v847
  %v849 = vadd.f32 %v787, %v813
  %v850 = vxor.u32 %v849, 2147483648
  %v851 = vmul.f32 %v850, 1.442695
  %v852 = vpow.pop %v851
  %v853 = vadd.f32 %v852, 1.0
  %v854 = vrcp.pop %v853
  %v855 = vmul.f32 %v853, %v854
  %v856 = vsub.f32 1.0, %v855
  %v857 = vmul.f32 %v854, %v856
  %v858 = vadd.f32 %v854, %v857
  %vm859 = vweird.f32 %v853
  %vm860 = vweird.f32 %v854
  %vm861 = vmor %vm859, %vm860
  %v862 = vsel %vm861, %v854, %v858
  %v863 = vand.u32 2147483647, %v853
  %vm864 = vcmp.eq.f32.partialorder %v863, 8.507059e+37
  %v865 = vand.u32 %v853, 2147483648
  %v866 = vor.u32 1.1754944e-38, %v865
  %v867 = vsel %vm864, %v866, %v862
  %v868 = vmul.f32 1.0, %v867
  %v869 = vadd.f32 %v826, %v141
  %v870 = vmul.f32 %v848, %v869
  %v871 = vadd.f32 %v788, %v870
  %v872 = vtanh.pop %v871
  %v873 = vsub.f32 1.0, %v868
  %v874 = vmul.f32 %v873, %v872
  %v875 = vmul.f32 %v868, %v684
  %v876 = vadd.f32 %v874, %v875
  %s877 = scalar_lea.vmem %s60, 60
  %v878 = vld [vmem:[%s877] sm:$0xff]
  %v879 = vld [vmem:[%s877 + $0x8] sm:$0xf]
  %v880 = vunpack.c.l.bf16 %v878
  %v881 = vunpack.c.h.bf16 %v878
  %v882 = vunpack.c.l.bf16 %v879
  %v883 = vpack.c.bf16 %v778, %v778
  %884 = vmatpush.bf16.msra.mxu0 %v474
  %885 = vmatpush.bf16.msra.mxu0 %v471
  %886 = vmatpush.bf16.msra.mxu0 %v468
  %887 = vmatpush.bf16.msra.mxu0 %v465
  %888 = vmatpush.bf16.msra.mxu0 %v462
  %889 = vmatpush.bf16.msra.mxu0 %v459
  %890 = vmatpush.bf16.msra.mxu0 %v456
  %891 = vmatpush.bf16.msra.mxu0 %v453
  %892 = vmatmul.bf16.gmra.mxu0 %v883
  %v893 = vpop.f32.mrf.mxu0
  %v894 = vadd.f32 0.0, %v893
  %v895 = vpop.f32.mrf.mxu0
  %896 = vdwg.mxu0
  %897 = vmatpush.bf16.msra.mxu0 %v475
  %898 = vmatpush.bf16.msra.mxu0 %v472
  %899 = vmatpush.bf16.msra.mxu0 %v469
  %900 = vmatpush.bf16.msra.mxu0 %v466
  %901 = vmatpush.bf16.msra.mxu0 %v463
  %902 = vmatpush.bf16.msra.mxu0 %v460
  %903 = vmatpush.bf16.msra.mxu0 %v457
  %904 = vmatpush.bf16.msra.mxu0 %v454
  %905 = vmatmul.bf16.gmra.mxu0 %v883
  %v906 = vpop.f32.mrf.mxu0
  %v907 = vadd.f32 0.0, %v906
  %v908 = vpop.f32.mrf.mxu0
  %909 = vdwg.mxu0
  %910 = vmatpush.bf16.msra.mxu0 %v476
  %911 = vmatpush.bf16.msra.mxu0 %v473
  %912 = vmatpush.bf16.msra.mxu0 %v470
  %913 = vmatpush.bf16.msra.mxu0 %v467
  %914 = vmatpush.bf16.msra.mxu0 %v464
  %915 = vmatpush.bf16.msra.mxu0 %v461
  %916 = vmatpush.bf16.msra.mxu0 %v458
  %917 = vmatpush.bf16.msra.mxu0 %v455
  %918 = vmatmul.bf16.gmra.mxu0 %v883
  %v919 = vpop.f32.mrf.mxu0
  %v920 = vadd.f32 0.0, %v919
  %v921 = vpop.f32.mrf.mxu0
  %922 = vdwg.mxu0
  %v923 = vadd.f32 %v880, %v894
  %v924 = vxor.u32 %v923, 2147483648
  %v925 = vmul.f32 %v924, 1.442695
  %v926 = vpow.pop %v925
  %v927 = vadd.f32 %v926, 1.0
  %v928 = vrcp.pop %v927
  %v929 = vmul.f32 %v927, %v928
  %v930 = vsub.f32 1.0, %v929
  %v931 = vmul.f32 %v928, %v930
  %v932 = vadd.f32 %v928, %v931
  %vm933 = vweird.f32 %v927
  %vm934 = vweird.f32 %v928
  %vm935 = vmor %vm933, %vm934
  %v936 = vsel %vm935, %v928, %v932
  %v937 = vand.u32 2147483647, %v927
  %vm938 = vcmp.eq.f32.partialorder %v937, 8.507059e+37
  %v939 = vand.u32 %v927, 2147483648
  %v940 = vor.u32 1.1754944e-38, %v939
  %v941 = vsel %vm938, %v940, %v936
  %v942 = vmul.f32 1.0, %v941
  %v943 = vadd.f32 %v881, %v907
  %v944 = vxor.u32 %v943, 2147483648
  %v945 = vmul.f32 %v944, 1.442695
  %v946 = vpow.pop %v945
  %v947 = vadd.f32 %v946, 1.0
  %v948 = vrcp.pop %v947
  %v949 = vmul.f32 %v947, %v948
  %v950 = vsub.f32 1.0, %v949
  %v951 = vmul.f32 %v948, %v950
  %v952 = vadd.f32 %v948, %v951
  %vm953 = vweird.f32 %v947
  %vm954 = vweird.f32 %v948
  %vm955 = vmor %vm953, %vm954
  %v956 = vsel %vm955, %v948, %v952
  %v957 = vand.u32 2147483647, %v947
  %vm958 = vcmp.eq.f32.partialorder %v957, 8.507059e+37
  %v959 = vand.u32 %v947, 2147483648
  %v960 = vor.u32 1.1754944e-38, %v959
  %v961 = vsel %vm958, %v960, %v956
  %v962 = vmul.f32 1.0, %v961
  %v963 = vadd.f32 %v920, %v142
  %v964 = vmul.f32 %v942, %v963
  %v965 = vadd.f32 %v882, %v964
  %v966 = vtanh.pop %v965
  %v967 = vsub.f32 1.0, %v962
  %v968 = vmul.f32 %v967, %v966
  %v969 = vmul.f32 %v962, %v778
  %v970 = vadd.f32 %v968, %v969
  %s971 = scalar_lea.vmem %s8, 16
  %972 = vst [vmem:[%s971] sm:$0xff] %v876
  %s973 = scalar_lea.vmem %s68, 40
  %974 = vst [vmem:[%s973] sm:$0xff] %v970
  %s975 = scalar_lea.vmem %s0, 36
  %v976 = vld [vmem:[%s975] sm:$0xff]
  %v977 = vld [vmem:[%s975 + $0x8] sm:$0xf]
  %v978 = vunpack.c.l.bf16 %v976
  %v979 = vunpack.c.h.bf16 %v976
  %v980 = vunpack.c.l.bf16 %v977
  %v981 = vpack.c.bf16 %v876, %v876
  %982 = vmatpush.bf16.msra.mxu0 %v252
  %983 = vmatpush.bf16.msra.mxu0 %v249
  %984 = vmatpush.bf16.msra.mxu0 %v246
  %985 = vmatpush.bf16.msra.mxu0 %v243
  %986 = vmatpush.bf16.msra.mxu0 %v240
  %987 = vmatpush.bf16.msra.mxu0 %v237
  %988 = vmatpush.bf16.msra.mxu0 %v234
  %989 = vmatpush.bf16.msra.mxu0 %v231
  %990 = vmatmul.bf16.gmra.mxu0 %v981
  %v991 = vpop.f32.mrf.mxu0
  %v992 = vadd.f32 0.0, %v991
  %v993 = vpop.f32.mrf.mxu0
  %994 = vdwg.mxu0
  %995 = vmatpush.bf16.msra.mxu0 %v253
  %996 = vmatpush.bf16.msra.mxu0 %v250
  %997 = vmatpush.bf16.msra.mxu0 %v247
  %998 = vmatpush.bf16.msra.mxu0 %v244
  %999 = vmatpush.bf16.msra.mxu0 %v241
  %1000 = vmatpush.bf16.msra.mxu0 %v238
  %1001 = vmatpush.bf16.msra.mxu0 %v235
  %1002 = vmatpush.bf16.msra.mxu0 %v232
  %1003 = vmatmul.bf16.gmra.mxu0 %v981
  %v1004 = vpop.f32.mrf.mxu0
  %v1005 = vadd.f32 0.0, %v1004
  %v1006 = vpop.f32.mrf.mxu0
  %1007 = vdwg.mxu0
  %1008 = vmatpush.bf16.msra.mxu0 %v254
  %1009 = vmatpush.bf16.msra.mxu0 %v251
  %1010 = vmatpush.bf16.msra.mxu0 %v248
  %1011 = vmatpush.bf16.msra.mxu0 %v245
  %1012 = vmatpush.bf16.msra.mxu0 %v242
  %1013 = vmatpush.bf16.msra.mxu0 %v239
  %1014 = vmatpush.bf16.msra.mxu0 %v236
  %1015 = vmatpush.bf16.msra.mxu0 %v233
  %1016 = vmatmul.bf16.gmra.mxu0 %v981
  %v1017 = vpop.f32.mrf.mxu0
  %v1018 = vadd.f32 0.0, %v1017
  %v1019 = vpop.f32.mrf.mxu0
  %1020 = vdwg.mxu0
  %v1021 = vadd.f32 %v978, %v992
  %v1022 = vxor.u32 %v1021, 2147483648
  %v1023 = vmul.f32 %v1022, 1.442695
  %v1024 = vpow.pop %v1023
  %v1025 = vadd.f32 %v1024, 1.0
  %v1026 = vrcp.pop %v1025
  %v1027 = vmul.f32 %v1025, %v1026
  %v1028 = vsub.f32 1.0, %v1027
  %v1029 = vmul.f32 %v1026, %v1028
  %v1030 = vadd.f32 %v1026, %v1029
  %vm1031 = vweird.f32 %v1025
  %vm1032 = vweird.f32 %v1026
  %vm1033 = vmor %vm1031, %vm1032
  %v1034 = vsel %vm1033, %v1026, %v1030
  %v1035 = vand.u32 2147483647, %v1025
  %vm1036 = vcmp.eq.f32.partialorder %v1035, 8.507059e+37
  %v1037 = vand.u32 %v1025, 2147483648
  %v1038 = vor.u32 1.1754944e-38, %v1037
  %v1039 = vsel %vm1036, %v1038, %v1034
  %v1040 = vmul.f32 1.0, %v1039
  %v1041 = vadd.f32 %v979, %v1005
  %v1042 = vxor.u32 %v1041, 2147483648
  %v1043 = vmul.f32 %v1042, 1.442695
  %v1044 = vpow.pop %v1043
  %v1045 = vadd.f32 %v1044, 1.0
  %v1046 = vrcp.pop %v1045
  %v1047 = vmul.f32 %v1045, %v1046
  %v1048 = vsub.f32 1.0, %v1047
  %v1049 = vmul.f32 %v1046, %v1048
  %v1050 = vadd.f32 %v1046, %v1049
  %vm1051 = vweird.f32 %v1045
  %vm1052 = vweird.f32 %v1046
  %vm1053 = vmor %vm1051, %vm1052
  %v1054 = vsel %vm1053, %v1046, %v1050
  %v1055 = vand.u32 2147483647, %v1045
  %vm1056 = vcmp.eq.f32.partialorder %v1055, 8.507059e+37
  %v1057 = vand.u32 %v1045, 2147483648
  %v1058 = vor.u32 1.1754944e-38, %v1057
  %v1059 = vsel %vm1056, %v1058, %v1054
  %v1060 = vmul.f32 1.0, %v1059
  %v1061 = vadd.f32 %v1018, %v141
  %v1062 = vmul.f32 %v1040, %v1061
  %v1063 = vadd.f32 %v980, %v1062
  %v1064 = vtanh.pop %v1063
  %v1065 = vsub.f32 1.0, %v1060
  %v1066 = vmul.f32 %v1065, %v1064
  %v1067 = vmul.f32 %v1060, %v876
  %v1068 = vadd.f32 %v1066, %v1067
  %s1069 = scalar_lea.vmem %s60, 48
  %v1070 = vld [vmem:[%s1069] sm:$0xff]
  %v1071 = vld [vmem:[%s1069 + $0x8] sm:$0xf]
  %v1072 = vunpack.c.l.bf16 %v1070
  %v1073 = vunpack.c.h.bf16 %v1070
  %v1074 = vunpack.c.l.bf16 %v1071
  %v1075 = vpack.c.bf16 %v970, %v970
  %1076 = vmatpush.bf16.msra.mxu0 %v474
  %1077 = vmatpush.bf16.msra.mxu0 %v471
  %1078 = vmatpush.bf16.msra.mxu0 %v468
  %1079 = vmatpush.bf16.msra.mxu0 %v465
  %1080 = vmatpush.bf16.msra.mxu0 %v462
  %1081 = vmatpush.bf16.msra.mxu0 %v459
  %1082 = vmatpush.bf16.msra.mxu0 %v456
  %1083 = vmatpush.bf16.msra.mxu0 %v453
  %1084 = vmatmul.bf16.gmra.mxu0 %v1075
  %v1085 = vpop.f32.mrf.mxu0
  %v1086 = vadd.f32 0.0, %v1085
  %v1087 = vpop.f32.mrf.mxu0
  %1088 = vdwg.mxu0
  %1089 = vmatpush.bf16.msra.mxu0 %v475
  %1090 = vmatpush.bf16.msra.mxu0 %v472
  %1091 = vmatpush.bf16.msra.mxu0 %v469
  %1092 = vmatpush.bf16.msra.mxu0 %v466
  %1093 = vmatpush.bf16.msra.mxu0 %v463
  %1094 = vmatpush.bf16.msra.mxu0 %v460
  %1095 = vmatpush.bf16.msra.mxu0 %v457
  %1096 = vmatpush.bf16.msra.mxu0 %v454
  %1097 = vmatmul.bf16.gmra.mxu0 %v1075
  %v1098 = vpop.f32.mrf.mxu0
  %v1099 = vadd.f32 0.0, %v1098
  %v1100 = vpop.f32.mrf.mxu0
  %1101 = vdwg.mxu0
  %1102 = vmatpush.bf16.msra.mxu0 %v476
  %1103 = vmatpush.bf16.msra.mxu0 %v473
  %1104 = vmatpush.bf16.msra.mxu0 %v470
  %1105 = vmatpush.bf16.msra.mxu0 %v467
  %1106 = vmatpush.bf16.msra.mxu0 %v464
  %1107 = vmatpush.bf16.msra.mxu0 %v461
  %1108 = vmatpush.bf16.msra.mxu0 %v458
  %1109 = vmatpush.bf16.msra.mxu0 %v455
  %1110 = vmatmul.bf16.gmra.mxu0 %v1075
  %v1111 = vpop.f32.mrf.mxu0
  %v1112 = vadd.f32 0.0, %v1111
  %v1113 = vpop.f32.mrf.mxu0
  %1114 = vdwg.mxu0
  %v1115 = vadd.f32 %v1072, %v1086
  %v1116 = vxor.u32 %v1115, 2147483648
  %v1117 = vmul.f32 %v1116, 1.442695
  %v1118 = vpow.pop %v1117
  %v1119 = vadd.f32 %v1118, 1.0
  %v1120 = vrcp.pop %v1119
  %v1121 = vmul.f32 %v1119, %v1120
  %v1122 = vsub.f32 1.0, %v1121
  %v1123 = vmul.f32 %v1120, %v1122
  %v1124 = vadd.f32 %v1120, %v1123
  %vm1125 = vweird.f32 %v1119
  %vm1126 = vweird.f32 %v1120
  %vm1127 = vmor %vm1125, %vm1126
  %v1128 = vsel %vm1127, %v1120, %v1124
  %v1129 = vand.u32 2147483647, %v1119
  %vm1130 = vcmp.eq.f32.partialorder %v1129, 8.507059e+37
  %v1131 = vand.u32 %v1119, 2147483648
  %v1132 = vor.u32 1.1754944e-38, %v1131
  %v1133 = vsel %vm1130, %v1132, %v1128
  %v1134 = vmul.f32 1.0, %v1133
  %v1135 = vadd.f32 %v1073, %v1099
  %v1136 = vxor.u32 %v1135, 2147483648
  %v1137 = vmul.f32 %v1136, 1.442695
  %v1138 = vpow.pop %v1137
  %v1139 = vadd.f32 %v1138, 1.0
  %v1140 = vrcp.pop %v1139
  %v1141 = vmul.f32 %v1139, %v1140
  %v1142 = vsub.f32 1.0, %v1141
  %v1143 = vmul.f32 %v1140, %v1142
  %v1144 = vadd.f32 %v1140, %v1143
  %vm1145 = vweird.f32 %v1139
  %vm1146 = vweird.f32 %v1140
  %vm1147 = vmor %vm1145, %vm1146
  %v1148 = vsel %vm1147, %v1140, %v1144
  %v1149 = vand.u32 2147483647, %v1139
  %vm1150 = vcmp.eq.f32.partialorder %v1149, 8.507059e+37
  %v1151 = vand.u32 %v1139, 2147483648
  %v1152 = vor.u32 1.1754944e-38, %v1151
  %v1153 = vsel %vm1150, %v1152, %v1148
  %v1154 = vmul.f32 1.0, %v1153
  %v1155 = vadd.f32 %v1112, %v142
  %v1156 = vmul.f32 %v1134, %v1155
  %v1157 = vadd.f32 %v1074, %v1156
  %v1158 = vtanh.pop %v1157
  %v1159 = vsub.f32 1.0, %v1154
  %v1160 = vmul.f32 %v1159, %v1158
  %v1161 = vmul.f32 %v1154, %v970
  %v1162 = vadd.f32 %v1160, %v1161
  %s1163 = scalar_lea.vmem %s8, 24
  %1164 = vst [vmem:[%s1163] sm:$0xff] %v1068
  %s1165 = scalar_lea.vmem %s68, 32
  %1166 = vst [vmem:[%s1165] sm:$0xff] %v1162
  %s1167 = scalar_lea.vmem %s0, 48
  %v1168 = vld [vmem:[%s1167] sm:$0xff]
  %v1169 = vld [vmem:[%s1167 + $0x8] sm:$0xf]
  %v1170 = vunpack.c.l.bf16 %v1168
  %v1171 = vunpack.c.h.bf16 %v1168
  %v1172 = vunpack.c.l.bf16 %v1169
  %v1173 = vpack.c.bf16 %v1068, %v1068
  %1174 = vmatpush.bf16.msra.mxu0 %v252
  %1175 = vmatpush.bf16.msra.mxu0 %v249
  %1176 = vmatpush.bf16.msra.mxu0 %v246
  %1177 = vmatpush.bf16.msra.mxu0 %v243
  %1178 = vmatpush.bf16.msra.mxu0 %v240
  %1179 = vmatpush.bf16.msra.mxu0 %v237
  %1180 = vmatpush.bf16.msra.mxu0 %v234
  %1181 = vmatpush.bf16.msra.mxu0 %v231
  %1182 = vmatmul.bf16.gmra.mxu0 %v1173
  %v1183 = vpop.f32.mrf.mxu0
  %v1184 = vadd.f32 0.0, %v1183
  %v1185 = vpop.f32.mrf.mxu0
  %1186 = vdwg.mxu0
  %1187 = vmatpush.bf16.msra.mxu0 %v253
  %1188 = vmatpush.bf16.msra.mxu0 %v250
  %1189 = vmatpush.bf16.msra.mxu0 %v247
  %1190 = vmatpush.bf16.msra.mxu0 %v244
  %1191 = vmatpush.bf16.msra.mxu0 %v241
  %1192 = vmatpush.bf16.msra.mxu0 %v238
  %1193 = vmatpush.bf16.msra.mxu0 %v235
  %1194 = vmatpush.bf16.msra.mxu0 %v232
  %1195 = vmatmul.bf16.gmra.mxu0 %v1173
  %v1196 = vpop.f32.mrf.mxu0
  %v1197 = vadd.f32 0.0, %v1196
  %v1198 = vpop.f32.mrf.mxu0
  %1199 = vdwg.mxu0
  %1200 = vmatpush.bf16.msra.mxu0 %v254
  %1201 = vmatpush.bf16.msra.mxu0 %v251
  %1202 = vmatpush.bf16.msra.mxu0 %v248
  %1203 = vmatpush.bf16.msra.mxu0 %v245
  %1204 = vmatpush.bf16.msra.mxu0 %v242
  %1205 = vmatpush.bf16.msra.mxu0 %v239
  %1206 = vmatpush.bf16.msra.mxu0 %v236
  %1207 = vmatpush.bf16.msra.mxu0 %v233
  %1208 = vmatmul.bf16.gmra.mxu0 %v1173
  %v1209 = vpop.f32.mrf.mxu0
  %v1210 = vadd.f32 0.0, %v1209
  %v1211 = vpop.f32.mrf.mxu0
  %1212 = vdwg.mxu0
  %v1213 = vadd.f32 %v1170, %v1184
  %v1214 = vxor.u32 %v1213, 2147483648
  %v1215 = vmul.f32 %v1214, 1.442695
  %v1216 = vpow.pop %v1215
  %v1217 = vadd.f32 %v1216, 1.0
  %v1218 = vrcp.pop %v1217
  %v1219 = vmul.f32 %v1217, %v1218
  %v1220 = vsub.f32 1.0, %v1219
  %v1221 = vmul.f32 %v1218, %v1220
  %v1222 = vadd.f32 %v1218, %v1221
  %vm1223 = vweird.f32 %v1217
  %vm1224 = vweird.f32 %v1218
  %vm1225 = vmor %vm1223, %vm1224
  %v1226 = vsel %vm1225, %v1218, %v1222
  %v1227 = vand.u32 2147483647, %v1217
  %vm1228 = vcmp.eq.f32.partialorder %v1227, 8.507059e+37
  %v1229 = vand.u32 %v1217, 2147483648
  %v1230 = vor.u32 1.1754944e-38, %v1229
  %v1231 = vsel %vm1228, %v1230, %v1226
  %v1232 = vmul.f32 1.0, %v1231
  %v1233 = vadd.f32 %v1171, %v1197
  %v1234 = vxor.u32 %v1233, 2147483648
  %v1235 = vmul.f32 %v1234, 1.442695
  %v1236 = vpow.pop %v1235
  %v1237 = vadd.f32 %v1236, 1.0
  %v1238 = vrcp.pop %v1237
  %v1239 = vmul.f32 %v1237, %v1238
  %v1240 = vsub.f32 1.0, %v1239
  %v1241 = vmul.f32 %v1238, %v1240
  %v1242 = vadd.f32 %v1238, %v1241
  %vm1243 = vweird.f32 %v1237
  %vm1244 = vweird.f32 %v1238
  %vm1245 = vmor %vm1243, %vm1244
  %v1246 = vsel %vm1245, %v1238, %v1242
  %v1247 = vand.u32 2147483647, %v1237
  %vm1248 = vcmp.eq.f32.partialorder %v1247, 8.507059e+37
  %v1249 = vand.u32 %v1237, 2147483648
  %v1250 = vor.u32 1.1754944e-38, %v1249
  %v1251 = vsel %vm1248, %v1250, %v1246
  %v1252 = vmul.f32 1.0, %v1251
  %v1253 = vadd.f32 %v1210, %v141
  %v1254 = vmul.f32 %v1232, %v1253
  %v1255 = vadd.f32 %v1172, %v1254
  %v1256 = vtanh.pop %v1255
  %v1257 = vsub.f32 1.0, %v1252
  %v1258 = vmul.f32 %v1257, %v1256
  %v1259 = vmul.f32 %v1252, %v1068
  %v1260 = vadd.f32 %v1258, %v1259
  %s1261 = scalar_lea.vmem %s60, 36
  %v1262 = vld [vmem:[%s1261] sm:$0xff]
  %v1263 = vld [vmem:[%s1261 + $0x8] sm:$0xf]
  %v1264 = vunpack.c.l.bf16 %v1262
  %v1265 = vunpack.c.h.bf16 %v1262
  %v1266 = vunpack.c.l.bf16 %v1263
  %v1267 = vpack.c.bf16 %v1162, %v1162
  %1268 = vmatpush.bf16.msra.mxu0 %v474
  %1269 = vmatpush.bf16.msra.mxu0 %v471
  %1270 = vmatpush.bf16.msra.mxu0 %v468
  %1271 = vmatpush.bf16.msra.mxu0 %v465
  %1272 = vmatpush.bf16.msra.mxu0 %v462
  %1273 = vmatpush.bf16.msra.mxu0 %v459
  %1274 = vmatpush.bf16.msra.mxu0 %v456
  %1275 = vmatpush.bf16.msra.mxu0 %v453
  %1276 = vmatmul.bf16.gmra.mxu0 %v1267
  %v1277 = vpop.f32.mrf.mxu0
  %v1278 = vadd.f32 0.0, %v1277
  %v1279 = vpop.f32.mrf.mxu0
  %1280 = vdwg.mxu0
  %1281 = vmatpush.bf16.msra.mxu0 %v475
  %1282 = vmatpush.bf16.msra.mxu0 %v472
  %1283 = vmatpush.bf16.msra.mxu0 %v469
  %1284 = vmatpush.bf16.msra.mxu0 %v466
  %1285 = vmatpush.bf16.msra.mxu0 %v463
  %1286 = vmatpush.bf16.msra.mxu0 %v460
  %1287 = vmatpush.bf16.msra.mxu0 %v457
  %1288 = vmatpush.bf16.msra.mxu0 %v454
  %1289 = vmatmul.bf16.gmra.mxu0 %v1267
  %v1290 = vpop.f32.mrf.mxu0
  %v1291 = vadd.f32 0.0, %v1290
  %v1292 = vpop.f32.mrf.mxu0
  %1293 = vdwg.mxu0
  %1294 = vmatpush.bf16.msra.mxu0 %v476
  %1295 = vmatpush.bf16.msra.mxu0 %v473
  %1296 = vmatpush.bf16.msra.mxu0 %v470
  %1297 = vmatpush.bf16.msra.mxu0 %v467
  %1298 = vmatpush.bf16.msra.mxu0 %v464
  %1299 = vmatpush.bf16.msra.mxu0 %v461
  %1300 = vmatpush.bf16.msra.mxu0 %v458
  %1301 = vmatpush.bf16.msra.mxu0 %v455
  %1302 = vmatmul.bf16.gmra.mxu0 %v1267
  %v1303 = vpop.f32.mrf.mxu0
  %v1304 = vadd.f32 0.0, %v1303
  %v1305 = vpop.f32.mrf.mxu0
  %1306 = vdwg.mxu0
  %v1307 = vadd.f32 %v1264, %v1278
  %v1308 = vxor.u32 %v1307, 2147483648
  %v1309 = vmul.f32 %v1308, 1.442695
  %v1310 = vpow.pop %v1309
  %v1311 = vadd.f32 %v1310, 1.0
  %v1312 = vrcp.pop %v1311
  %v1313 = vmul.f32 %v1311, %v1312
  %v1314 = vsub.f32 1.0, %v1313
  %v1315 = vmul.f32 %v1312, %v1314
  %v1316 = vadd.f32 %v1312, %v1315
  %vm1317 = vweird.f32 %v1311
  %vm1318 = vweird.f32 %v1312
  %vm1319 = vmor %vm1317, %vm1318
  %v1320 = vsel %vm1319, %v1312, %v1316
  %v1321 = vand.u32 2147483647, %v1311
  %vm1322 = vcmp.eq.f32.partialorder %v1321, 8.507059e+37
  %v1323 = vand.u32 %v1311, 2147483648
  %v1324 = vor.u32 1.1754944e-38, %v1323
  %v1325 = vsel %vm1322, %v1324, %v1320
  %v1326 = vmul.f32 1.0, %v1325
  %v1327 = vadd.f32 %v1265, %v1291
  %v1328 = vxor.u32 %v1327, 2147483648
  %v1329 = vmul.f32 %v1328, 1.442695
  %v1330 = vpow.pop %v1329
  %v1331 = vadd.f32 %v1330, 1.0
  %v1332 = vrcp.pop %v1331
  %v1333 = vmul.f32 %v1331, %v1332
  %v1334 = vsub.f32 1.0, %v1333
  %v1335 = vmul.f32 %v1332, %v1334
  %v1336 = vadd.f32 %v1332, %v1335
  %vm1337 = vweird.f32 %v1331
  %vm1338 = vweird.f32 %v1332
  %vm1339 = vmor %vm1337, %vm1338
  %v1340 = vsel %vm1339, %v1332, %v1336
  %v1341 = vand.u32 2147483647, %v1331
  %vm1342 = vcmp.eq.f32.partialorder %v1341, 8.507059e+37
  %v1343 = vand.u32 %v1331, 2147483648
  %v1344 = vor.u32 1.1754944e-38, %v1343
  %v1345 = vsel %vm1342, %v1344, %v1340
  %v1346 = vmul.f32 1.0, %v1345
  %v1347 = vadd.f32 %v1304, %v142
  %v1348 = vmul.f32 %v1326, %v1347
  %v1349 = vadd.f32 %v1266, %v1348
  %v1350 = vtanh.pop %v1349
  %v1351 = vsub.f32 1.0, %v1346
  %v1352 = vmul.f32 %v1351, %v1350
  %v1353 = vmul.f32 %v1346, %v1162
  %v1354 = vadd.f32 %v1352, %v1353
  %s1355 = scalar_lea.vmem %s8, 32
  %1356 = vst [vmem:[%s1355] sm:$0xff] %v1260
  %s1357 = scalar_lea.vmem %s68, 24
  %1358 = vst [vmem:[%s1357] sm:$0xff] %v1354
  %s1359 = scalar_lea.vmem %s0, 60
  %v1360 = vld [vmem:[%s1359] sm:$0xff]
  %v1361 = vld [vmem:[%s1359 + $0x8] sm:$0xf]
  %v1362 = vunpack.c.l.bf16 %v1360
  %v1363 = vunpack.c.h.bf16 %v1360
  %v1364 = vunpack.c.l.bf16 %v1361
  %v1365 = vpack.c.bf16 %v1260, %v1260
  %1366 = vmatpush.bf16.msra.mxu0 %v252
  %1367 = vmatpush.bf16.msra.mxu0 %v249
  %1368 = vmatpush.bf16.msra.mxu0 %v246
  %1369 = vmatpush.bf16.msra.mxu0 %v243
  %1370 = vmatpush.bf16.msra.mxu0 %v240
  %1371 = vmatpush.bf16.msra.mxu0 %v237
  %1372 = vmatpush.bf16.msra.mxu0 %v234
  %1373 = vmatpush.bf16.msra.mxu0 %v231
  %1374 = vmatmul.bf16.gmra.mxu0 %v1365
  %v1375 = vpop.f32.mrf.mxu0
  %v1376 = vadd.f32 0.0, %v1375
  %v1377 = vpop.f32.mrf.mxu0
  %1378 = vdwg.mxu0
  %1379 = vmatpush.bf16.msra.mxu0 %v253
  %1380 = vmatpush.bf16.msra.mxu0 %v250
  %1381 = vmatpush.bf16.msra.mxu0 %v247
  %1382 = vmatpush.bf16.msra.mxu0 %v244
  %1383 = vmatpush.bf16.msra.mxu0 %v241
  %1384 = vmatpush.bf16.msra.mxu0 %v238
  %1385 = vmatpush.bf16.msra.mxu0 %v235
  %1386 = vmatpush.bf16.msra.mxu0 %v232
  %1387 = vmatmul.bf16.gmra.mxu0 %v1365
  %v1388 = vpop.f32.mrf.mxu0
  %v1389 = vadd.f32 0.0, %v1388
  %v1390 = vpop.f32.mrf.mxu0
  %1391 = vdwg.mxu0
  %1392 = vmatpush.bf16.msra.mxu0 %v254
  %1393 = vmatpush.bf16.msra.mxu0 %v251
  %1394 = vmatpush.bf16.msra.mxu0 %v248
  %1395 = vmatpush.bf16.msra.mxu0 %v245
  %1396 = vmatpush.bf16.msra.mxu0 %v242
  %1397 = vmatpush.bf16.msra.mxu0 %v239
  %1398 = vmatpush.bf16.msra.mxu0 %v236
  %1399 = vmatpush.bf16.msra.mxu0 %v233
  %1400 = vmatmul.bf16.gmra.mxu0 %v1365
  %v1401 = vpop.f32.mrf.mxu0
  %v1402 = vadd.f32 0.0, %v1401
  %v1403 = vpop.f32.mrf.mxu0
  %1404 = vdwg.mxu0
  %v1405 = vadd.f32 %v1362, %v1376
  %v1406 = vxor.u32 %v1405, 2147483648
  %v1407 = vmul.f32 %v1406, 1.442695
  %v1408 = vpow.pop %v1407
  %v1409 = vadd.f32 %v1408, 1.0
  %v1410 = vrcp.pop %v1409
  %v1411 = vmul.f32 %v1409, %v1410
  %v1412 = vsub.f32 1.0, %v1411
  %v1413 = vmul.f32 %v1410, %v1412
  %v1414 = vadd.f32 %v1410, %v1413
  %vm1415 = vweird.f32 %v1409
  %vm1416 = vweird.f32 %v1410
  %vm1417 = vmor %vm1415, %vm1416
  %v1418 = vsel %vm1417, %v1410, %v1414
  %v1419 = vand.u32 2147483647, %v1409
  %vm1420 = vcmp.eq.f32.partialorder %v1419, 8.507059e+37
  %v1421 = vand.u32 %v1409, 2147483648
  %v1422 = vor.u32 1.1754944e-38, %v1421
  %v1423 = vsel %vm1420, %v1422, %v1418
  %v1424 = vmul.f32 1.0, %v1423
  %v1425 = vadd.f32 %v1363, %v1389
  %v1426 = vxor.u32 %v1425, 2147483648
  %v1427 = vmul.f32 %v1426, 1.442695
  %v1428 = vpow.pop %v1427
  %v1429 = vadd.f32 %v1428, 1.0
  %v1430 = vrcp.pop %v1429
  %v1431 = vmul.f32 %v1429, %v1430
  %v1432 = vsub.f32 1.0, %v1431
  %v1433 = vmul.f32 %v1430, %v1432
  %v1434 = vadd.f32 %v1430, %v1433
  %vm1435 = vweird.f32 %v1429
  %vm1436 = vweird.f32 %v1430
  %vm1437 = vmor %vm1435, %vm1436
  %v1438 = vsel %vm1437, %v1430, %v1434
  %v1439 = vand.u32 2147483647, %v1429
  %vm1440 = vcmp.eq.f32.partialorder %v1439, 8.507059e+37
  %v1441 = vand.u32 %v1429, 2147483648
  %v1442 = vor.u32 1.1754944e-38, %v1441
  %v1443 = vsel %vm1440, %v1442, %v1438
  %v1444 = vmul.f32 1.0, %v1443
  %v1445 = vadd.f32 %v1402, %v141
  %v1446 = vmul.f32 %v1424, %v1445
  %v1447 = vadd.f32 %v1364, %v1446
  %v1448 = vtanh.pop %v1447
  %v1449 = vsub.f32 1.0, %v1444
  %v1450 = vmul.f32 %v1449, %v1448
  %v1451 = vmul.f32 %v1444, %v1260
  %v1452 = vadd.f32 %v1450, %v1451
  %s1453 = scalar_lea.vmem %s60, 24
  %v1454 = vld [vmem:[%s1453] sm:$0xff]
  %v1455 = vld [vmem:[%s1453 + $0x8] sm:$0xf]
  %v1456 = vunpack.c.l.bf16 %v1454
  %v1457 = vunpack.c.h.bf16 %v1454
  %v1458 = vunpack.c.l.bf16 %v1455
  %v1459 = vpack.c.bf16 %v1354, %v1354
  %1460 = vmatpush.bf16.msra.mxu0 %v474
  %1461 = vmatpush.bf16.msra.mxu0 %v471
  %1462 = vmatpush.bf16.msra.mxu0 %v468
  %1463 = vmatpush.bf16.msra.mxu0 %v465
  %1464 = vmatpush.bf16.msra.mxu0 %v462
  %1465 = vmatpush.bf16.msra.mxu0 %v459
  %1466 = vmatpush.bf16.msra.mxu0 %v456
  %1467 = vmatpush.bf16.msra.mxu0 %v453
  %1468 = vmatmul.bf16.gmra.mxu0 %v1459
  %v1469 = vpop.f32.mrf.mxu0
  %v1470 = vadd.f32 0.0, %v1469
  %v1471 = vpop.f32.mrf.mxu0
  %1472 = vdwg.mxu0
  %1473 = vmatpush.bf16.msra.mxu0 %v475
  %1474 = vmatpush.bf16.msra.mxu0 %v472
  %1475 = vmatpush.bf16.msra.mxu0 %v469
  %1476 = vmatpush.bf16.msra.mxu0 %v466
  %1477 = vmatpush.bf16.msra.mxu0 %v463
  %1478 = vmatpush.bf16.msra.mxu0 %v460
  %1479 = vmatpush.bf16.msra.mxu0 %v457
  %1480 = vmatpush.bf16.msra.mxu0 %v454
  %1481 = vmatmul.bf16.gmra.mxu0 %v1459
  %v1482 = vpop.f32.mrf.mxu0
  %v1483 = vadd.f32 0.0, %v1482
  %v1484 = vpop.f32.mrf.mxu0
  %1485 = vdwg.mxu0
  %1486 = vmatpush.bf16.msra.mxu0 %v476
  %1487 = vmatpush.bf16.msra.mxu0 %v473
  %1488 = vmatpush.bf16.msra.mxu0 %v470
  %1489 = vmatpush.bf16.msra.mxu0 %v467
  %1490 = vmatpush.bf16.msra.mxu0 %v464
  %1491 = vmatpush.bf16.msra.mxu0 %v461
  %1492 = vmatpush.bf16.msra.mxu0 %v458
  %1493 = vmatpush.bf16.msra.mxu0 %v455
  %1494 = vmatmul.bf16.gmra.mxu0 %v1459
  %v1495 = vpop.f32.mrf.mxu0
  %v1496 = vadd.f32 0.0, %v1495
  %v1497 = vpop.f32.mrf.mxu0
  %1498 = vdwg.mxu0
  %v1499 = vadd.f32 %v1456, %v1470
  %v1500 = vxor.u32 %v1499, 2147483648
  %v1501 = vmul.f32 %v1500, 1.442695
  %v1502 = vpow.pop %v1501
  %v1503 = vadd.f32 %v1502, 1.0
  %v1504 = vrcp.pop %v1503
  %v1505 = vmul.f32 %v1503, %v1504
  %v1506 = vsub.f32 1.0, %v1505
  %v1507 = vmul.f32 %v1504, %v1506
  %v1508 = vadd.f32 %v1504, %v1507
  %vm1509 = vweird.f32 %v1503
  %vm1510 = vweird.f32 %v1504
  %vm1511 = vmor %vm1509, %vm1510
  %v1512 = vsel %vm1511, %v1504, %v1508
  %v1513 = vand.u32 2147483647, %v1503
  %vm1514 = vcmp.eq.f32.partialorder %v1513, 8.507059e+37
  %v1515 = vand.u32 %v1503, 2147483648
  %v1516 = vor.u32 1.1754944e-38, %v1515
  %v1517 = vsel %vm1514, %v1516, %v1512
  %v1518 = vmul.f32 1.0, %v1517
  %v1519 = vadd.f32 %v1457, %v1483
  %v1520 = vxor.u32 %v1519, 2147483648
  %v1521 = vmul.f32 %v1520, 1.442695
  %v1522 = vpow.pop %v1521
  %v1523 = vadd.f32 %v1522, 1.0
  %v1524 = vrcp.pop %v1523
  %v1525 = vmul.f32 %v1523, %v1524
  %v1526 = vsub.f32 1.0, %v1525
  %v1527 = vmul.f32 %v1524, %v1526
  %v1528 = vadd.f32 %v1524, %v1527
  %vm1529 = vweird.f32 %v1523
  %vm1530 = vweird.f32 %v1524
  %vm1531 = vmor %vm1529, %vm1530
  %v1532 = vsel %vm1531, %v1524, %v1528
  %v1533 = vand.u32 2147483647, %v1523
  %vm1534 = vcmp.eq.f32.partialorder %v1533, 8.507059e+37
  %v1535 = vand.u32 %v1523, 2147483648
  %v1536 = vor.u32 1.1754944e-38, %v1535
  %v1537 = vsel %vm1534, %v1536, %v1532
  %v1538 = vmul.f32 1.0, %v1537
  %v1539 = vadd.f32 %v1496, %v142
  %v1540 = vmul.f32 %v1518, %v1539
  %v1541 = vadd.f32 %v1458, %v1540
  %v1542 = vtanh.pop %v1541
  %v1543 = vsub.f32 1.0, %v1538
  %v1544 = vmul.f32 %v1543, %v1542
  %v1545 = vmul.f32 %v1538, %v1354
  %v1546 = vadd.f32 %v1544, %v1545
  %s1547 = scalar_lea.vmem %s8, 40
  %1548 = vst [vmem:[%s1547] sm:$0xff] %v1452
  %s1549 = scalar_lea.vmem %s68, 16
  %1550 = vst [vmem:[%s1549] sm:$0xff] %v1546
  %s1551 = scalar_lea.vmem %s0, 72
  %v1552 = vld [vmem:[%s1551] sm:$0xff]
  %v1553 = vld [vmem:[%s1551 + $0x8] sm:$0xf]
  %v1554 = vunpack.c.l.bf16 %v1552
  %v1555 = vunpack.c.h.bf16 %v1552
  %v1556 = vunpack.c.l.bf16 %v1553
  %v1557 = vpack.c.bf16 %v1452, %v1452
  %1558 = vmatpush.bf16.msra.mxu0 %v252
  %1559 = vmatpush.bf16.msra.mxu0 %v249
  %1560 = vmatpush.bf16.msra.mxu0 %v246
  %1561 = vmatpush.bf16.msra.mxu0 %v243
  %1562 = vmatpush.bf16.msra.mxu0 %v240
  %1563 = vmatpush.bf16.msra.mxu0 %v237
  %1564 = vmatpush.bf16.msra.mxu0 %v234
  %1565 = vmatpush.bf16.msra.mxu0 %v231
  %1566 = vmatmul.bf16.gmra.mxu0 %v1557
  %v1567 = vpop.f32.mrf.mxu0
  %v1568 = vadd.f32 0.0, %v1567
  %v1569 = vpop.f32.mrf.mxu0
  %1570 = vdwg.mxu0
  %1571 = vmatpush.bf16.msra.mxu0 %v253
  %1572 = vmatpush.bf16.msra.mxu0 %v250
  %1573 = vmatpush.bf16.msra.mxu0 %v247
  %1574 = vmatpush.bf16.msra.mxu0 %v244
  %1575 = vmatpush.bf16.msra.mxu0 %v241
  %1576 = vmatpush.bf16.msra.mxu0 %v238
  %1577 = vmatpush.bf16.msra.mxu0 %v235
  %1578 = vmatpush.bf16.msra.mxu0 %v232
  %1579 = vmatmul.bf16.gmra.mxu0 %v1557
  %v1580 = vpop.f32.mrf.mxu0
  %v1581 = vadd.f32 0.0, %v1580
  %v1582 = vpop.f32.mrf.mxu0
  %1583 = vdwg.mxu0
  %1584 = vmatpush.bf16.msra.mxu0 %v254
  %1585 = vmatpush.bf16.msra.mxu0 %v251
  %1586 = vmatpush.bf16.msra.mxu0 %v248
  %1587 = vmatpush.bf16.msra.mxu0 %v245
  %1588 = vmatpush.bf16.msra.mxu0 %v242
  %1589 = vmatpush.bf16.msra.mxu0 %v239
  %1590 = vmatpush.bf16.msra.mxu0 %v236
  %1591 = vmatpush.bf16.msra.mxu0 %v233
  %1592 = vmatmul.bf16.gmra.mxu0 %v1557
  %v1593 = vpop.f32.mrf.mxu0
  %v1594 = vadd.f32 0.0, %v1593
  %v1595 = vpop.f32.mrf.mxu0
  %1596 = vdwg.mxu0
  %v1597 = vadd.f32 %v1554, %v1568
  %v1598 = vxor.u32 %v1597, 2147483648
  %v1599 = vmul.f32 %v1598, 1.442695
  %v1600 = vpow.pop %v1599
  %v1601 = vadd.f32 %v1600, 1.0
  %v1602 = vrcp.pop %v1601
  %v1603 = vmul.f32 %v1601, %v1602
  %v1604 = vsub.f32 1.0, %v1603
  %v1605 = vmul.f32 %v1602, %v1604
  %v1606 = vadd.f32 %v1602, %v1605
  %vm1607 = vweird.f32 %v1601
  %vm1608 = vweird.f32 %v1602
  %vm1609 = vmor %vm1607, %vm1608
  %v1610 = vsel %vm1609, %v1602, %v1606
  %v1611 = vand.u32 2147483647, %v1601
  %vm1612 = vcmp.eq.f32.partialorder %v1611, 8.507059e+37
  %v1613 = vand.u32 %v1601, 2147483648
  %v1614 = vor.u32 1.1754944e-38, %v1613
  %v1615 = vsel %vm1612, %v1614, %v1610
  %v1616 = vmul.f32 1.0, %v1615
  %v1617 = vadd.f32 %v1555, %v1581
  %v1618 = vxor.u32 %v1617, 2147483648
  %v1619 = vmul.f32 %v1618, 1.442695
  %v1620 = vpow.pop %v1619
  %v1621 = vadd.f32 %v1620, 1.0
  %v1622 = vrcp.pop %v1621
  %v1623 = vmul.f32 %v1621, %v1622
  %v1624 = vsub.f32 1.0, %v1623
  %v1625 = vmul.f32 %v1622, %v1624
  %v1626 = vadd.f32 %v1622, %v1625
  %vm1627 = vweird.f32 %v1621
  %vm1628 = vweird.f32 %v1622
  %vm1629 = vmor %vm1627, %vm1628
  %v1630 = vsel %vm1629, %v1622, %v1626
  %v1631 = vand.u32 2147483647, %v1621
  %vm1632 = vcmp.eq.f32.partialorder %v1631, 8.507059e+37
  %v1633 = vand.u32 %v1621, 2147483648
  %v1634 = vor.u32 1.1754944e-38, %v1633
  %v1635 = vsel %vm1632, %v1634, %v1630
  %v1636 = vmul.f32 1.0, %v1635
  %v1637 = vadd.f32 %v1594, %v141
  %v1638 = vmul.f32 %v1616, %v1637
  %v1639 = vadd.f32 %v1556, %v1638
  %v1640 = vtanh.pop %v1639
  %v1641 = vsub.f32 1.0, %v1636
  %v1642 = vmul.f32 %v1641, %v1640
  %v1643 = vmul.f32 %v1636, %v1452
  %v1644 = vadd.f32 %v1642, %v1643
  %s1645 = scalar_lea.vmem %s60, 12
  %v1646 = vld [vmem:[%s1645] sm:$0xff]
  %v1647 = vld [vmem:[%s1645 + $0x8] sm:$0xf]
  %v1648 = vunpack.c.l.bf16 %v1646
  %v1649 = vunpack.c.h.bf16 %v1646
  %v1650 = vunpack.c.l.bf16 %v1647
  %v1651 = vpack.c.bf16 %v1546, %v1546
  %1652 = vmatpush.bf16.msra.mxu0 %v474
  %1653 = vmatpush.bf16.msra.mxu0 %v471
  %1654 = vmatpush.bf16.msra.mxu0 %v468
  %1655 = vmatpush.bf16.msra.mxu0 %v465
  %1656 = vmatpush.bf16.msra.mxu0 %v462
  %1657 = vmatpush.bf16.msra.mxu0 %v459
  %1658 = vmatpush.bf16.msra.mxu0 %v456
  %1659 = vmatpush.bf16.msra.mxu0 %v453
  %1660 = vmatmul.bf16.gmra.mxu0 %v1651
  %v1661 = vpop.f32.mrf.mxu0
  %v1662 = vadd.f32 0.0, %v1661
  %v1663 = vpop.f32.mrf.mxu0
  %1664 = vdwg.mxu0
  %1665 = vmatpush.bf16.msra.mxu0 %v475
  %1666 = vmatpush.bf16.msra.mxu0 %v472
  %1667 = vmatpush.bf16.msra.mxu0 %v469
  %1668 = vmatpush.bf16.msra.mxu0 %v466
  %1669 = vmatpush.bf16.msra.mxu0 %v463
  %1670 = vmatpush.bf16.msra.mxu0 %v460
  %1671 = vmatpush.bf16.msra.mxu0 %v457
  %1672 = vmatpush.bf16.msra.mxu0 %v454
  %1673 = vmatmul.bf16.gmra.mxu0 %v1651
  %v1674 = vpop.f32.mrf.mxu0
  %v1675 = vadd.f32 0.0, %v1674
  %v1676 = vpop.f32.mrf.mxu0
  %1677 = vdwg.mxu0
  %1678 = vmatpush.bf16.msra.mxu0 %v476
  %1679 = vmatpush.bf16.msra.mxu0 %v473
  %1680 = vmatpush.bf16.msra.mxu0 %v470
  %1681 = vmatpush.bf16.msra.mxu0 %v467
  %1682 = vmatpush.bf16.msra.mxu0 %v464
  %1683 = vmatpush.bf16.msra.mxu0 %v461
  %1684 = vmatpush.bf16.msra.mxu0 %v458
  %1685 = vmatpush.bf16.msra.mxu0 %v455
  %1686 = vmatmul.bf16.gmra.mxu0 %v1651
  %v1687 = vpop.f32.mrf.mxu0
  %v1688 = vadd.f32 0.0, %v1687
  %v1689 = vpop.f32.mrf.mxu0
  %1690 = vdwg.mxu0
  %v1691 = vadd.f32 %v1648, %v1662
  %v1692 = vxor.u32 %v1691, 2147483648
  %v1693 = vmul.f32 %v1692, 1.442695
  %v1694 = vpow.pop %v1693
  %v1695 = vadd.f32 %v1694, 1.0
  %v1696 = vrcp.pop %v1695
  %v1697 = vmul.f32 %v1695, %v1696
  %v1698 = vsub.f32 1.0, %v1697
  %v1699 = vmul.f32 %v1696, %v1698
  %v1700 = vadd.f32 %v1696, %v1699
  %vm1701 = vweird.f32 %v1695
  %vm1702 = vweird.f32 %v1696
  %vm1703 = vmor %vm1701, %vm1702
  %v1704 = vsel %vm1703, %v1696, %v1700
  %v1705 = vand.u32 2147483647, %v1695
  %vm1706 = vcmp.eq.f32.partialorder %v1705, 8.507059e+37
  %v1707 = vand.u32 %v1695, 2147483648
  %v1708 = vor.u32 1.1754944e-38, %v1707
  %v1709 = vsel %vm1706, %v1708, %v1704
  %v1710 = vmul.f32 1.0, %v1709
  %v1711 = vadd.f32 %v1649, %v1675
  %v1712 = vxor.u32 %v1711, 2147483648
  %v1713 = vmul.f32 %v1712, 1.442695
  %v1714 = vpow.pop %v1713
  %v1715 = vadd.f32 %v1714, 1.0
  %v1716 = vrcp.pop %v1715
  %v1717 = vmul.f32 %v1715, %v1716
  %v1718 = vsub.f32 1.0, %v1717
  %v1719 = vmul.f32 %v1716, %v1718
  %v1720 = vadd.f32 %v1716, %v1719
  %vm1721 = vweird.f32 %v1715
  %vm1722 = vweird.f32 %v1716
  %vm1723 = vmor %vm1721, %vm1722
  %v1724 = vsel %vm1723, %v1716, %v1720
  %v1725 = vand.u32 2147483647, %v1715
  %vm1726 = vcmp.eq.f32.partialorder %v1725, 8.507059e+37
  %v1727 = vand.u32 %v1715, 2147483648
  %v1728 = vor.u32 1.1754944e-38, %v1727
  %v1729 = vsel %vm1726, %v1728, %v1724
  %v1730 = vmul.f32 1.0, %v1729
  %v1731 = vadd.f32 %v1688, %v142
  %v1732 = vmul.f32 %v1710, %v1731
  %v1733 = vadd.f32 %v1650, %v1732
  %v1734 = vtanh.pop %v1733
  %v1735 = vsub.f32 1.0, %v1730
  %v1736 = vmul.f32 %v1735, %v1734
  %v1737 = vmul.f32 %v1730, %v1546
  %v1738 = vadd.f32 %v1736, %v1737
  %s1739 = scalar_lea.vmem %s8, 48
  %1740 = vst [vmem:[%s1739] sm:$0xff] %v1644
  %s1741 = scalar_lea.vmem %s68, 8
  %1742 = vst [vmem:[%s1741] sm:$0xff] %v1738
  %s1743 = scalar_lea.vmem %s0, 84
  %v1744 = vld [vmem:[%s1743] sm:$0xff]
  %v1745 = vld [vmem:[%s1743 + $0x8] sm:$0xf]
  %v1746 = vunpack.c.l.bf16 %v1744
  %v1747 = vunpack.c.h.bf16 %v1744
  %v1748 = vunpack.c.l.bf16 %v1745
  %v1749 = vpack.c.bf16 %v1644, %v1644
  %1750 = vmatpush.bf16.msra.mxu0 %v252
  %1751 = vmatpush.bf16.msra.mxu0 %v249
  %1752 = vmatpush.bf16.msra.mxu0 %v246
  %1753 = vmatpush.bf16.msra.mxu0 %v243
  %1754 = vmatpush.bf16.msra.mxu0 %v240
  %1755 = vmatpush.bf16.msra.mxu0 %v237
  %1756 = vmatpush.bf16.msra.mxu0 %v234
  %1757 = vmatpush.bf16.msra.mxu0 %v231
  %1758 = vmatmul.bf16.gmra.mxu0 %v1749
  %v1759 = vpop.f32.mrf.mxu0
  %v1760 = vadd.f32 0.0, %v1759
  %v1761 = vpop.f32.mrf.mxu0
  %1762 = vdwg.mxu0
  %1763 = vmatpush.bf16.msra.mxu0 %v253
  %1764 = vmatpush.bf16.msra.mxu0 %v250
  %1765 = vmatpush.bf16.msra.mxu0 %v247
  %1766 = vmatpush.bf16.msra.mxu0 %v244
  %1767 = vmatpush.bf16.msra.mxu0 %v241
  %1768 = vmatpush.bf16.msra.mxu0 %v238
  %1769 = vmatpush.bf16.msra.mxu0 %v235
  %1770 = vmatpush.bf16.msra.mxu0 %v232
  %1771 = vmatmul.bf16.gmra.mxu0 %v1749
  %v1772 = vpop.f32.mrf.mxu0
  %v1773 = vadd.f32 0.0, %v1772
  %v1774 = vpop.f32.mrf.mxu0
  %1775 = vdwg.mxu0
  %1776 = vmatpush.bf16.msra.mxu0 %v254
  %1777 = vmatpush.bf16.msra.mxu0 %v251
  %1778 = vmatpush.bf16.msra.mxu0 %v248
  %1779 = vmatpush.bf16.msra.mxu0 %v245
  %1780 = vmatpush.bf16.msra.mxu0 %v242
  %1781 = vmatpush.bf16.msra.mxu0 %v239
  %1782 = vmatpush.bf16.msra.mxu0 %v236
  %1783 = vmatpush.bf16.msra.mxu0 %v233
  %1784 = vmatmul.bf16.gmra.mxu0 %v1749
  %v1785 = vpop.f32.mrf.mxu0
  %v1786 = vadd.f32 0.0, %v1785
  %v1787 = vpop.f32.mrf.mxu0
  %1788 = vdwg.mxu0
  %v1789 = vadd.f32 %v1746, %v1760
  %v1790 = vxor.u32 %v1789, 2147483648
  %v1791 = vmul.f32 %v1790, 1.442695
  %v1792 = vpow.pop %v1791
  %v1793 = vadd.f32 %v1792, 1.0
  %v1794 = vrcp.pop %v1793
  %v1795 = vmul.f32 %v1793, %v1794
  %v1796 = vsub.f32 1.0, %v1795
  %v1797 = vmul.f32 %v1794, %v1796
  %v1798 = vadd.f32 %v1794, %v1797
  %vm1799 = vweird.f32 %v1793
  %vm1800 = vweird.f32 %v1794
  %vm1801 = vmor %vm1799, %vm1800
  %v1802 = vsel %vm1801, %v1794, %v1798
  %v1803 = vand.u32 2147483647, %v1793
  %vm1804 = vcmp.eq.f32.partialorder %v1803, 8.507059e+37
  %v1805 = vand.u32 %v1793, 2147483648
  %v1806 = vor.u32 1.1754944e-38, %v1805
  %v1807 = vsel %vm1804, %v1806, %v1802
  %v1808 = vmul.f32 1.0, %v1807
  %v1809 = vadd.f32 %v1747, %v1773
  %v1810 = vxor.u32 %v1809, 2147483648
  %v1811 = vmul.f32 %v1810, 1.442695
  %v1812 = vpow.pop %v1811
  %v1813 = vadd.f32 %v1812, 1.0
  %v1814 = vrcp.pop %v1813
  %v1815 = vmul.f32 %v1813, %v1814
  %v1816 = vsub.f32 1.0, %v1815
  %v1817 = vmul.f32 %v1814, %v1816
  %v1818 = vadd.f32 %v1814, %v1817
  %vm1819 = vweird.f32 %v1813
  %vm1820 = vweird.f32 %v1814
  %vm1821 = vmor %vm1819, %vm1820
  %v1822 = vsel %vm1821, %v1814, %v1818
  %v1823 = vand.u32 2147483647, %v1813
  %vm1824 = vcmp.eq.f32.partialorder %v1823, 8.507059e+37
  %v1825 = vand.u32 %v1813, 2147483648
  %v1826 = vor.u32 1.1754944e-38, %v1825
  %v1827 = vsel %vm1824, %v1826, %v1822
  %v1828 = vmul.f32 1.0, %v1827
  %v1829 = vadd.f32 %v1786, %v141
  %v1830 = vmul.f32 %v1808, %v1829
  %v1831 = vadd.f32 %v1748, %v1830
  %v1832 = vtanh.pop %v1831
  %v1833 = vsub.f32 1.0, %v1828
  %v1834 = vmul.f32 %v1833, %v1832
  %v1835 = vmul.f32 %v1828, %v1644
  %v1836 = vadd.f32 %v1834, %v1835
  %v1837 = vld [vmem:[%s60] sm:$0xff]
  %v1838 = vld [vmem:[%s60 + $0x8] sm:$0xf]
  %v1839 = vunpack.c.l.bf16 %v1837
  %v1840 = vunpack.c.h.bf16 %v1837
  %v1841 = vunpack.c.l.bf16 %v1838
  %v1842 = vpack.c.bf16 %v1738, %v1738
  %1843 = vmatpush.bf16.msra.mxu0 %v474
  %1844 = vmatpush.bf16.msra.mxu0 %v471
  %1845 = vmatpush.bf16.msra.mxu0 %v468
  %1846 = vmatpush.bf16.msra.mxu0 %v465
  %1847 = vmatpush.bf16.msra.mxu0 %v462
  %1848 = vmatpush.bf16.msra.mxu0 %v459
  %1849 = vmatpush.bf16.msra.mxu0 %v456
  %1850 = vmatpush.bf16.msra.mxu0 %v453
  %1851 = vmatmul.bf16.gmra.mxu0 %v1842
  %v1852 = vpop.f32.mrf.mxu0
  %v1853 = vadd.f32 0.0, %v1852
  %v1854 = vpop.f32.mrf.mxu0
  %1855 = vdwg.mxu0
  %1856 = vmatpush.bf16.msra.mxu0 %v475
  %1857 = vmatpush.bf16.msra.mxu0 %v472
  %1858 = vmatpush.bf16.msra.mxu0 %v469
  %1859 = vmatpush.bf16.msra.mxu0 %v466
  %1860 = vmatpush.bf16.msra.mxu0 %v463
  %1861 = vmatpush.bf16.msra.mxu0 %v460
  %1862 = vmatpush.bf16.msra.mxu0 %v457
  %1863 = vmatpush.bf16.msra.mxu0 %v454
  %1864 = vmatmul.bf16.gmra.mxu0 %v1842
  %v1865 = vpop.f32.mrf.mxu0
  %v1866 = vadd.f32 0.0, %v1865
  %v1867 = vpop.f32.mrf.mxu0
  %1868 = vdwg.mxu0
  %1869 = vmatpush.bf16.msra.mxu0 %v476
  %1870 = vmatpush.bf16.msra.mxu0 %v473
  %1871 = vmatpush.bf16.msra.mxu0 %v470
  %1872 = vmatpush.bf16.msra.mxu0 %v467
  %1873 = vmatpush.bf16.msra.mxu0 %v464
  %1874 = vmatpush.bf16.msra.mxu0 %v461
  %1875 = vmatpush.bf16.msra.mxu0 %v458
  %1876 = vmatpush.bf16.msra.mxu0 %v455
  %1877 = vmatmul.bf16.gmra.mxu0 %v1842
  %v1878 = vpop.f32.mrf.mxu0
  %v1879 = vadd.f32 0.0, %v1878
  %v1880 = vpop.f32.mrf.mxu0
  %1881 = vdwg.mxu0
  %v1882 = vadd.f32 %v1839, %v1853
  %v1883 = vxor.u32 %v1882, 2147483648
  %v1884 = vmul.f32 %v1883, 1.442695
  %v1885 = vpow.pop %v1884
  %v1886 = vadd.f32 %v1885, 1.0
  %v1887 = vrcp.pop %v1886
  %v1888 = vmul.f32 %v1886, %v1887
  %v1889 = vsub.f32 1.0, %v1888
  %v1890 = vmul.f32 %v1887, %v1889
  %v1891 = vadd.f32 %v1887, %v1890
  %vm1892 = vweird.f32 %v1886
  %vm1893 = vweird.f32 %v1887
  %vm1894 = vmor %vm1892, %vm1893
  %v1895 = vsel %vm1894, %v1887, %v1891
  %v1896 = vand.u32 2147483647, %v1886
  %vm1897 = vcmp.eq.f32.partialorder %v1896, 8.507059e+37
  %v1898 = vand.u32 %v1886, 2147483648
  %v1899 = vor.u32 1.1754944e-38, %v1898
  %v1900 = vsel %vm1897, %v1899, %v1895
  %v1901 = vmul.f32 1.0, %v1900
  %v1902 = vadd.f32 %v1840, %v1866
  %v1903 = vxor.u32 %v1902, 2147483648
  %v1904 = vmul.f32 %v1903, 1.442695
  %v1905 = vpow.pop %v1904
  %v1906 = vadd.f32 %v1905, 1.0
  %v1907 = vrcp.pop %v1906
  %v1908 = vmul.f32 %v1906, %v1907
  %v1909 = vsub.f32 1.0, %v1908
  %v1910 = vmul.f32 %v1907, %v1909
  %v1911 = vadd.f32 %v1907, %v1910
  %vm1912 = vweird.f32 %v1906
  %vm1913 = vweird.f32 %v1907
  %vm1914 = vmor %vm1912, %vm1913
  %v1915 = vsel %vm1914, %v1907, %v1911
  %v1916 = vand.u32 2147483647, %v1906
  %vm1917 = vcmp.eq.f32.partialorder %v1916, 8.507059e+37
  %v1918 = vand.u32 %v1906, 2147483648
  %v1919 = vor.u32 1.1754944e-38, %v1918
  %v1920 = vsel %vm1917, %v1919, %v1915
  %v1921 = vmul.f32 1.0, %v1920
  %v1922 = vadd.f32 %v1879, %v142
  %v1923 = vmul.f32 %v1901, %v1922
  %v1924 = vadd.f32 %v1841, %v1923
  %v1925 = vtanh.pop %v1924
  %v1926 = vsub.f32 1.0, %v1921
  %v1927 = vmul.f32 %v1926, %v1925
  %v1928 = vmul.f32 %v1921, %v1738
  %v1929 = vadd.f32 %v1927, %v1928
  %s1930 = scalar_lea.vmem %s8, 56
  %1931 = vst [vmem:[%s1930] sm:$0xff] %v1836
  %1932 = vst [vmem:[%s68] sm:$0xff] %v1929
  %1933 = vst [vmem:[#allocation2] sm:$0xff] %v1836
  %1934 = vst [vmem:[#allocation3] sm:$0xff] %v1929
  // Predicated region
  $region38: #{encoder_forward.3} parent=0 // pred_check
    %p1935 = pneg %p71
  $region39: #{encoder_forward.3} parent=0 // pred_check_branch
    %1937 = sbr.rel (%p1935) target = $region41
  $region40: #{encoder_forward.3} parent=0 // pred_region
    %v1938 = vpack.c.bf16 %v1836, %v1836
    %v1939 = vpack.c.bf16 %v1929, %v1929
    %v1940 = vld [vmem:[%s6] sm:$0xf]
    %v1941 = vld [vmem:[%s6 + $0x4] sm:$0xf]
    %v1942 = vld [vmem:[%s6 + $0x8] sm:$0xf]
    %v1943 = vld [vmem:[%s6 + $0xc] sm:$0xf]
    %v1944 = vld [vmem:[%s6 + $0x10] sm:$0xf]
    %v1945 = vld [vmem:[%s6 + $0x14] sm:$0xf]
    %v1946 = vld [vmem:[%s6 + $0x18] sm:$0xf]
    %v1947 = vld [vmem:[%s6 + $0x1c] sm:$0xf]
    %v1948 = vld [vmem:[%s6 + $0x20] sm:$0xf]
    %v1949 = vld [vmem:[%s6 + $0x24] sm:$0xf]
    %v1950 = vld [vmem:[%s6 + $0x28] sm:$0xf]
    %v1951 = vld [vmem:[%s6 + $0x2c] sm:$0xf]
    %v1952 = vld [vmem:[%s6 + $0x30] sm:$0xf]
    %v1953 = vld [vmem:[%s6 + $0x34] sm:$0xf]
    %v1954 = vld [vmem:[%s6 + $0x38] sm:$0xf]
    %v1955 = vld [vmem:[%s6 + $0x3c] sm:$0xf]
    %v1956 = vld [vmem:[%s6 + $0x40] sm:$0xf]
    %v1957 = vld [vmem:[%s6 + $0x44] sm:$0xf]
    %v1958 = vld [vmem:[%s6 + $0x48] sm:$0xf]
    %v1959 = vld [vmem:[%s6 + $0x4c] sm:$0xf]
    %v1960 = vld [vmem:[%s6 + $0x50] sm:$0xf]
    %v1961 = vld [vmem:[%s6 + $0x54] sm:$0xf]
    %v1962 = vld [vmem:[%s6 + $0x58] sm:$0xf]
    %v1963 = vld [vmem:[%s6 + $0x5c] sm:$0xf]
    %v1964 = vld [vmem:[%s6 + $0x60] sm:$0xf]
    %v1965 = vld [vmem:[%s6 + $0x64] sm:$0xf]
    %v1966 = vld [vmem:[%s6 + $0x68] sm:$0xf]
    %v1967 = vld [vmem:[%s6 + $0x6c] sm:$0xf]
    %v1968 = vld [vmem:[%s6 + $0x70] sm:$0xf]
    %v1969 = vld [vmem:[%s6 + $0x74] sm:$0xf]
    %v1970 = vld [vmem:[%s6 + $0x78] sm:$0xf]
    %v1971 = vld [vmem:[%s6 + $0x7c] sm:$0xf]
    %v1972 = vld [vmem:[%s7] sm:$0xff]
    %v2005 = vunpack.c.l.b16 %v1940
    %v2006 = vunpack.c.l.b16 %v1941
    %v2007 = vunpack.c.l.b16 %v1942
    %v2008 = vunpack.c.l.b16 %v1943
    %v2009 = vunpack.c.l.b16 %v1944
    %v2010 = vunpack.c.l.b16 %v1945
    %v2011 = vunpack.c.l.b16 %v1946
    %v2012 = vunpack.c.l.b16 %v1947
    %v2013 = vunpack.c.l.b16 %v1948
    %v2014 = vunpack.c.l.b16 %v1949
    %v2015 = vunpack.c.l.b16 %v1950
    %v2016 = vunpack.c.l.b16 %v1951
    %v2017 = vunpack.c.l.b16 %v1952
    %v2018 = vunpack.c.l.b16 %v1953
    %v2019 = vunpack.c.l.b16 %v1954
    %v2020 = vunpack.c.l.b16 %v1955
    %v2021 = vunpack.c.l.b16 %v1956
    %v2022 = vunpack.c.l.b16 %v1957
    %v2023 = vunpack.c.l.b16 %v1958
    %v2024 = vunpack.c.l.b16 %v1959
    %v2025 = vunpack.c.l.b16 %v1960
    %v2026 = vunpack.c.l.b16 %v1961
    %v2027 = vunpack.c.l.b16 %v1962
    %v2028 = vunpack.c.l.b16 %v1963
    %v2029 = vunpack.c.l.b16 %v1964
    %v2030 = vunpack.c.l.b16 %v1965
    %v2031 = vunpack.c.l.b16 %v1966
    %v2032 = vunpack.c.l.b16 %v1967
    %v2033 = vunpack.c.l.b16 %v1968
    %v2034 = vunpack.c.l.b16 %v1969
    %v2035 = vunpack.c.l.b16 %v1970
    %v2036 = vunpack.c.l.b16 %v1971
    %v2037 = vpack.c.b16 %v2006, %v2005
    %v2038 = vpack.c.b16 %v2008, %v2007
    %v2039 = vpack.c.b16 %v2010, %v2009
    %v2040 = vpack.c.b16 %v2012, %v2011
    %v2041 = vpack.c.b16 %v2014, %v2013
    %v2042 = vpack.c.b16 %v2016, %v2015
    %v2043 = vpack.c.b16 %v2018, %v2017
    %v2044 = vpack.c.b16 %v2020, %v2019
    %v2045 = vpack.c.b16 %v2022, %v2021
    %v2046 = vpack.c.b16 %v2024, %v2023
    %v2047 = vpack.c.b16 %v2026, %v2025
    %v2048 = vpack.c.b16 %v2028, %v2027
    %v2049 = vpack.c.b16 %v2030, %v2029
    %v2050 = vpack.c.b16 %v2032, %v2031
    %v2051 = vpack.c.b16 %v2034, %v2033
    %v2052 = vpack.c.b16 %v2036, %v2035
    %2069 = vmatpush.bf16.msra.mxu0 %v2044
    %2070 = vmatpush.bf16.msra.mxu0 %v2043
    %2071 = vmatpush.bf16.msra.mxu0 %v2042
    %2072 = vmatpush.bf16.msra.mxu0 %v2041
    %2073 = vmatpush.bf16.msra.mxu0 %v2040
    %2074 = vmatpush.bf16.msra.mxu0 %v2039
    %2075 = vmatpush.bf16.msra.mxu0 %v2038
    %2076 = vmatpush.bf16.msra.mxu0 %v2037
    %2077 = vmatmul.bf16.gmra.mxu0 %v1938
    %v2078 = vpop.f32.mrf.mxu0
    %v2079 = vadd.f32 %v1972, %v2078
    %v2080 = vpop.f32.mrf.mxu0
    %2081 = vdwg.mxu0
    %2082 = vmatpush.bf16.msra.mxu0 %v2052
    %2083 = vmatpush.bf16.msra.mxu0 %v2051
    %2084 = vmatpush.bf16.msra.mxu0 %v2050
    %2085 = vmatpush.bf16.msra.mxu0 %v2049
    %2086 = vmatpush.bf16.msra.mxu0 %v2048
    %2087 = vmatpush.bf16.msra.mxu0 %v2047
    %2088 = vmatpush.bf16.msra.mxu0 %v2046
    %2089 = vmatpush.bf16.msra.mxu0 %v2045
    %2090 = vmatmul.bf16.gmra.mxu0 %v1939
    %v2091 = vpop.f32.mrf.mxu0
    %v2092 = vadd.f32 %v2079, %v2091
    %v2093 = vpop.f32.mrf.mxu0
    %2094 = vdwg.mxu0
    %v2095 = vtanh.pop %v2092
    %2096 = vst [vmem:[%s10] sm:$0xff] %v2095
  $region41: #{encoder_forward.3} parent=0 // pred_fallthru
    _
  %s2097 = ssub.s32 0, 0
  %s2098 = smul.u32 8, %s2097
  %p2099 = scmp.lt.s32.totalorder %s2098, 7
  %s2100 = scalar_select %p2099, %s2098, 7
  %s2101 = smul.addr %s2100, 8
  %s2102 = scalar_lea.vmem %s9, %s2101
  // Predicated region
  $region42: #{encoder_forward.3} parent=0 // pred_check
    _
  $region43: #{encoder_forward.3} parent=0 // pred_check_branch
    %2104 = sbr.rel (0) target = $region45
  $region44: #{encoder_forward.3} parent=0 // pred_region
    _
  $region45: #{encoder_forward.3} parent=0 // pred_fallthru
    _
  // Predicated region
  $region46: #{encoder_forward.3} parent=0 // pred_check
    _
  $region47: #{encoder_forward.3} parent=0 // pred_check_branch
    %2106 = sbr.rel (0) target = $region49
  $region48: #{encoder_forward.3} parent=0 // pred_region
    %s2107 = ssub.s32 0, 0
    %s2108 = smul.u32 8, %s2107
  $region49: #{encoder_forward.3} parent=0 // pred_fallthru
    _
  // Predicated region
  $region50: #{encoder_forward.3} parent=0 // pred_check
    _
  $region51: #{encoder_forward.3} parent=0 // pred_check_branch
    %2110 = sbr.rel (0) target = $region53
  $region52: #{encoder_forward.3} parent=0 // pred_region
    _
  $region53: #{encoder_forward.3} parent=0 // pred_fallthru
    _
  // Predicated region
  $region54: #{encoder_forward.3} parent=0 // pred_check
    _
  $region55: #{encoder_forward.3} parent=0 // pred_check_branch
    %2112 = sbr.rel (0) target = $region57
  $region56: #{encoder_forward.3} parent=0 // pred_region
    _
  $region57: #{encoder_forward.3} parent=0 // pred_fallthru
    _
  // Predicated region
  $region58: #{encoder_forward.3} parent=0 // pred_check
    _
  $region59: #{encoder_forward.3} parent=0 // pred_check_branch
    %2114 = sbr.rel (0) target = $region61
  $region60: #{encoder_forward.3} parent=0 // pred_region
    %s2115 = ssub.s32 0, 0
    %s2116 = smul.u32 8, %s2115
    %p2117 = scmp.lt.s32.totalorder %s2116, 7
    %s2118 = scalar_select %p2117, %s2116, 7
    %s2119 = smul.addr %s2118, 8
    %s2120 = scalar_lea.vmem %s9, %s2119
  $region61: #{encoder_forward.3} parent=0 // pred_fallthru
    _
  // Predicated region
  $region62: #{encoder_forward.3} parent=0 // pred_check
    _
  $region63: #{encoder_forward.3} parent=0 // pred_check_branch
    %2122 = sbr.rel (0) target = $region65
  $region64: #{encoder_forward.3} parent=0 // pred_region
    _
  $region65: #{encoder_forward.3} parent=0 // pred_fallthru
    _

</llo_original>
